<compile_context>
chip_gen: v5e
topology: v5e:2x2
jax: 0.10.0
libtpu: 0.0.40
codegen_flags: <defaults>
</compile_context>

<pallas_src>
import numpy as np
import jax
import jax.numpy as jnp
from jax import lax
from jax.experimental import pallas as pl
from jax.experimental.pallas import tpu as pltpu

BN_EPS = 1e-5           # nn.BatchNorm2d default eps
LRELU_SLOPE = 0.01      # nn.LeakyReLU default negative_slope
_LANE = 128
_SUBLANE = 8


# ---------------------------------------------------------------------------
# Host-side (trace-time) constant builders
# ---------------------------------------------------------------------------
def _tap_selection(h, w):
    """0/1 tensor S[t, m, s] = 1 iff input pixel s (= ih*w + iw) is the tap-t neighbour of
    output pixel m (= oh*OW + ow) for a k=3, stride=2, pad=1 conv.  Pure numpy constant."""
    oh_n, ow_n = h // 2, w // 2
    sel = np.zeros((9, oh_n * ow_n, h * w), np.float32)
    for kh in range(3):
        for kw in range(3):
            t = kh * 3 + kw
            for oh in range(oh_n):
                ih = 2 * oh + kh - 1
                if ih < 0 or ih >= h:
                    continue
                for ow in range(ow_n):
                    iw = 2 * ow + kw - 1
                    if iw < 0 or iw >= w:
                        continue
                    sel[t, oh * ow_n + ow, ih * w + iw] = 1.0
    return sel


def _pool_matrix(m, c):
    """(m*c, c) 0/1 matrix that sums the m spatial copies of each channel (channel-fast layout)."""
    return np.tile(np.eye(c, dtype=np.float32), (m, 1))


def _padded_bytes(shape, dtype):
    shape = tuple(shape)
    if len(shape) == 1:
        shape = (1,) + shape
    lead = int(np.prod(shape[:-2], dtype=np.int64)) if len(shape) > 2 else 1
    sub = -(-shape[-2] // _SUBLANE) * _SUBLANE
    lane = -(-shape[-1] // _LANE) * _LANE
    return lead * sub * lane * jnp.dtype(dtype).itemsize


def _vmem_limit(arrays, out_shapes):
    """VMEM limit sized from the actual operand footprint, capped for v7x's 64 MiB VMEM."""
    total = sum(_padded_bytes(a.shape, a.dtype) for a in arrays)
    total += sum(_padded_bytes(s.shape, s.dtype) for s in out_shapes)
    try:
        cap = int(pltpu.get_tpu_info().vmem_capacity_bytes)   # 64 MiB v7x / 128 MiB v5e,v6e
    except Exception:
        cap = 64 * 1024 * 1024
    want = 2 * total + (8 << 20)          # 2x headroom for compiler temporaries
    return int(min(max(want, 16 << 20), int(0.85 * cap)))


# ---------------------------------------------------------------------------
# The single fused encoder kernel
# ---------------------------------------------------------------------------
def _make_encoder_kernel(batch, layer_meta, latent):
    """layer_meta: list of (spatial_out, c_out) per conv layer (static Python ints)."""

    def kernel(*refs):
        mu_ref, lv_ref = refs[-2], refs[-1]
        a = refs[0][...]                                     # (B, H*W*Cin) f32, VMEM resident
        idx = 1
        for (m_out, c_out) in layer_meta:
            wexp_ref, bias_ref, gamma_ref, beta_ref, p_ref, pt_ref = refs[idx:idx + 6]
            idx += 6

            # Conv2d(k3, s2, p1): one dense MXU GEMM; the 9-tap im2col structure is already
            # folded into wexp, so no patches tensor is ever materialised.
            y = jnp.dot(a, wexp_ref[...], preferred_element_type=jnp.float32) + bias_ref[...]

            # BatchNorm2d training statistics over (B, OH, OW), fully in VMEM, f32,
            # centered two-pass variance (no E[y^2]-E[y]^2 cancellation).
            n_inv = 1.0 / float(batch * m_out)
            col_sum = jnp.sum(y, axis=0, keepdims=True)                        # (1, m*c)
            mean_c = jnp.dot(col_sum, p_ref[...],
                             preferred_element_type=jnp.float32) * n_inv       # (1, c)
            mean_b = jnp.dot(mean_c, pt_ref[...],
                             preferred_element_type=jnp.float32)               # (1, m*c)
            cen = y - mean_b
            sq_sum = jnp.sum(cen * cen, axis=0, keepdims=True)                 # (1, m*c)
            var_c = jnp.dot(sq_sum, p_ref[...],
                            preferred_element_type=jnp.float32) * n_inv        # (1, c)
            inv_b = jnp.dot(lax.rsqrt(var_c + BN_EPS), pt_ref[...],
                            preferred_element_type=jnp.float32)                # (1, m*c)

            z = cen * inv_b * gamma_ref[...] + beta_ref[...]
            a = jnp.where(z > 0, z, LRELU_SLOPE * z)                           # LeakyReLU

        # fc_mu / fc_var fused into one GEMM on the concatenated, row-permuted weight.
        w_head_ref, b_head_ref = refs[idx], refs[idx + 1]
        res = jnp.dot(a, w_head_ref[...], preferred_element_type=jnp.float32) + b_head_ref[...]
        mu_ref[...] = res[:, :latent]
        lv_ref[...] = res[:, latent:2 * latent]

    return kernel


# ---------------------------------------------------------------------------
# Encoder forward
# ---------------------------------------------------------------------------
def encoder_forward(params, x_nchw):
    b, c_in, h, w = x_nchw.shape
    # One-time layout change: NCHW -> lane-dense flattened NHWC rows (B, H*W*C).
    a0 = jnp.transpose(x_nchw, (0, 2, 3, 1)).reshape(b, h * w * c_in).astype(jnp.float32)

    inputs = [a0]
    layer_meta = []
    hh, ww, cc = h, w, c_in
    for (wc, bc, gamma, beta) in params["conv"]:
        c_out = wc.shape[0]
        oh, ow = hh // 2, ww // 2
        m_out = oh * ow
        sel = _tap_selection(hh, ww)                                  # numpy constant
        # Fold im2col + weight into one dense GEMM operand (parameter-side, batch-independent).
        wexp = jnp.einsum("tms,oit->simo", sel,
                          wc.reshape(c_out, cc, 9)).reshape(hh * ww * cc, m_out * c_out)
        pool = _pool_matrix(m_out, c_out)                             # (m*c, c) constant
        inputs += [wexp,
                   jnp.tile(bc, m_out).reshape(1, -1).astype(jnp.float32),
                   jnp.tile(gamma, m_out).reshape(1, -1).astype(jnp.float32),
                   jnp.tile(beta, m_out).reshape(1, -1).astype(jnp.float32),
                   jnp.asarray(pool), jnp.asarray(pool.T)]
        layer_meta.append((m_out, c_out))
        hh, ww, cc = oh, ow, c_out

    # Heads: fold the PyTorch NCHW-flatten ordering into the fc weight rows; fuse mu/var.
    p_sp = hh * ww
    w_mu, b_mu = params["fc_mu"]
    w_var, b_var = params["fc_var"]
    latent = w_mu.shape[1]

    def _perm(wfc):   # rows c*p_sp + p  ->  p*cc + c  (NCHW-flatten -> our NHWC-flatten)
        return wfc.reshape(cc, p_sp, latent).transpose(1, 0, 2).reshape(p_sp * cc, latent)

    w_head = jnp.concatenate([_perm(w_mu), _perm(w_var)], axis=1)     # (feat, 2L)
    b_head = jnp.concatenate([b_mu, b_var]).reshape(1, -1).astype(jnp.float32)
    inputs += [w_head, b_head]

    out_shapes = (jax.ShapeDtypeStruct((b, latent), jnp.float32),
                  jax.ShapeDtypeStruct((b, latent), jnp.float32))

    vmem_spec = pl.BlockSpec(memory_space=pltpu.MemorySpace.VMEM)     # whole array in VMEM
    mu, log_var = pl.pallas_call(
        _make_encoder_kernel(b, layer_meta, latent),
        out_shape=out_shapes,
        in_specs=[vmem_spec] * len(inputs),
        out_specs=(vmem_spec, vmem_spec),
        compiler_params=pltpu.CompilerParams(
            vmem_limit_bytes=_vmem_limit(inputs, out_shapes)),
    )(*inputs)
    return mu, log_var


# ---------------------------------------------------------------------------
# Parameters (PyTorch layout) and pure-JAX f32 reference
# ---------------------------------------------------------------------------
def init_params(key, in_channels, latent_dims, hidden_dims):
    params = {"conv": []}
    c_in = in_channels
    for i, h in enumerate(hidden_dims):
        kw, kb = jax.random.split(jax.random.fold_in(key, i))
        w = jax.random.normal(kw, (h, c_in, 3, 3), jnp.float32) * 0.1   # (O, I, 3, 3)
        b = jax.random.normal(kb, (h,), jnp.float32) * 0.1
        gamma = jnp.ones((h,), jnp.float32)
        beta = jnp.zeros((h,), jnp.float32)
        params["conv"].append((w, b, gamma, beta))
        c_in = h
    feat = hidden_dims[-1] * 4
    km, kv = jax.random.split(jax.random.fold_in(key, 1000))
    params["fc_mu"] = (jax.random.normal(km, (feat, latent_dims), jnp.float32) * 0.1,
                       jax.random.normal(jax.random.fold_in(km, 1), (latent_dims,), jnp.float32) * 0.1)
    params["fc_var"] = (jax.random.normal(kv, (feat, latent_dims), jnp.float32) * 0.1,
                        jax.random.normal(jax.random.fold_in(kv, 1), (latent_dims,), jnp.float32) * 0.1)
    return params


def encoder_reference(params, x_nchw):
    h = x_nchw
    for (w, b, gamma, beta) in params["conv"]:
        y = lax.conv_general_dilated(
            h, w, window_strides=(2, 2), padding=((1, 1), (1, 1)),
            dimension_numbers=("NCHW", "OIHW", "NCHW"))
        y = y + b.reshape(1, -1, 1, 1)
        mean = jnp.mean(y, axis=(0, 2, 3), keepdims=True)
        var = jnp.mean((y - mean) ** 2, axis=(0, 2, 3), keepdims=True)
        y = (y - mean) * lax.rsqrt(var + BN_EPS) * gamma.reshape(1, -1, 1, 1) + beta.reshape(1, -1, 1, 1)
        h = jnp.where(y > 0, y, LRELU_SLOPE * y)
    flat = h.reshape(h.shape[0], -1)
    w_mu, b_mu = params["fc_mu"]
    w_var, b_var = params["fc_var"]
    return flat @ w_mu + b_mu, flat @ w_var + b_var


if __name__ == "__main__":
    # hidden_dims[-1]*4 implies the final spatial map is 2x2, i.e. spatial 16 with 3 stride-2 convs.
    B, C_IN, H, W = 2, 4, 16, 16
    HIDDEN_DIMS = [8, 16, 32]
    LATENT = 8

    key = jax.random.PRNGKey(0)
    kx, kp = jax.random.split(key)
    x = jax.random.normal(kx, (B, C_IN, H, W), jnp.float32)
    params = init_params(kp, C_IN, LATENT, HIDDEN_DIMS)

    mu, log_var = jax.jit(encoder_forward)(params, x)
    mu = jax.block_until_ready(mu)
    log_var = jax.block_until_ready(log_var)

    mu_ref, lv_ref = encoder_reference(params, x)
    assert mu.shape == (B, LATENT) and log_var.shape == (B, LATENT)
    # f32 end-to-end with VMEM-resident activations: tolerance tightened vs. the bf16 version
    # (observed error is typically far below this; slack covers MXU f32 pass differences).
    assert jnp.allclose(mu, mu_ref, atol=5e-2, rtol=5e-2)
    assert jnp.allclose(log_var, lv_ref, atol=5e-2, rtol=5e-2)

    print("KERNEL_OK")
</pallas_src>

<mosaic_0001>
module attributes {stable_mosaic.version = 11 : i64} {
  func.func @kernel(%arg0: memref<2x1024xf32, #tpu.memory_space<vmem>>, %arg1: memref<1024x512xf32, #tpu.memory_space<vmem>>, %arg2: memref<1x512xf32, #tpu.memory_space<vmem>>, %arg3: memref<1x512xf32, #tpu.memory_space<vmem>>, %arg4: memref<1x512xf32, #tpu.memory_space<vmem>>, %arg5: memref<512x8xf32, #tpu.memory_space<vmem>>, %arg6: memref<8x512xf32, #tpu.memory_space<vmem>>, %arg7: memref<512x256xf32, #tpu.memory_space<vmem>>, %arg8: memref<1x256xf32, #tpu.memory_space<vmem>>, %arg9: memref<1x256xf32, #tpu.memory_space<vmem>>, %arg10: memref<1x256xf32, #tpu.memory_space<vmem>>, %arg11: memref<256x16xf32, #tpu.memory_space<vmem>>, %arg12: memref<16x256xf32, #tpu.memory_space<vmem>>, %arg13: memref<256x128xf32, #tpu.memory_space<vmem>>, %arg14: memref<1x128xf32, #tpu.memory_space<vmem>>, %arg15: memref<1x128xf32, #tpu.memory_space<vmem>>, %arg16: memref<1x128xf32, #tpu.memory_space<vmem>>, %arg17: memref<128x32xf32, #tpu.memory_space<vmem>>, %arg18: memref<32x128xf32, #tpu.memory_space<vmem>>, %arg19: memref<128x16xf32, #tpu.memory_space<vmem>>, %arg20: memref<1x16xf32, #tpu.memory_space<vmem>>, %arg21: memref<2x8xf32, #tpu.memory_space<vmem>>, %arg22: memref<2x8xf32, #tpu.memory_space<vmem>>) attributes {dimension_semantics = [], scalar_prefetch = 0 : i64, scratch_operands = 0 : i64, tpu.core_type = #tpu.core_type<tc>} {
    %c0 = arith.constant 0 : index
    %c0_0 = arith.constant 0 : index
    %0 = vector.load %arg0[%c0, %c0_0] : memref<2x1024xf32, #tpu.memory_space<vmem>>, vector<2x1024xf32>
    %c0_1 = arith.constant 0 : index
    %c0_2 = arith.constant 0 : index
    %1 = vector.load %arg1[%c0_1, %c0_2] : memref<1024x512xf32, #tpu.memory_space<vmem>>, vector<1024x512xf32>
    %cst = arith.constant dense<0.000000e+00> : vector<2x512xf32>
    %2 = tpu.matmul %0, %1, %cst {dimension_numbers = #tpu.dot_dimension_numbers<[1], [0], [0], [1], [0, 0, 1, 1], [], []>} : vector<2x1024xf32>, vector<1024x512xf32>, vector<2x512xf32> -> vector<2x512xf32>
    %c0_3 = arith.constant 0 : index
    %c0_4 = arith.constant 0 : index
    %3 = vector.load %arg2[%c0_3, %c0_4] : memref<1x512xf32, #tpu.memory_space<vmem>>, vector<1x512xf32>
    %4 = vector.broadcast %3 : vector<1x512xf32> to vector<2x512xf32>
    %5 = arith.addf %2, %4 : vector<2x512xf32>
    %cst_5 = arith.constant dense<0.000000e+00> : vector<512xf32>
    %6 = vector.multi_reduction <add>, %5, %cst_5 [0] : vector<2x512xf32> to vector<512xf32>
    %7 = vector.shape_cast %6 : vector<512xf32> to vector<1x512xf32>
    %c0_6 = arith.constant 0 : index
    %c0_7 = arith.constant 0 : index
    %8 = vector.load %arg5[%c0_6, %c0_7] : memref<512x8xf32, #tpu.memory_space<vmem>>, vector<512x8xf32>
    %cst_8 = arith.constant dense<0.000000e+00> : vector<1x8xf32>
    %9 = tpu.matmul %7, %8, %cst_8 {dimension_numbers = #tpu.dot_dimension_numbers<[1], [0], [0], [1], [0, 0, 1, 1], [], []>} : vector<1x512xf32>, vector<512x8xf32>, vector<1x8xf32> -> vector<1x8xf32>
    %cst_9 = arith.constant 7.812500e-03 : f32
    %10 = vector.broadcast %cst_9 : f32 to vector<1x8xf32>
    %11 = arith.mulf %9, %10 : vector<1x8xf32>
    %c0_10 = arith.constant 0 : index
    %c0_11 = arith.constant 0 : index
    %12 = vector.load %arg6[%c0_10, %c0_11] : memref<8x512xf32, #tpu.memory_space<vmem>>, vector<8x512xf32>
    %cst_12 = arith.constant dense<0.000000e+00> : vector<1x512xf32>
    %13 = tpu.matmul %11, %12, %cst_12 {dimension_numbers = #tpu.dot_dimension_numbers<[1], [0], [0], [1], [0, 0, 1, 1], [], []>} : vector<1x8xf32>, vector<8x512xf32>, vector<1x512xf32> -> vector<1x512xf32>
    %14 = vector.broadcast %13 : vector<1x512xf32> to vector<2x512xf32>
    %15 = arith.subf %5, %14 : vector<2x512xf32>
    %16 = arith.mulf %15, %15 : vector<2x512xf32>
    %cst_13 = arith.constant dense<0.000000e+00> : vector<512xf32>
    %17 = vector.multi_reduction <add>, %16, %cst_13 [0] : vector<2x512xf32> to vector<512xf32>
    %18 = vector.shape_cast %17 : vector<512xf32> to vector<1x512xf32>
    %c0_14 = arith.constant 0 : index
    %c0_15 = arith.constant 0 : index
    %19 = vector.load %arg5[%c0_14, %c0_15] : memref<512x8xf32, #tpu.memory_space<vmem>>, vector<512x8xf32>
    %cst_16 = arith.constant dense<0.000000e+00> : vector<1x8xf32>
    %20 = tpu.matmul %18, %19, %cst_16 {dimension_numbers = #tpu.dot_dimension_numbers<[1], [0], [0], [1], [0, 0, 1, 1], [], []>} : vector<1x512xf32>, vector<512x8xf32>, vector<1x8xf32> -> vector<1x8xf32>
    %cst_17 = arith.constant 7.812500e-03 : f32
    %21 = vector.broadcast %cst_17 : f32 to vector<1x8xf32>
    %22 = arith.mulf %20, %21 : vector<1x8xf32>
    %cst_18 = arith.constant 9.99999974E-6 : f32
    %23 = vector.broadcast %cst_18 : f32 to vector<1x8xf32>
    %24 = arith.addf %22, %23 : vector<1x8xf32>
    %25 = math.rsqrt %24 : vector<1x8xf32>
    %c0_19 = arith.constant 0 : index
    %c0_20 = arith.constant 0 : index
    %26 = vector.load %arg6[%c0_19, %c0_20] : memref<8x512xf32, #tpu.memory_space<vmem>>, vector<8x512xf32>
    %cst_21 = arith.constant dense<0.000000e+00> : vector<1x512xf32>
    %27 = tpu.matmul %25, %26, %cst_21 {dimension_numbers = #tpu.dot_dimension_numbers<[1], [0], [0], [1], [0, 0, 1, 1], [], []>} : vector<1x8xf32>, vector<8x512xf32>, vector<1x512xf32> -> vector<1x512xf32>
    %28 = vector.broadcast %27 : vector<1x512xf32> to vector<2x512xf32>
    %29 = arith.mulf %15, %28 : vector<2x512xf32>
    %c0_22 = arith.constant 0 : index
    %c0_23 = arith.constant 0 : index
    %30 = vector.load %arg3[%c0_22, %c0_23] : memref<1x512xf32, #tpu.memory_space<vmem>>, vector<1x512xf32>
    %31 = vector.broadcast %30 : vector<1x512xf32> to vector<2x512xf32>
    %32 = arith.mulf %29, %31 : vector<2x512xf32>
    %c0_24 = arith.constant 0 : index
    %c0_25 = arith.constant 0 : index
    %33 = vector.load %arg4[%c0_24, %c0_25] : memref<1x512xf32, #tpu.memory_space<vmem>>, vector<1x512xf32>
    %34 = vector.broadcast %33 : vector<1x512xf32> to vector<2x512xf32>
    %35 = arith.addf %32, %34 : vector<2x512xf32>
    %cst_26 = arith.constant 0.000000e+00 : f32
    %36 = vector.broadcast %cst_26 : f32 to vector<2x512xf32>
    %37 = arith.cmpf ogt, %35, %36 : vector<2x512xf32>
    %cst_27 = arith.constant 0.00999999977 : f32
    %38 = vector.broadcast %cst_27 : f32 to vector<2x512xf32>
    %39 = arith.mulf %38, %35 : vector<2x512xf32>
    %40 = arith.select %37, %35, %39 : vector<2x512xi1>, vector<2x512xf32>
    %c0_28 = arith.constant 0 : index
    %c0_29 = arith.constant 0 : index
    %41 = vector.load %arg7[%c0_28, %c0_29] : memref<512x256xf32, #tpu.memory_space<vmem>>, vector<512x256xf32>
    %cst_30 = arith.constant dense<0.000000e+00> : vector<2x256xf32>
    %42 = tpu.matmul %40, %41, %cst_30 {dimension_numbers = #tpu.dot_dimension_numbers<[1], [0], [0], [1], [0, 0, 1, 1], [], []>} : vector<2x512xf32>, vector<512x256xf32>, vector<2x256xf32> -> vector<2x256xf32>
    %c0_31 = arith.constant 0 : index
    %c0_32 = arith.constant 0 : index
    %43 = vector.load %arg8[%c0_31, %c0_32] : memref<1x256xf32, #tpu.memory_space<vmem>>, vector<1x256xf32>
    %44 = vector.broadcast %43 : vector<1x256xf32> to vector<2x256xf32>
    %45 = arith.addf %42, %44 : vector<2x256xf32>
    %cst_33 = arith.constant dense<0.000000e+00> : vector<256xf32>
    %46 = vector.multi_reduction <add>, %45, %cst_33 [0] : vector<2x256xf32> to vector<256xf32>
    %47 = vector.shape_cast %46 : vector<256xf32> to vector<1x256xf32>
    %c0_34 = arith.constant 0 : index
    %c0_35 = arith.constant 0 : index
    %48 = vector.load %arg11[%c0_34, %c0_35] : memref<256x16xf32, #tpu.memory_space<vmem>>, vector<256x16xf32>
    %cst_36 = arith.constant dense<0.000000e+00> : vector<1x16xf32>
    %49 = tpu.matmul %47, %48, %cst_36 {dimension_numbers = #tpu.dot_dimension_numbers<[1], [0], [0], [1], [0, 0, 1, 1], [], []>} : vector<1x256xf32>, vector<256x16xf32>, vector<1x16xf32> -> vector<1x16xf32>
    %cst_37 = arith.constant 3.125000e-02 : f32
    %50 = vector.broadcast %cst_37 : f32 to vector<1x16xf32>
    %51 = arith.mulf %49, %50 : vector<1x16xf32>
    %c0_38 = arith.constant 0 : index
    %c0_39 = arith.constant 0 : index
    %52 = vector.load %arg12[%c0_38, %c0_39] : memref<16x256xf32, #tpu.memory_space<vmem>>, vector<16x256xf32>
    %cst_40 = arith.constant dense<0.000000e+00> : vector<1x256xf32>
    %53 = tpu.matmul %51, %52, %cst_40 {dimension_numbers = #tpu.dot_dimension_numbers<[1], [0], [0], [1], [0, 0, 1, 1], [], []>} : vector<1x16xf32>, vector<16x256xf32>, vector<1x256xf32> -> vector<1x256xf32>
    %54 = vector.broadcast %53 : vector<1x256xf32> to vector<2x256xf32>
    %55 = arith.subf %45, %54 : vector<2x256xf32>
    %56 = arith.mulf %55, %55 : vector<2x256xf32>
    %cst_41 = arith.constant dense<0.000000e+00> : vector<256xf32>
    %57 = vector.multi_reduction <add>, %56, %cst_41 [0] : vector<2x256xf32> to vector<256xf32>
    %58 = vector.shape_cast %57 : vector<256xf32> to vector<1x256xf32>
    %c0_42 = arith.constant 0 : index
    %c0_43 = arith.constant 0 : index
    %59 = vector.load %arg11[%c0_42, %c0_43] : memref<256x16xf32, #tpu.memory_space<vmem>>, vector<256x16xf32>
    %cst_44 = arith.constant dense<0.000000e+00> : vector<1x16xf32>
    %60 = tpu.matmul %58, %59, %cst_44 {dimension_numbers = #tpu.dot_dimension_numbers<[1], [0], [0], [1], [0, 0, 1, 1], [], []>} : vector<1x256xf32>, vector<256x16xf32>, vector<1x16xf32> -> vector<1x16xf32>
    %cst_45 = arith.constant 3.125000e-02 : f32
    %61 = vector.broadcast %cst_45 : f32 to vector<1x16xf32>
    %62 = arith.mulf %60, %61 : vector<1x16xf32>
    %cst_46 = arith.constant 9.99999974E-6 : f32
    %63 = vector.broadcast %cst_46 : f32 to vector<1x16xf32>
    %64 = arith.addf %62, %63 : vector<1x16xf32>
    %65 = math.rsqrt %64 : vector<1x16xf32>
    %c0_47 = arith.constant 0 : index
    %c0_48 = arith.constant 0 : index
    %66 = vector.load %arg12[%c0_47, %c0_48] : memref<16x256xf32, #tpu.memory_space<vmem>>, vector<16x256xf32>
    %cst_49 = arith.constant dense<0.000000e+00> : vector<1x256xf32>
    %67 = tpu.matmul %65, %66, %cst_49 {dimension_numbers = #tpu.dot_dimension_numbers<[1], [0], [0], [1], [0, 0, 1, 1], [], []>} : vector<1x16xf32>, vector<16x256xf32>, vector<1x256xf32> -> vector<1x256xf32>
    %68 = vector.broadcast %67 : vector<1x256xf32> to vector<2x256xf32>
    %69 = arith.mulf %55, %68 : vector<2x256xf32>
    %c0_50 = arith.constant 0 : index
    %c0_51 = arith.constant 0 : index
    %70 = vector.load %arg9[%c0_50, %c0_51] : memref<1x256xf32, #tpu.memory_space<vmem>>, vector<1x256xf32>
    %71 = vector.broadcast %70 : vector<1x256xf32> to vector<2x256xf32>
    %72 = arith.mulf %69, %71 : vector<2x256xf32>
    %c0_52 = arith.constant 0 : index
    %c0_53 = arith.constant 0 : index
    %73 = vector.load %arg10[%c0_52, %c0_53] : memref<1x256xf32, #tpu.memory_space<vmem>>, vector<1x256xf32>
    %74 = vector.broadcast %73 : vector<1x256xf32> to vector<2x256xf32>
    %75 = arith.addf %72, %74 : vector<2x256xf32>
    %cst_54 = arith.constant 0.000000e+00 : f32
    %76 = vector.broadcast %cst_54 : f32 to vector<2x256xf32>
    %77 = arith.cmpf ogt, %75, %76 : vector<2x256xf32>
    %cst_55 = arith.constant 0.00999999977 : f32
    %78 = vector.broadcast %cst_55 : f32 to vector<2x256xf32>
    %79 = arith.mulf %78, %75 : vector<2x256xf32>
    %80 = arith.select %77, %75, %79 : vector<2x256xi1>, vector<2x256xf32>
    %c0_56 = arith.constant 0 : index
    %c0_57 = arith.constant 0 : index
    %81 = vector.load %arg13[%c0_56, %c0_57] : memref<256x128xf32, #tpu.memory_space<vmem>>, vector<256x128xf32>
    %cst_58 = arith.constant dense<0.000000e+00> : vector<2x128xf32>
    %82 = tpu.matmul %80, %81, %cst_58 {dimension_numbers = #tpu.dot_dimension_numbers<[1], [0], [0], [1], [0, 0, 1, 1], [], []>} : vector<2x256xf32>, vector<256x128xf32>, vector<2x128xf32> -> vector<2x128xf32>
    %c0_59 = arith.constant 0 : index
    %c0_60 = arith.constant 0 : index
    %83 = vector.load %arg14[%c0_59, %c0_60] : memref<1x128xf32, #tpu.memory_space<vmem>>, vector<1x128xf32>
    %84 = vector.broadcast %83 : vector<1x128xf32> to vector<2x128xf32>
    %85 = arith.addf %82, %84 : vector<2x128xf32>
    %cst_61 = arith.constant dense<0.000000e+00> : vector<128xf32>
    %86 = vector.multi_reduction <add>, %85, %cst_61 [0] : vector<2x128xf32> to vector<128xf32>
    %87 = vector.shape_cast %86 : vector<128xf32> to vector<1x128xf32>
    %c0_62 = arith.constant 0 : index
    %c0_63 = arith.constant 0 : index
    %88 = vector.load %arg17[%c0_62, %c0_63] : memref<128x32xf32, #tpu.memory_space<vmem>>, vector<128x32xf32>
    %cst_64 = arith.constant dense<0.000000e+00> : vector<1x32xf32>
    %89 = tpu.matmul %87, %88, %cst_64 {dimension_numbers = #tpu.dot_dimension_numbers<[1], [0], [0], [1], [0, 0, 1, 1], [], []>} : vector<1x128xf32>, vector<128x32xf32>, vector<1x32xf32> -> vector<1x32xf32>
    %cst_65 = arith.constant 1.250000e-01 : f32
    %90 = vector.broadcast %cst_65 : f32 to vector<1x32xf32>
    %91 = arith.mulf %89, %90 : vector<1x32xf32>
    %c0_66 = arith.constant 0 : index
    %c0_67 = arith.constant 0 : index
    %92 = vector.load %arg18[%c0_66, %c0_67] : memref<32x128xf32, #tpu.memory_space<vmem>>, vector<32x128xf32>
    %cst_68 = arith.constant dense<0.000000e+00> : vector<1x128xf32>
    %93 = tpu.matmul %91, %92, %cst_68 {dimension_numbers = #tpu.dot_dimension_numbers<[1], [0], [0], [1], [0, 0, 1, 1], [], []>} : vector<1x32xf32>, vector<32x128xf32>, vector<1x128xf32> -> vector<1x128xf32>
    %94 = vector.broadcast %93 : vector<1x128xf32> to vector<2x128xf32>
    %95 = arith.subf %85, %94 : vector<2x128xf32>
    %96 = arith.mulf %95, %95 : vector<2x128xf32>
    %cst_69 = arith.constant dense<0.000000e+00> : vector<128xf32>
    %97 = vector.multi_reduction <add>, %96, %cst_69 [0] : vector<2x128xf32> to vector<128xf32>
    %98 = vector.shape_cast %97 : vector<128xf32> to vector<1x128xf32>
    %c0_70 = arith.constant 0 : index
    %c0_71 = arith.constant 0 : index
    %99 = vector.load %arg17[%c0_70, %c0_71] : memref<128x32xf32, #tpu.memory_space<vmem>>, vector<128x32xf32>
    %cst_72 = arith.constant dense<0.000000e+00> : vector<1x32xf32>
    %100 = tpu.matmul %98, %99, %cst_72 {dimension_numbers = #tpu.dot_dimension_numbers<[1], [0], [0], [1], [0, 0, 1, 1], [], []>} : vector<1x128xf32>, vector<128x32xf32>, vector<1x32xf32> -> vector<1x32xf32>
    %cst_73 = arith.constant 1.250000e-01 : f32
    %101 = vector.broadcast %cst_73 : f32 to vector<1x32xf32>
    %102 = arith.mulf %100, %101 : vector<1x32xf32>
    %cst_74 = arith.constant 9.99999974E-6 : f32
    %103 = vector.broadcast %cst_74 : f32 to vector<1x32xf32>
    %104 = arith.addf %102, %103 : vector<1x32xf32>
    %105 = math.rsqrt %104 : vector<1x32xf32>
    %c0_75 = arith.constant 0 : index
    %c0_76 = arith.constant 0 : index
    %106 = vector.load %arg18[%c0_75, %c0_76] : memref<32x128xf32, #tpu.memory_space<vmem>>, vector<32x128xf32>
    %cst_77 = arith.constant dense<0.000000e+00> : vector<1x128xf32>
    %107 = tpu.matmul %105, %106, %cst_77 {dimension_numbers = #tpu.dot_dimension_numbers<[1], [0], [0], [1], [0, 0, 1, 1], [], []>} : vector<1x32xf32>, vector<32x128xf32>, vector<1x128xf32> -> vector<1x128xf32>
    %108 = vector.broadcast %107 : vector<1x128xf32> to vector<2x128xf32>
    %109 = arith.mulf %95, %108 : vector<2x128xf32>
    %c0_78 = arith.constant 0 : index
    %c0_79 = arith.constant 0 : index
    %110 = vector.load %arg15[%c0_78, %c0_79] : memref<1x128xf32, #tpu.memory_space<vmem>>, vector<1x128xf32>
    %111 = vector.broadcast %110 : vector<1x128xf32> to vector<2x128xf32>
    %112 = arith.mulf %109, %111 : vector<2x128xf32>
    %c0_80 = arith.constant 0 : index
    %c0_81 = arith.constant 0 : index
    %113 = vector.load %arg16[%c0_80, %c0_81] : memref<1x128xf32, #tpu.memory_space<vmem>>, vector<1x128xf32>
    %114 = vector.broadcast %113 : vector<1x128xf32> to vector<2x128xf32>
    %115 = arith.addf %112, %114 : vector<2x128xf32>
    %cst_82 = arith.constant 0.000000e+00 : f32
    %116 = vector.broadcast %cst_82 : f32 to vector<2x128xf32>
    %117 = arith.cmpf ogt, %115, %116 : vector<2x128xf32>
    %cst_83 = arith.constant 0.00999999977 : f32
    %118 = vector.broadcast %cst_83 : f32 to vector<2x128xf32>
    %119 = arith.mulf %118, %115 : vector<2x128xf32>
    %120 = arith.select %117, %115, %119 : vector<2x128xi1>, vector<2x128xf32>
    %c0_84 = arith.constant 0 : index
    %c0_85 = arith.constant 0 : index
    %121 = vector.load %arg19[%c0_84, %c0_85] : memref<128x16xf32, #tpu.memory_space<vmem>>, vector<128x16xf32>
    %cst_86 = arith.constant dense<0.000000e+00> : vector<2x16xf32>
    %122 = tpu.matmul %120, %121, %cst_86 {dimension_numbers = #tpu.dot_dimension_numbers<[1], [0], [0], [1], [0, 0, 1, 1], [], []>} : vector<2x128xf32>, vector<128x16xf32>, vector<2x16xf32> -> vector<2x16xf32>
    %c0_87 = arith.constant 0 : index
    %c0_88 = arith.constant 0 : index
    %123 = vector.load %arg20[%c0_87, %c0_88] : memref<1x16xf32, #tpu.memory_space<vmem>>, vector<1x16xf32>
    %124 = vector.broadcast %123 : vector<1x16xf32> to vector<2x16xf32>
    %125 = arith.addf %122, %124 : vector<2x16xf32>
    %126 = vector.extract_strided_slice %125 {offsets = [0, 0], sizes = [2, 8], strides = [1, 1]} : vector<2x16xf32> to vector<2x8xf32>
    %c0_89 = arith.constant 0 : index
    %c0_90 = arith.constant 0 : index
    %127 = vector.load %arg21[%c0_89, %c0_90] : memref<2x8xf32, #tpu.memory_space<vmem>>, vector<2x8xf32>
    tpu.vector_store %arg21[%c0_89, %c0_90], %126 {strides = array<i32>} : memref<2x8xf32, #tpu.memory_space<vmem>>, vector<2x8xf32>,
    %128 = vector.extract_strided_slice %125 {offsets = [0, 8], sizes = [2, 8], strides = [1, 1]} : vector<2x16xf32> to vector<2x8xf32>
    %c0_91 = arith.constant 0 : index
    %c0_92 = arith.constant 0 : index
    %129 = vector.load %arg22[%c0_91, %c0_92] : memref<2x8xf32, #tpu.memory_space<vmem>>, vector<2x8xf32>
    tpu.vector_store %arg22[%c0_91, %c0_92], %128 {strides = array<i32>} : memref<2x8xf32, #tpu.memory_space<vmem>>, vector<2x8xf32>,
    return
  }
}

</mosaic_0001>

<llo_original>
// kernel: tile.48
$region0: #{tile.48}
  #allocation0 [shape = 's32[1]{0}', space=sflag, size = 0x4, scoped, tag = 'scoped memory for tile.48']
  %s0 = inlined_call_operand.vmem [shape: f32[8], index: 0, kind: input, shape index: {}]
  %s1 = inlined_call_operand.vmem [shape: f32[64,8], index: 1, kind: output, shape index: {}]
  // Predicated region
  $region2: #{tile.48} parent=0 // pred_check
    _
  $region3: #{tile.48} parent=0 // pred_check_branch
    %3 = sbr.rel (0) target = $region5
  $region4: #{tile.48} parent=0 // pred_region
    _
  $region5: #{tile.48} parent=0 // pred_fallthru
    _
  %v4 = vld [vmem:[%s0] ss:$0 sm:$0xff]
  %5 = vst [vmem:[%s1] sm:$0xff] %v4
  %s6 = scalar_lea.vmem %s1, 8
  %7 = vst [vmem:[%s6] sm:$0xff] %v4
  %s8 = scalar_lea.vmem %s1, 16
  %9 = vst [vmem:[%s8] sm:$0xff] %v4
  %s10 = scalar_lea.vmem %s1, 24
  %11 = vst [vmem:[%s10] sm:$0xff] %v4
  %s12 = scalar_lea.vmem %s1, 32
  %13 = vst [vmem:[%s12] sm:$0xff] %v4
  %s14 = scalar_lea.vmem %s1, 40
  %15 = vst [vmem:[%s14] sm:$0xff] %v4
  %s16 = scalar_lea.vmem %s1, 48
  %17 = vst [vmem:[%s16] sm:$0xff] %v4
  %s18 = scalar_lea.vmem %s1, 56
  %19 = vst [vmem:[%s18] sm:$0xff] %v4

// kernel: tile.49
$region0: #{tile.49}
  %s0 = inlined_call_operand.vmem [shape: f32[64,8], index: 0, kind: input, shape index: {}]
  %s1 = inlined_call_operand.vmem [shape: f32[1,512], index: 1, kind: output, shape index: {}]
  $region1: #{tile.49} parent=0
    #allocation0 [shape = 'u8[16384]{0}', space=vmem, size = 0x4000, scoped, tag = 'scoped mem for output reshape']
    %s2 = smov 3
    %v3 = vld [vmem:[%s0] ss:$16 sm:%s2]
    %s4 = smov 12
    %v5 = vld [vmem:[%s0] ss:$16 sm:%s4]
    %vm6 = vcmask 1043458
    %v7 = vsel %vm6, %v5, %v3
    %vm8 = vcmask 64512
    %9 = vst.msk [vmem:[#allocation0] ss:$8 sm:$0xf] %vm8, %v7
    %s10 = scalar_lea.vmem %s0, 15
    %s11 = smov 3
    %v12 = vld [vmem:[%s10] ss:$16 sm:%s11]
    %s13 = scalar_lea.vmem %s0, 15
    %s14 = smov 12
    %v15 = vld [vmem:[%s13] ss:$16 sm:%s14]
    %vm16 = vcmask 1043458
    %v17 = vsel %vm16, %v15, %v12
    %18 = vrot.lane.b32.xlu0 %v17, 120
    %v19 = vpop.permute.xlu0 %18
    %vm20 = vcmask 1048512
    %21 = vst.msk [vmem:[#allocation0] ss:$8 sm:$0xf] %vm20, %v19
    %s22 = scalar_lea.vmem %s0, 14
    %s23 = smov 3
    %v24 = vld [vmem:[%s22] ss:$16 sm:%s23]
    %s25 = scalar_lea.vmem %s0, 14
    %s26 = smov 12
    %v27 = vld [vmem:[%s25] ss:$16 sm:%s26]
    %vm28 = vcmask 1043458
    %v29 = vsel %vm28, %v27, %v24
    %30 = vrot.lane.b32.xlu0 %v29, 112
    %v31 = vpop.permute.xlu0 %30
    %vm32 = vcmask 982912
    %33 = vst.msk [vmem:[#allocation0] ss:$8 sm:$0xf] %vm32, %v31
    %s34 = scalar_lea.vmem %s0, 13
    %s35 = smov 3
    %v36 = vld [vmem:[%s34] ss:$16 sm:%s35]
    %s37 = scalar_lea.vmem %s0, 13
    %s38 = smov 12
    %v39 = vld [vmem:[%s37] ss:$16 sm:%s38]
    %vm40 = vcmask 1043458
    %v41 = vsel %vm40, %v39, %v36
    %42 = vrot.lane.b32.xlu0 %v41, 104
    %v43 = vpop.permute.xlu0 %42
    %vm44 = vcmask 917312
    %45 = vst.msk [vmem:[#allocation0] ss:$8 sm:$0xf] %vm44, %v43
    %s46 = scalar_lea.vmem %s0, 12
    %s47 = smov 3
    %v48 = vld [vmem:[%s46] ss:$16 sm:%s47]
    %s49 = scalar_lea.vmem %s0, 12
    %s50 = smov 12
    %v51 = vld [vmem:[%s49] ss:$16 sm:%s50]
    %vm52 = vcmask 1043458
    %v53 = vsel %vm52, %v51, %v48
    %54 = vrot.lane.b32.xlu0 %v53, 96
    %v55 = vpop.permute.xlu0 %54
    %vm56 = vcmask 851712
    %57 = vst.msk [vmem:[#allocation0] ss:$8 sm:$0xf] %vm56, %v55
    %s58 = scalar_lea.vmem %s0, 11
    %s59 = smov 3
    %v60 = vld [vmem:[%s58] ss:$16 sm:%s59]
    %s61 = scalar_lea.vmem %s0, 11
    %s62 = smov 12
    %v63 = vld [vmem:[%s61] ss:$16 sm:%s62]
    %vm64 = vcmask 1043458
    %v65 = vsel %vm64, %v63, %v60
    %66 = vrot.lane.b32.xlu0 %v65, 88
    %v67 = vpop.permute.xlu0 %66
    %vm68 = vcmask 786112
    %69 = vst.msk [vmem:[#allocation0] ss:$8 sm:$0xf] %vm68, %v67
    %s70 = scalar_lea.vmem %s0, 10
    %s71 = smov 3
    %v72 = vld [vmem:[%s70] ss:$16 sm:%s71]
    %s73 = scalar_lea.vmem %s0, 10
    %s74 = smov 12
    %v75 = vld [vmem:[%s73] ss:$16 sm:%s74]
    %vm76 = vcmask 1043458
    %v77 = vsel %vm76, %v75, %v72
    %78 = vrot.lane.b32.xlu0 %v77, 80
    %v79 = vpop.permute.xlu0 %78
    %vm80 = vcmask 720512
    %81 = vst.msk [vmem:[#allocation0] ss:$8 sm:$0xf] %vm80, %v79
    %s82 = scalar_lea.vmem %s0, 9
    %s83 = smov 3
    %v84 = vld [vmem:[%s82] ss:$16 sm:%s83]
    %s85 = scalar_lea.vmem %s0, 9
    %s86 = smov 12
    %v87 = vld [vmem:[%s85] ss:$16 sm:%s86]
    %vm88 = vcmask 1043458
    %v89 = vsel %vm88, %v87, %v84
    %90 = vrot.lane.b32.xlu0 %v89, 72
    %v91 = vpop.permute.xlu0 %90
    %vm92 = vcmask 654912
    %93 = vst.msk [vmem:[#allocation0] ss:$8 sm:$0xf] %vm92, %v91
    %s94 = scalar_lea.vmem %s0, 8
    %s95 = smov 3
    %v96 = vld [vmem:[%s94] ss:$16 sm:%s95]
    %s97 = scalar_lea.vmem %s0, 8
    %s98 = smov 12
    %v99 = vld [vmem:[%s97] ss:$16 sm:%s98]
    %vm100 = vcmask 1043458
    %v101 = vsel %vm100, %v99, %v96
    %102 = vrot.lane.b32.xlu0 %v101, 64
    %v103 = vpop.permute.xlu0 %102
    %vm104 = vcmask 589312
    %105 = vst.msk [vmem:[#allocation0] ss:$8 sm:$0xf] %vm104, %v103
    %s106 = scalar_lea.vmem %s0, 7
    %s107 = smov 3
    %v108 = vld [vmem:[%s106] ss:$16 sm:%s107]
    %s109 = scalar_lea.vmem %s0, 7
    %s110 = smov 12
    %v111 = vld [vmem:[%s109] ss:$16 sm:%s110]
    %vm112 = vcmask 1043458
    %v113 = vsel %vm112, %v111, %v108
    %114 = vrot.lane.b32.xlu0 %v113, 56
    %v115 = vpop.permute.xlu0 %114
    %vm116 = vcmask 523712
    %117 = vst.msk [vmem:[#allocation0] ss:$8 sm:$0xf] %vm116, %v115
    %s118 = scalar_lea.vmem %s0, 6
    %s119 = smov 3
    %v120 = vld [vmem:[%s118] ss:$16 sm:%s119]
    %s121 = scalar_lea.vmem %s0, 6
    %s122 = smov 12
    %v123 = vld [vmem:[%s121] ss:$16 sm:%s122]
    %vm124 = vcmask 1043458
    %v125 = vsel %vm124, %v123, %v120
    %126 = vrot.lane.b32.xlu0 %v125, 48
    %v127 = vpop.permute.xlu0 %126
    %vm128 = vcmask 458112
    %129 = vst.msk [vmem:[#allocation0] ss:$8 sm:$0xf] %vm128, %v127
    %s130 = scalar_lea.vmem %s0, 5
    %s131 = smov 3
    %v132 = vld [vmem:[%s130] ss:$16 sm:%s131]
    %s133 = scalar_lea.vmem %s0, 5
    %s134 = smov 12
    %v135 = vld [vmem:[%s133] ss:$16 sm:%s134]
    %vm136 = vcmask 1043458
    %v137 = vsel %vm136, %v135, %v132
    %138 = vrot.lane.b32.xlu0 %v137, 40
    %v139 = vpop.permute.xlu0 %138
    %vm140 = vcmask 392512
    %141 = vst.msk [vmem:[#allocation0] ss:$8 sm:$0xf] %vm140, %v139
    %s142 = scalar_lea.vmem %s0, 4
    %s143 = smov 3
    %v144 = vld [vmem:[%s142] ss:$16 sm:%s143]
    %s145 = scalar_lea.vmem %s0, 4
    %s146 = smov 12
    %v147 = vld [vmem:[%s145] ss:$16 sm:%s146]
    %vm148 = vcmask 1043458
    %v149 = vsel %vm148, %v147, %v144
    %150 = vrot.lane.b32.xlu0 %v149, 32
    %v151 = vpop.permute.xlu0 %150
    %vm152 = vcmask 326912
    %153 = vst.msk [vmem:[#allocation0] ss:$8 sm:$0xf] %vm152, %v151
    %s154 = scalar_lea.vmem %s0, 3
    %s155 = smov 3
    %v156 = vld [vmem:[%s154] ss:$16 sm:%s155]
    %s157 = scalar_lea.vmem %s0, 3
    %s158 = smov 12
    %v159 = vld [vmem:[%s157] ss:$16 sm:%s158]
    %vm160 = vcmask 1043458
    %v161 = vsel %vm160, %v159, %v156
    %162 = vrot.lane.b32.xlu0 %v161, 24
    %v163 = vpop.permute.xlu0 %162
    %vm164 = vcmask 261312
    %165 = vst.msk [vmem:[#allocation0] ss:$8 sm:$0xf] %vm164, %v163
    %s166 = scalar_lea.vmem %s0, 2
    %s167 = smov 3
    %v168 = vld [vmem:[%s166] ss:$16 sm:%s167]
    %s169 = scalar_lea.vmem %s0, 2
    %s170 = smov 12
    %v171 = vld [vmem:[%s169] ss:$16 sm:%s170]
    %vm172 = vcmask 1043458
    %v173 = vsel %vm172, %v171, %v168
    %174 = vrot.lane.b32.xlu0 %v173, 16
    %v175 = vpop.permute.xlu0 %174
    %vm176 = vcmask 195712
    %177 = vst.msk [vmem:[#allocation0] ss:$8 sm:$0xf] %vm176, %v175
    %s178 = scalar_lea.vmem %s0, 1
    %s179 = smov 3
    %v180 = vld [vmem:[%s178] ss:$16 sm:%s179]
    %s181 = scalar_lea.vmem %s0, 1
    %s182 = smov 12
    %v183 = vld [vmem:[%s181] ss:$16 sm:%s182]
    %vm184 = vcmask 1043458
    %v185 = vsel %vm184, %v183, %v180
    %186 = vrot.lane.b32.xlu0 %v185, 8
    %v187 = vpop.permute.xlu0 %186
    %vm188 = vcmask 130112
    %189 = vst.msk [vmem:[#allocation0] ss:$8 sm:$0xf] %vm188, %v187
    %s191 = ssub.s32 2, 1
    %v192 = vld [vmem:[#allocation0] sm:%s191]
    %s194 = ssub.s32 2, 1
    %195 = vst [vmem:[%s1] sm:%s194] %v192
    %s196 = scalar_lea.vmem [#allocation0], 8
    %v197 = vld [vmem:[%s196] sm:%s191]
    %s199 = ssub.s32 2, 1
    %s200 = scalar_lea.vmem %s1, 1
    %201 = vst [vmem:[%s200] sm:%s199] %v197
    %s202 = scalar_lea.vmem [#allocation0], 16
    %v203 = vld [vmem:[%s202] sm:%s191]
    %s205 = ssub.s32 2, 1
    %s206 = scalar_lea.vmem %s1, 2
    %207 = vst [vmem:[%s206] sm:%s205] %v203
    %s208 = scalar_lea.vmem [#allocation0], 24
    %v209 = vld [vmem:[%s208] sm:%s191]
    %s211 = ssub.s32 2, 1
    %s212 = scalar_lea.vmem %s1, 3
    %213 = vst [vmem:[%s212] sm:%s211] %v209

// kernel: tile.63
$region0: #{tile.63}
  #allocation0 [shape = 's32[1]{0}', space=sflag, size = 0x4, scoped, tag = 'scoped memory for tile.63']
  %s0 = inlined_call_operand.vmem [shape: f32[16], index: 0, kind: input, shape index: {}]
  %s1 = inlined_call_operand.vmem [shape: f32[16,16], index: 1, kind: output, shape index: {}]
  // Predicated region
  $region2: #{tile.63} parent=0 // pred_check
    _
  $region3: #{tile.63} parent=0 // pred_check_branch
    %3 = sbr.rel (0) target = $region5
  $region4: #{tile.63} parent=0 // pred_region
    _
  $region5: #{tile.63} parent=0 // pred_fallthru
    _
  %v4 = vld [vmem:[%s0] ss:$0 sm:$0xff]
  %5 = vst [vmem:[%s1] sm:$0xff] %v4
  %s6 = scalar_lea.vmem %s1, 8
  %7 = vst [vmem:[%s6] sm:$0xff] %v4

// kernel: tile.64
$region0: #{tile.64}
  %s0 = inlined_call_operand.vmem [shape: f32[16,16], index: 0, kind: input, shape index: {}]
  %s1 = inlined_call_operand.vmem [shape: f32[1,256], index: 1, kind: output, shape index: {}]
  $region1: #{tile.64} parent=0
    #allocation0 [shape = 'u8[8192]{0}', space=vmem, size = 0x2000, scoped, tag = 'scoped mem for output reshape']
    %s2 = smov 3
    %v3 = vld [vmem:[%s0] ss:$8 sm:%s2]
    %vm4 = vcmask 130048
    %5 = vst.msk [vmem:[#allocation0] ss:$8 sm:$0x3] %vm4, %v3
    %s6 = scalar_lea.vmem %s0, 7
    %s7 = smov 3
    %v8 = vld [vmem:[%s6] ss:$8 sm:%s7]
    %9 = vrot.lane.b32.xlu0 %v8, 112
    %v10 = vpop.permute.xlu0 %9
    %vm11 = vcmask 1048448
    %12 = vst.msk [vmem:[#allocation0] ss:$8 sm:$0x3] %vm11, %v10
    %s13 = scalar_lea.vmem %s0, 6
    %s14 = smov 3
    %v15 = vld [vmem:[%s13] ss:$8 sm:%s14]
    %16 = vrot.lane.b32.xlu0 %v15, 96
    %v17 = vpop.permute.xlu0 %16
    %vm18 = vcmask 917248
    %19 = vst.msk [vmem:[#allocation0] ss:$8 sm:$0x3] %vm18, %v17
    %s20 = scalar_lea.vmem %s0, 5
    %s21 = smov 3
    %v22 = vld [vmem:[%s20] ss:$8 sm:%s21]
    %23 = vrot.lane.b32.xlu0 %v22, 80
    %v24 = vpop.permute.xlu0 %23
    %vm25 = vcmask 786048
    %26 = vst.msk [vmem:[#allocation0] ss:$8 sm:$0x3] %vm25, %v24
    %s27 = scalar_lea.vmem %s0, 4
    %s28 = smov 3
    %v29 = vld [vmem:[%s27] ss:$8 sm:%s28]
    %30 = vrot.lane.b32.xlu0 %v29, 64
    %v31 = vpop.permute.xlu0 %30
    %vm32 = vcmask 654848
    %33 = vst.msk [vmem:[#allocation0] ss:$8 sm:$0x3] %vm32, %v31
    %s34 = scalar_lea.vmem %s0, 3
    %s35 = smov 3
    %v36 = vld [vmem:[%s34] ss:$8 sm:%s35]
    %37 = vrot.lane.b32.xlu0 %v36, 48
    %v38 = vpop.permute.xlu0 %37
    %vm39 = vcmask 523648
    %40 = vst.msk [vmem:[#allocation0] ss:$8 sm:$0x3] %vm39, %v38
    %s41 = scalar_lea.vmem %s0, 2
    %s42 = smov 3
    %v43 = vld [vmem:[%s41] ss:$8 sm:%s42]
    %44 = vrot.lane.b32.xlu0 %v43, 32
    %v45 = vpop.permute.xlu0 %44
    %vm46 = vcmask 392448
    %47 = vst.msk [vmem:[#allocation0] ss:$8 sm:$0x3] %vm46, %v45
    %s48 = scalar_lea.vmem %s0, 1
    %s49 = smov 3
    %v50 = vld [vmem:[%s48] ss:$8 sm:%s49]
    %51 = vrot.lane.b32.xlu0 %v50, 16
    %v52 = vpop.permute.xlu0 %51
    %vm53 = vcmask 261248
    %54 = vst.msk [vmem:[#allocation0] ss:$8 sm:$0x3] %vm53, %v52
    %s56 = ssub.s32 2, 1
    %v57 = vld [vmem:[#allocation0] sm:%s56]
    %s59 = ssub.s32 2, 1
    %60 = vst [vmem:[%s1] sm:%s59] %v57
    %s61 = scalar_lea.vmem [#allocation0], 8
    %v62 = vld [vmem:[%s61] sm:%s56]
    %s64 = ssub.s32 2, 1
    %s65 = scalar_lea.vmem %s1, 1
    %66 = vst [vmem:[%s65] sm:%s64] %v62

// kernel: tile.78
$region0: #{tile.78}
  #allocation0 [shape = 's32[1]{0}', space=sflag, size = 0x4, scoped, tag = 'scoped memory for tile.78']
  %s0 = inlined_call_operand.vmem [shape: f32[32], index: 0, kind: input, shape index: {}]
  %s1 = inlined_call_operand.vmem [shape: f32[4,32], index: 1, kind: output, shape index: {}]
  // Predicated region
  $region2: #{tile.78} parent=0 // pred_check
    _
  $region3: #{tile.78} parent=0 // pred_check_branch
    %3 = sbr.rel (0) target = $region5
  $region4: #{tile.78} parent=0 // pred_region
    _
  $region5: #{tile.78} parent=0 // pred_fallthru
    _
  %v4 = vld [vmem:[%s0] ss:$0 sm:$0xff]
  %5 = vst [vmem:[%s1] sm:$0xf] %v4

// kernel: tile.79
$region0: #{tile.79}
  %s0 = inlined_call_operand.vmem [shape: f32[4,32], index: 0, kind: input, shape index: {}]
  %s1 = inlined_call_operand.vmem [shape: f32[1,128], index: 1, kind: output, shape index: {}]
  $region1: #{tile.79} parent=0
    #allocation0 [shape = 'u8[4096]{0}', space=vmem, size = 0x1000, scoped, tag = 'scoped mem for output reshape']
    #allocation1 [shape = 'u8[4096]{0}', space=vmem, size = 0x1000, scoped, tag = 'scoped mem for input reshape']
    %s3 = ssub.s32 16, 1
    %v4 = vld [vmem:[%s0] sm:%s3]
    %5 = vst [vmem:[#allocation1] sm:%s3] %v4
    %v6 = vld [vmem:[#allocation1] sm:$0x1]
    %vm7 = vcmask 261120
    %8 = vst.msk [vmem:[#allocation0] sm:$0x1] %vm7, %v6
    %s9 = scalar_lea.vmem [#allocation1], 3
    %v10 = vld [vmem:[%s9] sm:$0x1]
    %11 = vrot.lane.b32.xlu0 %v10, 96
    %v12 = vpop.permute.xlu0 %11
    %vm13 = vcmask 1048320
    %14 = vst.msk [vmem:[#allocation0] sm:$0x1] %vm13, %v12
    %s15 = scalar_lea.vmem [#allocation1], 2
    %v16 = vld [vmem:[%s15] sm:$0x1]
    %17 = vrot.lane.b32.xlu0 %v16, 64
    %v18 = vpop.permute.xlu0 %17
    %vm19 = vcmask 785920
    %20 = vst.msk [vmem:[#allocation0] sm:$0x1] %vm19, %v18
    %s21 = scalar_lea.vmem [#allocation1], 1
    %v22 = vld [vmem:[%s21] sm:$0x1]
    %23 = vrot.lane.b32.xlu0 %v22, 32
    %v24 = vpop.permute.xlu0 %23
    %vm25 = vcmask 523520
    %26 = vst.msk [vmem:[#allocation0] sm:$0x1] %vm25, %v24
    %s28 = ssub.s32 2, 1
    %v29 = vld [vmem:[#allocation0] sm:%s28]
    %s31 = ssub.s32 2, 1
    %32 = vst [vmem:[%s1] sm:%s31] %v29

// kernel: encoder_forward.1
$region0: #{encoder_forward.1}
  #allocation0 [shape = 'u32[]', space=smem, size = 0x4, offset = 0x4, fixed_abs, tag = 'smem constant byte address 0x4 - core index']
  #allocation1 [shape = 'u32[72,128]{1,0:T(1,128)}', space=vmem, size = 0x9000, scoped, tag = 'internal scratch']
  %s0 = inlined_call_operand.vmem [shape: f32[2,1024], index: 0, kind: input, shape index: {}]
  %s1 = inlined_call_operand.vmem [shape: f32[1024,512], index: 1, kind: input, shape index: {}]
  %s2 = inlined_call_operand.vmem [shape: f32[1,512], index: 2, kind: input, shape index: {}]
  %s3 = inlined_call_operand.vmem [shape: f32[1,512], index: 3, kind: input, shape index: {}]
  %s4 = inlined_call_operand.vmem [shape: f32[1,512], index: 4, kind: input, shape index: {}]
  %s5 = inlined_call_operand.vmem [shape: f32[512,8], index: 5, kind: input, shape index: {}]
  %s6 = inlined_call_operand.vmem [shape: f32[8,512], index: 6, kind: input, shape index: {}]
  %s7 = inlined_call_operand.vmem [shape: f32[512,256], index: 7, kind: input, shape index: {}]
  %s8 = inlined_call_operand.vmem [shape: f32[1,256], index: 8, kind: input, shape index: {}]
  %s9 = inlined_call_operand.vmem [shape: f32[1,256], index: 9, kind: input, shape index: {}]
  %s10 = inlined_call_operand.vmem [shape: f32[1,256], index: 10, kind: input, shape index: {}]
  %s11 = inlined_call_operand.vmem [shape: f32[256,16], index: 11, kind: input, shape index: {}]
  %s12 = inlined_call_operand.vmem [shape: f32[16,256], index: 12, kind: input, shape index: {}]
  %s13 = inlined_call_operand.vmem [shape: f32[256,128], index: 13, kind: input, shape index: {}]
  %s14 = inlined_call_operand.vmem [shape: f32[1,128], index: 14, kind: input, shape index: {}]
  %s15 = inlined_call_operand.vmem [shape: f32[1,128], index: 15, kind: input, shape index: {}]
  %s16 = inlined_call_operand.vmem [shape: f32[1,128], index: 16, kind: input, shape index: {}]
  %s17 = inlined_call_operand.vmem [shape: f32[128,32], index: 17, kind: input, shape index: {}]
  %s18 = inlined_call_operand.vmem [shape: f32[32,128], index: 18, kind: input, shape index: {}]
  %s19 = inlined_call_operand.vmem [shape: f32[128,16], index: 19, kind: input, shape index: {}]
  %s20 = inlined_call_operand.vmem [shape: f32[1,16], index: 20, kind: input, shape index: {}]
  %s21 = inlined_call_operand.hbm [shape: f32[2,8], index: 21, kind: output, shape index: {0}]
  %s22 = inlined_call_operand.hbm [shape: f32[2,8], index: 22, kind: output, shape index: {1}]
  %23 = xla_tuple %s21, %s22
  %s24 = sld [smem:[#allocation0]]
  $region102: #{encoder_forward.1} parent=0
    _
  %s26 = ssub.s32 1, %s24
  %s27 = scalar_select 0, %s26, %s24
  $region1: #{encoder_forward.1} parent=0
    #allocation2 [shape = 'u8[1024]{0}', space=vmem, size = 0x400, scoped, tag = 'output window, operand 0, single buffered']
    #allocation3 [shape = 's32[1]{0}', space=sflag, size = 0x4, scoped, tag = 'scoped memory for encoder_forward.1']
    #allocation4 [shape = 'u8[1024]{0}', space=vmem, size = 0x400, scoped, tag = 'output window, operand 1, single buffered']
    #allocation5 [shape = 's32[1]{0}', space=sflag, size = 0x4, scoped, tag = 'scoped memory for encoder_forward.1']
    %28 = vsyncpa [#allocation3], 0
    %29 = vsyncpa [#allocation5], 0
    // Predicated region
    $region2: #{encoder_forward.1} parent=1 // pred_check
      _
    $region3: #{encoder_forward.1} parent=1 // pred_check_branch
      %31 = sbr.rel (0) target = $region5
    $region4: #{encoder_forward.1} parent=1 // pred_region
      _
    $region5: #{encoder_forward.1} parent=1 // pred_fallthru
      _
    // Predicated region
    $region6: #{encoder_forward.1} parent=1 // pred_check
      _
    $region7: #{encoder_forward.1} parent=1 // pred_check_branch
      %33 = sbr.rel (0) target = $region9
    $region8: #{encoder_forward.1} parent=1 // pred_region
      _
    $region9: #{encoder_forward.1} parent=1 // pred_fallthru
      _
    // Predicated region
    $region10: #{encoder_forward.1} parent=1 // pred_check
      _
    $region11: #{encoder_forward.1} parent=1 // pred_check_branch
      %35 = sbr.rel (0) target = $region13
    $region12: #{encoder_forward.1} parent=1 // pred_region
      _
    $region13: #{encoder_forward.1} parent=1 // pred_fallthru
      _
    // Predicated region
    $region14: #{encoder_forward.1} parent=1 // pred_check
      _
    $region15: #{encoder_forward.1} parent=1 // pred_check_branch
      %37 = sbr.rel (0) target = $region17
    $region16: #{encoder_forward.1} parent=1 // pred_region
      _
    $region17: #{encoder_forward.1} parent=1 // pred_fallthru
      _
    // Predicated region
    $region18: #{encoder_forward.1} parent=1 // pred_check
      _
    $region19: #{encoder_forward.1} parent=1 // pred_check_branch
      %39 = sbr.rel (0) target = $region21
    $region20: #{encoder_forward.1} parent=1 // pred_region
      _
    $region21: #{encoder_forward.1} parent=1 // pred_fallthru
      _
    // Predicated region
    $region22: #{encoder_forward.1} parent=1 // pred_check
      _
    $region23: #{encoder_forward.1} parent=1 // pred_check_branch
      %41 = sbr.rel (0) target = $region25
    $region24: #{encoder_forward.1} parent=1 // pred_region
      _
    $region25: #{encoder_forward.1} parent=1 // pred_fallthru
      _
    // Predicated region
    $region26: #{encoder_forward.1} parent=1 // pred_check
      _
    $region27: #{encoder_forward.1} parent=1 // pred_check_branch
      %43 = sbr.rel (0) target = $region29
    $region28: #{encoder_forward.1} parent=1 // pred_region
      _
    $region29: #{encoder_forward.1} parent=1 // pred_fallthru
      _
    // Predicated region
    $region30: #{encoder_forward.1} parent=1 // pred_check
      _
    $region31: #{encoder_forward.1} parent=1 // pred_check_branch
      %45 = sbr.rel (0) target = $region33
    $region32: #{encoder_forward.1} parent=1 // pred_region
      _
    $region33: #{encoder_forward.1} parent=1 // pred_fallthru
      _
    // Predicated region
    $region34: #{encoder_forward.1} parent=1 // pred_check
      _
    $region35: #{encoder_forward.1} parent=1 // pred_check_branch
      %47 = sbr.rel (0) target = $region37
    $region36: #{encoder_forward.1} parent=1 // pred_region
      _
    $region37: #{encoder_forward.1} parent=1 // pred_fallthru
      _
    // Predicated region
    $region38: #{encoder_forward.1} parent=1 // pred_check
      _
    $region39: #{encoder_forward.1} parent=1 // pred_check_branch
      %49 = sbr.rel (0) target = $region41
    $region40: #{encoder_forward.1} parent=1 // pred_region
      _
    $region41: #{encoder_forward.1} parent=1 // pred_fallthru
      _
    // Predicated region
    $region42: #{encoder_forward.1} parent=1 // pred_check
      _
    $region43: #{encoder_forward.1} parent=1 // pred_check_branch
      %51 = sbr.rel (0) target = $region45
    $region44: #{encoder_forward.1} parent=1 // pred_region
      _
    $region45: #{encoder_forward.1} parent=1 // pred_fallthru
      _
    // Predicated region
    $region46: #{encoder_forward.1} parent=1 // pred_check
      _
    $region47: #{encoder_forward.1} parent=1 // pred_check_branch
      %53 = sbr.rel (0) target = $region49
    $region48: #{encoder_forward.1} parent=1 // pred_region
      _
    $region49: #{encoder_forward.1} parent=1 // pred_fallthru
      _
    // Predicated region
    $region50: #{encoder_forward.1} parent=1 // pred_check
      _
    $region51: #{encoder_forward.1} parent=1 // pred_check_branch
      %55 = sbr.rel (0) target = $region53
    $region52: #{encoder_forward.1} parent=1 // pred_region
      _
    $region53: #{encoder_forward.1} parent=1 // pred_fallthru
      _
    // Predicated region
    $region54: #{encoder_forward.1} parent=1 // pred_check
      _
    $region55: #{encoder_forward.1} parent=1 // pred_check_branch
      %57 = sbr.rel (0) target = $region57
    $region56: #{encoder_forward.1} parent=1 // pred_region
      _
    $region57: #{encoder_forward.1} parent=1 // pred_fallthru
      _
    // Predicated region
    $region58: #{encoder_forward.1} parent=1 // pred_check
      _
    $region59: #{encoder_forward.1} parent=1 // pred_check_branch
      %59 = sbr.rel (0) target = $region61
    $region60: #{encoder_forward.1} parent=1 // pred_region
      _
    $region61: #{encoder_forward.1} parent=1 // pred_fallthru
      _
    // Predicated region
    $region62: #{encoder_forward.1} parent=1 // pred_check
      _
    $region63: #{encoder_forward.1} parent=1 // pred_check_branch
      %61 = sbr.rel (0) target = $region65
    $region64: #{encoder_forward.1} parent=1 // pred_region
      _
    $region65: #{encoder_forward.1} parent=1 // pred_fallthru
      _
    // Predicated region
    $region66: #{encoder_forward.1} parent=1 // pred_check
      _
    $region67: #{encoder_forward.1} parent=1 // pred_check_branch
      %63 = sbr.rel (0) target = $region69
    $region68: #{encoder_forward.1} parent=1 // pred_region
      _
    $region69: #{encoder_forward.1} parent=1 // pred_fallthru
      _
    // Predicated region
    $region70: #{encoder_forward.1} parent=1 // pred_check
      _
    $region71: #{encoder_forward.1} parent=1 // pred_check_branch
      %65 = sbr.rel (0) target = $region73
    $region72: #{encoder_forward.1} parent=1 // pred_region
      _
    $region73: #{encoder_forward.1} parent=1 // pred_fallthru
      _
    // Predicated region
    $region74: #{encoder_forward.1} parent=1 // pred_check
      _
    $region75: #{encoder_forward.1} parent=1 // pred_check_branch
      %67 = sbr.rel (0) target = $region77
    $region76: #{encoder_forward.1} parent=1 // pred_region
      _
    $region77: #{encoder_forward.1} parent=1 // pred_fallthru
      _
    // Predicated region
    $region78: #{encoder_forward.1} parent=1 // pred_check
      _
    $region79: #{encoder_forward.1} parent=1 // pred_check_branch
      %69 = sbr.rel (0) target = $region81
    $region80: #{encoder_forward.1} parent=1 // pred_region
      _
    $region81: #{encoder_forward.1} parent=1 // pred_fallthru
      _
    // Predicated region
    $region82: #{encoder_forward.1} parent=1 // pred_check
      _
    $region83: #{encoder_forward.1} parent=1 // pred_check_branch
      %71 = sbr.rel (0) target = $region85
    $region84: #{encoder_forward.1} parent=1 // pred_region
      _
    $region85: #{encoder_forward.1} parent=1 // pred_fallthru
      _
    %v72 = vld [vmem:[%s0] sm:$0xff]
    %v73 = vld [vmem:[%s0 + $0x8] sm:$0xff]
    %v74 = vld [vmem:[%s1] sm:$0xff]
    %v75 = vld [vmem:[%s1 + $0x8] sm:$0xff]
    %v76 = vld [vmem:[%s1 + $0x10] sm:$0xff]
    %v77 = vld [vmem:[%s1 + $0x18] sm:$0xff]
    %v78 = vld [vmem:[%s1 + $0x20] sm:$0xff]
    %v79 = vld [vmem:[%s1 + $0x28] sm:$0xff]
    %v80 = vld [vmem:[%s1 + $0x30] sm:$0xff]
    %v81 = vld [vmem:[%s1 + $0x38] sm:$0xff]
    %v82 = vld [vmem:[%s1 + $0x40] sm:$0xff]
    %v83 = vld [vmem:[%s1 + $0x48] sm:$0xff]
    %v84 = vld [vmem:[%s1 + $0x50] sm:$0xff]
    %v85 = vld [vmem:[%s1 + $0x58] sm:$0xff]
    %v86 = vld [vmem:[%s1 + $0x60] sm:$0xff]
    %v87 = vld [vmem:[%s1 + $0x68] sm:$0xff]
    %v88 = vld [vmem:[%s1 + $0x70] sm:$0xff]
    %v89 = vld [vmem:[%s1 + $0x78] sm:$0xff]
    %v90 = vld [vmem:[%s1 + $0x80] sm:$0xff]
    %v91 = vld [vmem:[%s1 + $0x88] sm:$0xff]
    %v92 = vld [vmem:[%s1 + $0x90] sm:$0xff]
    %v93 = vld [vmem:[%s1 + $0x98] sm:$0xff]
    %v94 = vld [vmem:[%s1 + $0xa0] sm:$0xff]
    %v95 = vld [vmem:[%s1 + $0xa8] sm:$0xff]
    %v96 = vld [vmem:[%s1 + $0xb0] sm:$0xff]
    %v97 = vld [vmem:[%s1 + $0xb8] sm:$0xff]
    %v98 = vld [vmem:[%s1 + $0xc0] sm:$0xff]
    %v99 = vld [vmem:[%s1 + $0xc8] sm:$0xff]
    %v100 = vld [vmem:[%s1 + $0xd0] sm:$0xff]
    %v101 = vld [vmem:[%s1 + $0xd8] sm:$0xff]
    %v102 = vld [vmem:[%s1 + $0xe0] sm:$0xff]
    %v103 = vld [vmem:[%s1 + $0xe8] sm:$0xff]
    %v104 = vld [vmem:[%s1 + $0xf0] sm:$0xff]
    %v105 = vld [vmem:[%s1 + $0xf8] sm:$0xff]
    %v106 = vld [vmem:[%s1 + $0x100] sm:$0xff]
    %v107 = vld [vmem:[%s1 + $0x108] sm:$0xff]
    %v108 = vld [vmem:[%s1 + $0x110] sm:$0xff]
    %v109 = vld [vmem:[%s1 + $0x118] sm:$0xff]
    %v110 = vld [vmem:[%s1 + $0x120] sm:$0xff]
    %v111 = vld [vmem:[%s1 + $0x128] sm:$0xff]
    %v112 = vld [vmem:[%s1 + $0x130] sm:$0xff]
    %v113 = vld [vmem:[%s1 + $0x138] sm:$0xff]
    %v114 = vld [vmem:[%s1 + $0x140] sm:$0xff]
    %v115 = vld [vmem:[%s1 + $0x148] sm:$0xff]
    %v116 = vld [vmem:[%s1 + $0x150] sm:$0xff]
    %v117 = vld [vmem:[%s1 + $0x158] sm:$0xff]
    %v118 = vld [vmem:[%s1 + $0x160] sm:$0xff]
    %v119 = vld [vmem:[%s1 + $0x168] sm:$0xff]
    %v120 = vld [vmem:[%s1 + $0x170] sm:$0xff]
    %v121 = vld [vmem:[%s1 + $0x178] sm:$0xff]
    %v122 = vld [vmem:[%s1 + $0x180] sm:$0xff]
    %v123 = vld [vmem:[%s1 + $0x188] sm:$0xff]
    %v124 = vld [vmem:[%s1 + $0x190] sm:$0xff]
    %v125 = vld [vmem:[%s1 + $0x198] sm:$0xff]
    %v126 = vld [vmem:[%s1 + $0x1a0] sm:$0xff]
    %v127 = vld [vmem:[%s1 + $0x1a8] sm:$0xff]
    %v128 = vld [vmem:[%s1 + $0x1b0] sm:$0xff]
    %v129 = vld [vmem:[%s1 + $0x1b8] sm:$0xff]
    %v130 = vld [vmem:[%s1 + $0x1c0] sm:$0xff]
    %v131 = vld [vmem:[%s1 + $0x1c8] sm:$0xff]
    %v132 = vld [vmem:[%s1 + $0x1d0] sm:$0xff]
    %v133 = vld [vmem:[%s1 + $0x1d8] sm:$0xff]
    %v134 = vld [vmem:[%s1 + $0x1e0] sm:$0xff]
    %v135 = vld [vmem:[%s1 + $0x1e8] sm:$0xff]
    %v136 = vld [vmem:[%s1 + $0x1f0] sm:$0xff]
    %v137 = vld [vmem:[%s1 + $0x1f8] sm:$0xff]
    %v138 = vld [vmem:[%s1 + $0x200] sm:$0xff]
    %v139 = vld [vmem:[%s1 + $0x208] sm:$0xff]
    %v140 = vld [vmem:[%s1 + $0x210] sm:$0xff]
    %v141 = vld [vmem:[%s1 + $0x218] sm:$0xff]
    %v142 = vld [vmem:[%s1 + $0x220] sm:$0xff]
    %v143 = vld [vmem:[%s1 + $0x228] sm:$0xff]
    %v144 = vld [vmem:[%s1 + $0x230] sm:$0xff]
    %v145 = vld [vmem:[%s1 + $0x238] sm:$0xff]
    %v146 = vld [vmem:[%s1 + $0x240] sm:$0xff]
    %v147 = vld [vmem:[%s1 + $0x248] sm:$0xff]
    %v148 = vld [vmem:[%s1 + $0x250] sm:$0xff]
    %v149 = vld [vmem:[%s1 + $0x258] sm:$0xff]
    %v150 = vld [vmem:[%s1 + $0x260] sm:$0xff]
    %v151 = vld [vmem:[%s1 + $0x268] sm:$0xff]
    %v152 = vld [vmem:[%s1 + $0x270] sm:$0xff]
    %v153 = vld [vmem:[%s1 + $0x278] sm:$0xff]
    %v154 = vld [vmem:[%s1 + $0x280] sm:$0xff]
    %v155 = vld [vmem:[%s1 + $0x288] sm:$0xff]
    %v156 = vld [vmem:[%s1 + $0x290] sm:$0xff]
    %v157 = vld [vmem:[%s1 + $0x298] sm:$0xff]
    %v158 = vld [vmem:[%s1 + $0x2a0] sm:$0xff]
    %v159 = vld [vmem:[%s1 + $0x2a8] sm:$0xff]
    %v160 = vld [vmem:[%s1 + $0x2b0] sm:$0xff]
    %v161 = vld [vmem:[%s1 + $0x2b8] sm:$0xff]
    %v162 = vld [vmem:[%s1 + $0x2c0] sm:$0xff]
    %v163 = vld [vmem:[%s1 + $0x2c8] sm:$0xff]
    %v164 = vld [vmem:[%s1 + $0x2d0] sm:$0xff]
    %v165 = vld [vmem:[%s1 + $0x2d8] sm:$0xff]
    %v166 = vld [vmem:[%s1 + $0x2e0] sm:$0xff]
    %v167 = vld [vmem:[%s1 + $0x2e8] sm:$0xff]
    %v168 = vld [vmem:[%s1 + $0x2f0] sm:$0xff]
    %v169 = vld [vmem:[%s1 + $0x2f8] sm:$0xff]
    %v170 = vld [vmem:[%s1 + $0x300] sm:$0xff]
    %v171 = vld [vmem:[%s1 + $0x308] sm:$0xff]
    %v172 = vld [vmem:[%s1 + $0x310] sm:$0xff]
    %v173 = vld [vmem:[%s1 + $0x318] sm:$0xff]
    %v174 = vld [vmem:[%s1 + $0x320] sm:$0xff]
    %v175 = vld [vmem:[%s1 + $0x328] sm:$0xff]
    %v176 = vld [vmem:[%s1 + $0x330] sm:$0xff]
    %v177 = vld [vmem:[%s1 + $0x338] sm:$0xff]
    %v178 = vld [vmem:[%s1 + $0x340] sm:$0xff]
    %v179 = vld [vmem:[%s1 + $0x348] sm:$0xff]
    %v180 = vld [vmem:[%s1 + $0x350] sm:$0xff]
    %v181 = vld [vmem:[%s1 + $0x358] sm:$0xff]
    %v182 = vld [vmem:[%s1 + $0x360] sm:$0xff]
    %v183 = vld [vmem:[%s1 + $0x368] sm:$0xff]
    %v184 = vld [vmem:[%s1 + $0x370] sm:$0xff]
    %v185 = vld [vmem:[%s1 + $0x378] sm:$0xff]
    %v186 = vld [vmem:[%s1 + $0x380] sm:$0xff]
    %v187 = vld [vmem:[%s1 + $0x388] sm:$0xff]
    %v188 = vld [vmem:[%s1 + $0x390] sm:$0xff]
    %v189 = vld [vmem:[%s1 + $0x398] sm:$0xff]
    %v190 = vld [vmem:[%s1 + $0x3a0] sm:$0xff]
    %v191 = vld [vmem:[%s1 + $0x3a8] sm:$0xff]
    %v192 = vld [vmem:[%s1 + $0x3b0] sm:$0xff]
    %v193 = vld [vmem:[%s1 + $0x3b8] sm:$0xff]
    %v194 = vld [vmem:[%s1 + $0x3c0] sm:$0xff]
    %v195 = vld [vmem:[%s1 + $0x3c8] sm:$0xff]
    %v196 = vld [vmem:[%s1 + $0x3d0] sm:$0xff]
    %v197 = vld [vmem:[%s1 + $0x3d8] sm:$0xff]
    %v198 = vld [vmem:[%s1 + $0x3e0] sm:$0xff]
    %v199 = vld [vmem:[%s1 + $0x3e8] sm:$0xff]
    %v200 = vld [vmem:[%s1 + $0x3f0] sm:$0xff]
    %v201 = vld [vmem:[%s1 + $0x3f8] sm:$0xff]
    %v202 = vld [vmem:[%s1 + $0x400] sm:$0xff]
    %v203 = vld [vmem:[%s1 + $0x408] sm:$0xff]
    %v204 = vld [vmem:[%s1 + $0x410] sm:$0xff]
    %v205 = vld [vmem:[%s1 + $0x418] sm:$0xff]
    %v206 = vld [vmem:[%s1 + $0x420] sm:$0xff]
    %v207 = vld [vmem:[%s1 + $0x428] sm:$0xff]
    %v208 = vld [vmem:[%s1 + $0x430] sm:$0xff]
    %v209 = vld [vmem:[%s1 + $0x438] sm:$0xff]
    %v210 = vld [vmem:[%s1 + $0x440] sm:$0xff]
    %v211 = vld [vmem:[%s1 + $0x448] sm:$0xff]
    %v212 = vld [vmem:[%s1 + $0x450] sm:$0xff]
    %v213 = vld [vmem:[%s1 + $0x458] sm:$0xff]
    %v214 = vld [vmem:[%s1 + $0x460] sm:$0xff]
    %v215 = vld [vmem:[%s1 + $0x468] sm:$0xff]
    %v216 = vld [vmem:[%s1 + $0x470] sm:$0xff]
    %v217 = vld [vmem:[%s1 + $0x478] sm:$0xff]
    %v218 = vld [vmem:[%s1 + $0x480] sm:$0xff]
    %v219 = vld [vmem:[%s1 + $0x488] sm:$0xff]
    %v220 = vld [vmem:[%s1 + $0x490] sm:$0xff]
    %v221 = vld [vmem:[%s1 + $0x498] sm:$0xff]
    %v222 = vld [vmem:[%s1 + $0x4a0] sm:$0xff]
    %v223 = vld [vmem:[%s1 + $0x4a8] sm:$0xff]
    %v224 = vld [vmem:[%s1 + $0x4b0] sm:$0xff]
    %v225 = vld [vmem:[%s1 + $0x4b8] sm:$0xff]
    %v226 = vld [vmem:[%s1 + $0x4c0] sm:$0xff]
    %v227 = vld [vmem:[%s1 + $0x4c8] sm:$0xff]
    %v228 = vld [vmem:[%s1 + $0x4d0] sm:$0xff]
    %v229 = vld [vmem:[%s1 + $0x4d8] sm:$0xff]
    %v230 = vld [vmem:[%s1 + $0x4e0] sm:$0xff]
    %v231 = vld [vmem:[%s1 + $0x4e8] sm:$0xff]
    %v232 = vld [vmem:[%s1 + $0x4f0] sm:$0xff]
    %v233 = vld [vmem:[%s1 + $0x4f8] sm:$0xff]
    %v234 = vld [vmem:[%s1 + $0x500] sm:$0xff]
    %v235 = vld [vmem:[%s1 + $0x508] sm:$0xff]
    %v236 = vld [vmem:[%s1 + $0x510] sm:$0xff]
    %v237 = vld [vmem:[%s1 + $0x518] sm:$0xff]
    %v238 = vld [vmem:[%s1 + $0x520] sm:$0xff]
    %v239 = vld [vmem:[%s1 + $0x528] sm:$0xff]
    %v240 = vld [vmem:[%s1 + $0x530] sm:$0xff]
    %v241 = vld [vmem:[%s1 + $0x538] sm:$0xff]
    %v242 = vld [vmem:[%s1 + $0x540] sm:$0xff]
    %v243 = vld [vmem:[%s1 + $0x548] sm:$0xff]
    %v244 = vld [vmem:[%s1 + $0x550] sm:$0xff]
    %v245 = vld [vmem:[%s1 + $0x558] sm:$0xff]
    %v246 = vld [vmem:[%s1 + $0x560] sm:$0xff]
    %v247 = vld [vmem:[%s1 + $0x568] sm:$0xff]
    %v248 = vld [vmem:[%s1 + $0x570] sm:$0xff]
    %v249 = vld [vmem:[%s1 + $0x578] sm:$0xff]
    %v250 = vld [vmem:[%s1 + $0x580] sm:$0xff]
    %v251 = vld [vmem:[%s1 + $0x588] sm:$0xff]
    %v252 = vld [vmem:[%s1 + $0x590] sm:$0xff]
    %v253 = vld [vmem:[%s1 + $0x598] sm:$0xff]
    %v254 = vld [vmem:[%s1 + $0x5a0] sm:$0xff]
    %v255 = vld [vmem:[%s1 + $0x5a8] sm:$0xff]
    %v256 = vld [vmem:[%s1 + $0x5b0] sm:$0xff]
    %v257 = vld [vmem:[%s1 + $0x5b8] sm:$0xff]
    %v258 = vld [vmem:[%s1 + $0x5c0] sm:$0xff]
    %v259 = vld [vmem:[%s1 + $0x5c8] sm:$0xff]
    %v260 = vld [vmem:[%s1 + $0x5d0] sm:$0xff]
    %v261 = vld [vmem:[%s1 + $0x5d8] sm:$0xff]
    %v262 = vld [vmem:[%s1 + $0x5e0] sm:$0xff]
    %v263 = vld [vmem:[%s1 + $0x5e8] sm:$0xff]
    %v264 = vld [vmem:[%s1 + $0x5f0] sm:$0xff]
    %v265 = vld [vmem:[%s1 + $0x5f8] sm:$0xff]
    %v266 = vld [vmem:[%s1 + $0x600] sm:$0xff]
    %v267 = vld [vmem:[%s1 + $0x608] sm:$0xff]
    %v268 = vld [vmem:[%s1 + $0x610] sm:$0xff]
    %v269 = vld [vmem:[%s1 + $0x618] sm:$0xff]
    %v270 = vld [vmem:[%s1 + $0x620] sm:$0xff]
    %v271 = vld [vmem:[%s1 + $0x628] sm:$0xff]
    %v272 = vld [vmem:[%s1 + $0x630] sm:$0xff]
    %v273 = vld [vmem:[%s1 + $0x638] sm:$0xff]
    %v274 = vld [vmem:[%s1 + $0x640] sm:$0xff]
    %v275 = vld [vmem:[%s1 + $0x648] sm:$0xff]
    %v276 = vld [vmem:[%s1 + $0x650] sm:$0xff]
    %v277 = vld [vmem:[%s1 + $0x658] sm:$0xff]
    %v278 = vld [vmem:[%s1 + $0x660] sm:$0xff]
    %v279 = vld [vmem:[%s1 + $0x668] sm:$0xff]
    %v280 = vld [vmem:[%s1 + $0x670] sm:$0xff]
    %v281 = vld [vmem:[%s1 + $0x678] sm:$0xff]
    %v282 = vld [vmem:[%s1 + $0x680] sm:$0xff]
    %v283 = vld [vmem:[%s1 + $0x688] sm:$0xff]
    %v284 = vld [vmem:[%s1 + $0x690] sm:$0xff]
    %v285 = vld [vmem:[%s1 + $0x698] sm:$0xff]
    %v286 = vld [vmem:[%s1 + $0x6a0] sm:$0xff]
    %v287 = vld [vmem:[%s1 + $0x6a8] sm:$0xff]
    %v288 = vld [vmem:[%s1 + $0x6b0] sm:$0xff]
    %v289 = vld [vmem:[%s1 + $0x6b8] sm:$0xff]
    %v290 = vld [vmem:[%s1 + $0x6c0] sm:$0xff]
    %v291 = vld [vmem:[%s1 + $0x6c8] sm:$0xff]
    %v292 = vld [vmem:[%s1 + $0x6d0] sm:$0xff]
    %v293 = vld [vmem:[%s1 + $0x6d8] sm:$0xff]
    %v294 = vld [vmem:[%s1 + $0x6e0] sm:$0xff]
    %v295 = vld [vmem:[%s1 + $0x6e8] sm:$0xff]
    %v296 = vld [vmem:[%s1 + $0x6f0] sm:$0xff]
    %v297 = vld [vmem:[%s1 + $0x6f8] sm:$0xff]
    %v298 = vld [vmem:[%s1 + $0x700] sm:$0xff]
    %v299 = vld [vmem:[%s1 + $0x708] sm:$0xff]
    %v300 = vld [vmem:[%s1 + $0x710] sm:$0xff]
    %v301 = vld [vmem:[%s1 + $0x718] sm:$0xff]
    %v302 = vld [vmem:[%s1 + $0x720] sm:$0xff]
    %v303 = vld [vmem:[%s1 + $0x728] sm:$0xff]
    %v304 = vld [vmem:[%s1 + $0x730] sm:$0xff]
    %v305 = vld [vmem:[%s1 + $0x738] sm:$0xff]
    %v306 = vld [vmem:[%s1 + $0x740] sm:$0xff]
    %v307 = vld [vmem:[%s1 + $0x748] sm:$0xff]
    %v308 = vld [vmem:[%s1 + $0x750] sm:$0xff]
    %v309 = vld [vmem:[%s1 + $0x758] sm:$0xff]
    %v310 = vld [vmem:[%s1 + $0x760] sm:$0xff]
    %v311 = vld [vmem:[%s1 + $0x768] sm:$0xff]
    %v312 = vld [vmem:[%s1 + $0x770] sm:$0xff]
    %v313 = vld [vmem:[%s1 + $0x778] sm:$0xff]
    %v314 = vld [vmem:[%s1 + $0x780] sm:$0xff]
    %v315 = vld [vmem:[%s1 + $0x788] sm:$0xff]
    %v316 = vld [vmem:[%s1 + $0x790] sm:$0xff]
    %v317 = vld [vmem:[%s1 + $0x798] sm:$0xff]
    %v318 = vld [vmem:[%s1 + $0x7a0] sm:$0xff]
    %v319 = vld [vmem:[%s1 + $0x7a8] sm:$0xff]
    %v320 = vld [vmem:[%s1 + $0x7b0] sm:$0xff]
    %v321 = vld [vmem:[%s1 + $0x7b8] sm:$0xff]
    %v322 = vld [vmem:[%s1 + $0x7c0] sm:$0xff]
    %v323 = vld [vmem:[%s1 + $0x7c8] sm:$0xff]
    %v324 = vld [vmem:[%s1 + $0x7d0] sm:$0xff]
    %v325 = vld [vmem:[%s1 + $0x7d8] sm:$0xff]
    %v326 = vld [vmem:[%s1 + $0x7e0] sm:$0xff]
    %v327 = vld [vmem:[%s1 + $0x7e8] sm:$0xff]
    %v328 = vld [vmem:[%s1 + $0x7f0] sm:$0xff]
    %v329 = vld [vmem:[%s1 + $0x7f8] sm:$0xff]
    %v330 = vld [vmem:[%s1 + $0x800] sm:$0xff]
    %v331 = vld [vmem:[%s1 + $0x808] sm:$0xff]
    %v332 = vld [vmem:[%s1 + $0x810] sm:$0xff]
    %v333 = vld [vmem:[%s1 + $0x818] sm:$0xff]
    %v334 = vld [vmem:[%s1 + $0x820] sm:$0xff]
    %v335 = vld [vmem:[%s1 + $0x828] sm:$0xff]
    %v336 = vld [vmem:[%s1 + $0x830] sm:$0xff]
    %v337 = vld [vmem:[%s1 + $0x838] sm:$0xff]
    %v338 = vld [vmem:[%s1 + $0x840] sm:$0xff]
    %v339 = vld [vmem:[%s1 + $0x848] sm:$0xff]
    %v340 = vld [vmem:[%s1 + $0x850] sm:$0xff]
    %v341 = vld [vmem:[%s1 + $0x858] sm:$0xff]
    %v342 = vld [vmem:[%s1 + $0x860] sm:$0xff]
    %v343 = vld [vmem:[%s1 + $0x868] sm:$0xff]
    %v344 = vld [vmem:[%s1 + $0x870] sm:$0xff]
    %v345 = vld [vmem:[%s1 + $0x878] sm:$0xff]
    %v346 = vld [vmem:[%s1 + $0x880] sm:$0xff]
    %v347 = vld [vmem:[%s1 + $0x888] sm:$0xff]
    %v348 = vld [vmem:[%s1 + $0x890] sm:$0xff]
    %v349 = vld [vmem:[%s1 + $0x898] sm:$0xff]
    %v350 = vld [vmem:[%s1 + $0x8a0] sm:$0xff]
    %v351 = vld [vmem:[%s1 + $0x8a8] sm:$0xff]
    %v352 = vld [vmem:[%s1 + $0x8b0] sm:$0xff]
    %v353 = vld [vmem:[%s1 + $0x8b8] sm:$0xff]
    %v354 = vld [vmem:[%s1 + $0x8c0] sm:$0xff]
    %v355 = vld [vmem:[%s1 + $0x8c8] sm:$0xff]
    %v356 = vld [vmem:[%s1 + $0x8d0] sm:$0xff]
    %v357 = vld [vmem:[%s1 + $0x8d8] sm:$0xff]
    %v358 = vld [vmem:[%s1 + $0x8e0] sm:$0xff]
    %v359 = vld [vmem:[%s1 + $0x8e8] sm:$0xff]
    %v360 = vld [vmem:[%s1 + $0x8f0] sm:$0xff]
    %v361 = vld [vmem:[%s1 + $0x8f8] sm:$0xff]
    %v362 = vld [vmem:[%s1 + $0x900] sm:$0xff]
    %v363 = vld [vmem:[%s1 + $0x908] sm:$0xff]
    %v364 = vld [vmem:[%s1 + $0x910] sm:$0xff]
    %v365 = vld [vmem:[%s1 + $0x918] sm:$0xff]
    %v366 = vld [vmem:[%s1 + $0x920] sm:$0xff]
    %v367 = vld [vmem:[%s1 + $0x928] sm:$0xff]
    %v368 = vld [vmem:[%s1 + $0x930] sm:$0xff]
    %v369 = vld [vmem:[%s1 + $0x938] sm:$0xff]
    %v370 = vld [vmem:[%s1 + $0x940] sm:$0xff]
    %v371 = vld [vmem:[%s1 + $0x948] sm:$0xff]
    %v372 = vld [vmem:[%s1 + $0x950] sm:$0xff]
    %v373 = vld [vmem:[%s1 + $0x958] sm:$0xff]
    %v374 = vld [vmem:[%s1 + $0x960] sm:$0xff]
    %v375 = vld [vmem:[%s1 + $0x968] sm:$0xff]
    %v376 = vld [vmem:[%s1 + $0x970] sm:$0xff]
    %v377 = vld [vmem:[%s1 + $0x978] sm:$0xff]
    %v378 = vld [vmem:[%s1 + $0x980] sm:$0xff]
    %v379 = vld [vmem:[%s1 + $0x988] sm:$0xff]
    %v380 = vld [vmem:[%s1 + $0x990] sm:$0xff]
    %v381 = vld [vmem:[%s1 + $0x998] sm:$0xff]
    %v382 = vld [vmem:[%s1 + $0x9a0] sm:$0xff]
    %v383 = vld [vmem:[%s1 + $0x9a8] sm:$0xff]
    %v384 = vld [vmem:[%s1 + $0x9b0] sm:$0xff]
    %v385 = vld [vmem:[%s1 + $0x9b8] sm:$0xff]
    %v386 = vld [vmem:[%s1 + $0x9c0] sm:$0xff]
    %v387 = vld [vmem:[%s1 + $0x9c8] sm:$0xff]
    %v388 = vld [vmem:[%s1 + $0x9d0] sm:$0xff]
    %v389 = vld [vmem:[%s1 + $0x9d8] sm:$0xff]
    %v390 = vld [vmem:[%s1 + $0x9e0] sm:$0xff]
    %v391 = vld [vmem:[%s1 + $0x9e8] sm:$0xff]
    %v392 = vld [vmem:[%s1 + $0x9f0] sm:$0xff]
    %v393 = vld [vmem:[%s1 + $0x9f8] sm:$0xff]
    %v394 = vld [vmem:[%s1 + $0xa00] sm:$0xff]
    %v395 = vld [vmem:[%s1 + $0xa08] sm:$0xff]
    %v396 = vld [vmem:[%s1 + $0xa10] sm:$0xff]
    %v397 = vld [vmem:[%s1 + $0xa18] sm:$0xff]
    %v398 = vld [vmem:[%s1 + $0xa20] sm:$0xff]
    %v399 = vld [vmem:[%s1 + $0xa28] sm:$0xff]
    %v400 = vld [vmem:[%s1 + $0xa30] sm:$0xff]
    %v401 = vld [vmem:[%s1 + $0xa38] sm:$0xff]
    %v402 = vld [vmem:[%s1 + $0xa40] sm:$0xff]
    %v403 = vld [vmem:[%s1 + $0xa48] sm:$0xff]
    %v404 = vld [vmem:[%s1 + $0xa50] sm:$0xff]
    %v405 = vld [vmem:[%s1 + $0xa58] sm:$0xff]
    %v406 = vld [vmem:[%s1 + $0xa60] sm:$0xff]
    %v407 = vld [vmem:[%s1 + $0xa68] sm:$0xff]
    %v408 = vld [vmem:[%s1 + $0xa70] sm:$0xff]
    %v409 = vld [vmem:[%s1 + $0xa78] sm:$0xff]
    %v410 = vld [vmem:[%s1 + $0xa80] sm:$0xff]
    %v411 = vld [vmem:[%s1 + $0xa88] sm:$0xff]
    %v412 = vld [vmem:[%s1 + $0xa90] sm:$0xff]
    %v413 = vld [vmem:[%s1 + $0xa98] sm:$0xff]
    %v414 = vld [vmem:[%s1 + $0xaa0] sm:$0xff]
    %v415 = vld [vmem:[%s1 + $0xaa8] sm:$0xff]
    %v416 = vld [vmem:[%s1 + $0xab0] sm:$0xff]
    %v417 = vld [vmem:[%s1 + $0xab8] sm:$0xff]
    %v418 = vld [vmem:[%s1 + $0xac0] sm:$0xff]
    %v419 = vld [vmem:[%s1 + $0xac8] sm:$0xff]
    %v420 = vld [vmem:[%s1 + $0xad0] sm:$0xff]
    %v421 = vld [vmem:[%s1 + $0xad8] sm:$0xff]
    %v422 = vld [vmem:[%s1 + $0xae0] sm:$0xff]
    %v423 = vld [vmem:[%s1 + $0xae8] sm:$0xff]
    %v424 = vld [vmem:[%s1 + $0xaf0] sm:$0xff]
    %v425 = vld [vmem:[%s1 + $0xaf8] sm:$0xff]
    %v426 = vld [vmem:[%s1 + $0xb00] sm:$0xff]
    %v427 = vld [vmem:[%s1 + $0xb08] sm:$0xff]
    %v428 = vld [vmem:[%s1 + $0xb10] sm:$0xff]
    %v429 = vld [vmem:[%s1 + $0xb18] sm:$0xff]
    %v430 = vld [vmem:[%s1 + $0xb20] sm:$0xff]
    %v431 = vld [vmem:[%s1 + $0xb28] sm:$0xff]
    %v432 = vld [vmem:[%s1 + $0xb30] sm:$0xff]
    %v433 = vld [vmem:[%s1 + $0xb38] sm:$0xff]
    %v434 = vld [vmem:[%s1 + $0xb40] sm:$0xff]
    %v435 = vld [vmem:[%s1 + $0xb48] sm:$0xff]
    %v436 = vld [vmem:[%s1 + $0xb50] sm:$0xff]
    %v437 = vld [vmem:[%s1 + $0xb58] sm:$0xff]
    %v438 = vld [vmem:[%s1 + $0xb60] sm:$0xff]
    %v439 = vld [vmem:[%s1 + $0xb68] sm:$0xff]
    %v440 = vld [vmem:[%s1 + $0xb70] sm:$0xff]
    %v441 = vld [vmem:[%s1 + $0xb78] sm:$0xff]
    %v442 = vld [vmem:[%s1 + $0xb80] sm:$0xff]
    %v443 = vld [vmem:[%s1 + $0xb88] sm:$0xff]
    %v444 = vld [vmem:[%s1 + $0xb90] sm:$0xff]
    %v445 = vld [vmem:[%s1 + $0xb98] sm:$0xff]
    %v446 = vld [vmem:[%s1 + $0xba0] sm:$0xff]
    %v447 = vld [vmem:[%s1 + $0xba8] sm:$0xff]
    %v448 = vld [vmem:[%s1 + $0xbb0] sm:$0xff]
    %v449 = vld [vmem:[%s1 + $0xbb8] sm:$0xff]
    %v450 = vld [vmem:[%s1 + $0xbc0] sm:$0xff]
    %v451 = vld [vmem:[%s1 + $0xbc8] sm:$0xff]
    %v452 = vld [vmem:[%s1 + $0xbd0] sm:$0xff]
    %v453 = vld [vmem:[%s1 + $0xbd8] sm:$0xff]
    %v454 = vld [vmem:[%s1 + $0xbe0] sm:$0xff]
    %v455 = vld [vmem:[%s1 + $0xbe8] sm:$0xff]
    %v456 = vld [vmem:[%s1 + $0xbf0] sm:$0xff]
    %v457 = vld [vmem:[%s1 + $0xbf8] sm:$0xff]
    %v458 = vld [vmem:[%s1 + $0xc00] sm:$0xff]
    %v459 = vld [vmem:[%s1 + $0xc08] sm:$0xff]
    %v460 = vld [vmem:[%s1 + $0xc10] sm:$0xff]
    %v461 = vld [vmem:[%s1 + $0xc18] sm:$0xff]
    %v462 = vld [vmem:[%s1 + $0xc20] sm:$0xff]
    %v463 = vld [vmem:[%s1 + $0xc28] sm:$0xff]
    %v464 = vld [vmem:[%s1 + $0xc30] sm:$0xff]
    %v465 = vld [vmem:[%s1 + $0xc38] sm:$0xff]
    %v466 = vld [vmem:[%s1 + $0xc40] sm:$0xff]
    %v467 = vld [vmem:[%s1 + $0xc48] sm:$0xff]
    %v468 = vld [vmem:[%s1 + $0xc50] sm:$0xff]
    %v469 = vld [vmem:[%s1 + $0xc58] sm:$0xff]
    %v470 = vld [vmem:[%s1 + $0xc60] sm:$0xff]
    %v471 = vld [vmem:[%s1 + $0xc68] sm:$0xff]
    %v472 = vld [vmem:[%s1 + $0xc70] sm:$0xff]
    %v473 = vld [vmem:[%s1 + $0xc78] sm:$0xff]
    %v474 = vld [vmem:[%s1 + $0xc80] sm:$0xff]
    %v475 = vld [vmem:[%s1 + $0xc88] sm:$0xff]
    %v476 = vld [vmem:[%s1 + $0xc90] sm:$0xff]
    %v477 = vld [vmem:[%s1 + $0xc98] sm:$0xff]
    %v478 = vld [vmem:[%s1 + $0xca0] sm:$0xff]
    %v479 = vld [vmem:[%s1 + $0xca8] sm:$0xff]
    %v480 = vld [vmem:[%s1 + $0xcb0] sm:$0xff]
    %v481 = vld [vmem:[%s1 + $0xcb8] sm:$0xff]
    %v482 = vld [vmem:[%s1 + $0xcc0] sm:$0xff]
    %v483 = vld [vmem:[%s1 + $0xcc8] sm:$0xff]
    %v484 = vld [vmem:[%s1 + $0xcd0] sm:$0xff]
    %v485 = vld [vmem:[%s1 + $0xcd8] sm:$0xff]
    %v486 = vld [vmem:[%s1 + $0xce0] sm:$0xff]
    %v487 = vld [vmem:[%s1 + $0xce8] sm:$0xff]
    %v488 = vld [vmem:[%s1 + $0xcf0] sm:$0xff]
    %v489 = vld [vmem:[%s1 + $0xcf8] sm:$0xff]
    %v490 = vld [vmem:[%s1 + $0xd00] sm:$0xff]
    %v491 = vld [vmem:[%s1 + $0xd08] sm:$0xff]
    %v492 = vld [vmem:[%s1 + $0xd10] sm:$0xff]
    %v493 = vld [vmem:[%s1 + $0xd18] sm:$0xff]
    %v494 = vld [vmem:[%s1 + $0xd20] sm:$0xff]
    %v495 = vld [vmem:[%s1 + $0xd28] sm:$0xff]
    %v496 = vld [vmem:[%s1 + $0xd30] sm:$0xff]
    %v497 = vld [vmem:[%s1 + $0xd38] sm:$0xff]
    %v498 = vld [vmem:[%s1 + $0xd40] sm:$0xff]
    %v499 = vld [vmem:[%s1 + $0xd48] sm:$0xff]
    %v500 = vld [vmem:[%s1 + $0xd50] sm:$0xff]
    %v501 = vld [vmem:[%s1 + $0xd58] sm:$0xff]
    %v502 = vld [vmem:[%s1 + $0xd60] sm:$0xff]
    %v503 = vld [vmem:[%s1 + $0xd68] sm:$0xff]
    %v504 = vld [vmem:[%s1 + $0xd70] sm:$0xff]
    %v505 = vld [vmem:[%s1 + $0xd78] sm:$0xff]
    %v506 = vld [vmem:[%s1 + $0xd80] sm:$0xff]
    %v507 = vld [vmem:[%s1 + $0xd88] sm:$0xff]
    %v508 = vld [vmem:[%s1 + $0xd90] sm:$0xff]
    %v509 = vld [vmem:[%s1 + $0xd98] sm:$0xff]
    %v510 = vld [vmem:[%s1 + $0xda0] sm:$0xff]
    %v511 = vld [vmem:[%s1 + $0xda8] sm:$0xff]
    %v512 = vld [vmem:[%s1 + $0xdb0] sm:$0xff]
    %v513 = vld [vmem:[%s1 + $0xdb8] sm:$0xff]
    %v514 = vld [vmem:[%s1 + $0xdc0] sm:$0xff]
    %v515 = vld [vmem:[%s1 + $0xdc8] sm:$0xff]
    %v516 = vld [vmem:[%s1 + $0xdd0] sm:$0xff]
    %v517 = vld [vmem:[%s1 + $0xdd8] sm:$0xff]
    %v518 = vld [vmem:[%s1 + $0xde0] sm:$0xff]
    %v519 = vld [vmem:[%s1 + $0xde8] sm:$0xff]
    %v520 = vld [vmem:[%s1 + $0xdf0] sm:$0xff]
    %v521 = vld [vmem:[%s1 + $0xdf8] sm:$0xff]
    %v522 = vld [vmem:[%s1 + $0xe00] sm:$0xff]
    %v523 = vld [vmem:[%s1 + $0xe08] sm:$0xff]
    %v524 = vld [vmem:[%s1 + $0xe10] sm:$0xff]
    %v525 = vld [vmem:[%s1 + $0xe18] sm:$0xff]
    %v526 = vld [vmem:[%s1 + $0xe20] sm:$0xff]
    %v527 = vld [vmem:[%s1 + $0xe28] sm:$0xff]
    %v528 = vld [vmem:[%s1 + $0xe30] sm:$0xff]
    %v529 = vld [vmem:[%s1 + $0xe38] sm:$0xff]
    %v530 = vld [vmem:[%s1 + $0xe40] sm:$0xff]
    %v531 = vld [vmem:[%s1 + $0xe48] sm:$0xff]
    %v532 = vld [vmem:[%s1 + $0xe50] sm:$0xff]
    %v533 = vld [vmem:[%s1 + $0xe58] sm:$0xff]
    %v534 = vld [vmem:[%s1 + $0xe60] sm:$0xff]
    %v535 = vld [vmem:[%s1 + $0xe68] sm:$0xff]
    %v536 = vld [vmem:[%s1 + $0xe70] sm:$0xff]
    %v537 = vld [vmem:[%s1 + $0xe78] sm:$0xff]
    %v538 = vld [vmem:[%s1 + $0xe80] sm:$0xff]
    %v539 = vld [vmem:[%s1 + $0xe88] sm:$0xff]
    %v540 = vld [vmem:[%s1 + $0xe90] sm:$0xff]
    %v541 = vld [vmem:[%s1 + $0xe98] sm:$0xff]
    %v542 = vld [vmem:[%s1 + $0xea0] sm:$0xff]
    %v543 = vld [vmem:[%s1 + $0xea8] sm:$0xff]
    %v544 = vld [vmem:[%s1 + $0xeb0] sm:$0xff]
    %v545 = vld [vmem:[%s1 + $0xeb8] sm:$0xff]
    %v546 = vld [vmem:[%s1 + $0xec0] sm:$0xff]
    %v547 = vld [vmem:[%s1 + $0xec8] sm:$0xff]
    %v548 = vld [vmem:[%s1 + $0xed0] sm:$0xff]
    %v549 = vld [vmem:[%s1 + $0xed8] sm:$0xff]
    %v550 = vld [vmem:[%s1 + $0xee0] sm:$0xff]
    %v551 = vld [vmem:[%s1 + $0xee8] sm:$0xff]
    %v552 = vld [vmem:[%s1 + $0xef0] sm:$0xff]
    %v553 = vld [vmem:[%s1 + $0xef8] sm:$0xff]
    %v554 = vld [vmem:[%s1 + $0xf00] sm:$0xff]
    %v555 = vld [vmem:[%s1 + $0xf08] sm:$0xff]
    %v556 = vld [vmem:[%s1 + $0xf10] sm:$0xff]
    %v557 = vld [vmem:[%s1 + $0xf18] sm:$0xff]
    %v558 = vld [vmem:[%s1 + $0xf20] sm:$0xff]
    %v559 = vld [vmem:[%s1 + $0xf28] sm:$0xff]
    %v560 = vld [vmem:[%s1 + $0xf30] sm:$0xff]
    %v561 = vld [vmem:[%s1 + $0xf38] sm:$0xff]
    %v562 = vld [vmem:[%s1 + $0xf40] sm:$0xff]
    %v563 = vld [vmem:[%s1 + $0xf48] sm:$0xff]
    %v564 = vld [vmem:[%s1 + $0xf50] sm:$0xff]
    %v565 = vld [vmem:[%s1 + $0xf58] sm:$0xff]
    %v566 = vld [vmem:[%s1 + $0xf60] sm:$0xff]
    %v567 = vld [vmem:[%s1 + $0xf68] sm:$0xff]
    %v568 = vld [vmem:[%s1 + $0xf70] sm:$0xff]
    %v569 = vld [vmem:[%s1 + $0xf78] sm:$0xff]
    %v570 = vld [vmem:[%s1 + $0xf80] sm:$0xff]
    %v571 = vld [vmem:[%s1 + $0xf88] sm:$0xff]
    %v572 = vld [vmem:[%s1 + $0xf90] sm:$0xff]
    %v573 = vld [vmem:[%s1 + $0xf98] sm:$0xff]
    %v574 = vld [vmem:[%s1 + $0xfa0] sm:$0xff]
    %v575 = vld [vmem:[%s1 + $0xfa8] sm:$0xff]
    %v576 = vld [vmem:[%s1 + $0xfb0] sm:$0xff]
    %v577 = vld [vmem:[%s1 + $0xfb8] sm:$0xff]
    %v578 = vld [vmem:[%s1 + $0xfc0] sm:$0xff]
    %v579 = vld [vmem:[%s1 + $0xfc8] sm:$0xff]
    %v580 = vld [vmem:[%s1 + $0xfd0] sm:$0xff]
    %v581 = vld [vmem:[%s1 + $0xfd8] sm:$0xff]
    %v582 = vld [vmem:[%s1 + $0xfe0] sm:$0xff]
    %v583 = vld [vmem:[%s1 + $0xfe8] sm:$0xff]
    %v584 = vld [vmem:[%s1 + $0xff0] sm:$0xff]
    %v585 = vld [vmem:[%s1 + $0xff8] sm:$0xff]
    %v586 = vld [vmem:[%s2] sm:$0xf]
    %v588 = vperm.slane %v586, 0
    %v589 = vperm.slane %v586, 1
    %v590 = vperm.slane %v586, 2
    %v591 = vperm.slane %v586, 3
    %598 = vst [vmem:[#allocation1] ss:$4 sm:$0xff] %v72
    %s599 = scalar_lea.vmem [#allocation1], 32
    %600 = vst [vmem:[%s599] ss:$4 sm:$0xff] %v73
    %v601 = vld.sshfl [vmem:[#allocation1] sm:$0xff pattern:$0x73625140]
    %v602 = vld.sshfl [vmem:[#allocation1 + $0x8] sm:$0xff pattern:$0x73625140]
    %v603 = vld.sshfl [vmem:[#allocation1 + $0x10] sm:$0xff pattern:$0x73625140]
    %v604 = vld.sshfl [vmem:[#allocation1 + $0x18] sm:$0xff pattern:$0x73625140]
    %v605 = vld.sshfl [vmem:[#allocation1 + $0x20] sm:$0xff pattern:$0x73625140]
    %v606 = vld.sshfl [vmem:[#allocation1 + $0x28] sm:$0xff pattern:$0x73625140]
    %v607 = vld.sshfl [vmem:[#allocation1 + $0x30] sm:$0xff pattern:$0x73625140]
    %v608 = vld.sshfl [vmem:[#allocation1 + $0x38] sm:$0xff pattern:$0x73625140]
    %617 = vmatpush.msra.mxu0 %v134
    %618 = vmatpush.msra.mxu0 %v130
    %619 = vmatpush.msra.mxu0 %v126
    %620 = vmatpush.msra.mxu0 %v122
    %621 = vmatpush.msra.mxu0 %v118
    %622 = vmatpush.msra.mxu0 %v114
    %623 = vmatpush.msra.mxu0 %v110
    %624 = vmatpush.msra.mxu0 %v106
    %625 = vmatpush.msra.mxu0 %v102
    %626 = vmatpush.msra.mxu0 %v98
    %627 = vmatpush.msra.mxu0 %v94
    %628 = vmatpush.msra.mxu0 %v90
    %629 = vmatpush.msra.mxu0 %v86
    %630 = vmatpush.msra.mxu0 %v82
    %631 = vmatpush.msra.mxu0 %v78
    %632 = vmatpush.msra.mxu0 %v74
    %633 = vmatmul.f32.gmra.mxu0 %v601
    %v634 = vpop.f32.mrf.mxu0
    %v635 = vadd.f32 %v588, %v634
    %636 = vdwg.mxu0
    %637 = vmatpush.msra.mxu0 %v198
    %638 = vmatpush.msra.mxu0 %v194
    %639 = vmatpush.msra.mxu0 %v190
    %640 = vmatpush.msra.mxu0 %v186
    %641 = vmatpush.msra.mxu0 %v182
    %642 = vmatpush.msra.mxu0 %v178
    %643 = vmatpush.msra.mxu0 %v174
    %644 = vmatpush.msra.mxu0 %v170
    %645 = vmatpush.msra.mxu0 %v166
    %646 = vmatpush.msra.mxu0 %v162
    %647 = vmatpush.msra.mxu0 %v158
    %648 = vmatpush.msra.mxu0 %v154
    %649 = vmatpush.msra.mxu0 %v150
    %650 = vmatpush.msra.mxu0 %v146
    %651 = vmatpush.msra.mxu0 %v142
    %652 = vmatpush.msra.mxu0 %v138
    %653 = vmatmul.f32.gmra.mxu0 %v602
    %v654 = vpop.f32.mrf.mxu0
    %v655 = vadd.f32 %v635, %v654
    %656 = vdwg.mxu0
    %657 = vmatpush.msra.mxu0 %v262
    %658 = vmatpush.msra.mxu0 %v258
    %659 = vmatpush.msra.mxu0 %v254
    %660 = vmatpush.msra.mxu0 %v250
    %661 = vmatpush.msra.mxu0 %v246
    %662 = vmatpush.msra.mxu0 %v242
    %663 = vmatpush.msra.mxu0 %v238
    %664 = vmatpush.msra.mxu0 %v234
    %665 = vmatpush.msra.mxu0 %v230
    %666 = vmatpush.msra.mxu0 %v226
    %667 = vmatpush.msra.mxu0 %v222
    %668 = vmatpush.msra.mxu0 %v218
    %669 = vmatpush.msra.mxu0 %v214
    %670 = vmatpush.msra.mxu0 %v210
    %671 = vmatpush.msra.mxu0 %v206
    %672 = vmatpush.msra.mxu0 %v202
    %673 = vmatmul.f32.gmra.mxu0 %v603
    %v674 = vpop.f32.mrf.mxu0
    %v675 = vadd.f32 %v655, %v674
    %676 = vdwg.mxu0
    %677 = vmatpush.msra.mxu0 %v326
    %678 = vmatpush.msra.mxu0 %v322
    %679 = vmatpush.msra.mxu0 %v318
    %680 = vmatpush.msra.mxu0 %v314
    %681 = vmatpush.msra.mxu0 %v310
    %682 = vmatpush.msra.mxu0 %v306
    %683 = vmatpush.msra.mxu0 %v302
    %684 = vmatpush.msra.mxu0 %v298
    %685 = vmatpush.msra.mxu0 %v294
    %686 = vmatpush.msra.mxu0 %v290
    %687 = vmatpush.msra.mxu0 %v286
    %688 = vmatpush.msra.mxu0 %v282
    %689 = vmatpush.msra.mxu0 %v278
    %690 = vmatpush.msra.mxu0 %v274
    %691 = vmatpush.msra.mxu0 %v270
    %692 = vmatpush.msra.mxu0 %v266
    %693 = vmatmul.f32.gmra.mxu0 %v604
    %v694 = vpop.f32.mrf.mxu0
    %v695 = vadd.f32 %v675, %v694
    %696 = vdwg.mxu0
    %697 = vmatpush.msra.mxu0 %v390
    %698 = vmatpush.msra.mxu0 %v386
    %699 = vmatpush.msra.mxu0 %v382
    %700 = vmatpush.msra.mxu0 %v378
    %701 = vmatpush.msra.mxu0 %v374
    %702 = vmatpush.msra.mxu0 %v370
    %703 = vmatpush.msra.mxu0 %v366
    %704 = vmatpush.msra.mxu0 %v362
    %705 = vmatpush.msra.mxu0 %v358
    %706 = vmatpush.msra.mxu0 %v354
    %707 = vmatpush.msra.mxu0 %v350
    %708 = vmatpush.msra.mxu0 %v346
    %709 = vmatpush.msra.mxu0 %v342
    %710 = vmatpush.msra.mxu0 %v338
    %711 = vmatpush.msra.mxu0 %v334
    %712 = vmatpush.msra.mxu0 %v330
    %713 = vmatmul.f32.gmra.mxu0 %v605
    %v714 = vpop.f32.mrf.mxu0
    %v715 = vadd.f32 %v695, %v714
    %716 = vdwg.mxu0
    %717 = vmatpush.msra.mxu0 %v454
    %718 = vmatpush.msra.mxu0 %v450
    %719 = vmatpush.msra.mxu0 %v446
    %720 = vmatpush.msra.mxu0 %v442
    %721 = vmatpush.msra.mxu0 %v438
    %722 = vmatpush.msra.mxu0 %v434
    %723 = vmatpush.msra.mxu0 %v430
    %724 = vmatpush.msra.mxu0 %v426
    %725 = vmatpush.msra.mxu0 %v422
    %726 = vmatpush.msra.mxu0 %v418
    %727 = vmatpush.msra.mxu0 %v414
    %728 = vmatpush.msra.mxu0 %v410
    %729 = vmatpush.msra.mxu0 %v406
    %730 = vmatpush.msra.mxu0 %v402
    %731 = vmatpush.msra.mxu0 %v398
    %732 = vmatpush.msra.mxu0 %v394
    %733 = vmatmul.f32.gmra.mxu0 %v606
    %v734 = vpop.f32.mrf.mxu0
    %v735 = vadd.f32 %v715, %v734
    %736 = vdwg.mxu0
    %737 = vmatpush.msra.mxu0 %v518
    %738 = vmatpush.msra.mxu0 %v514
    %739 = vmatpush.msra.mxu0 %v510
    %740 = vmatpush.msra.mxu0 %v506
    %741 = vmatpush.msra.mxu0 %v502
    %742 = vmatpush.msra.mxu0 %v498
    %743 = vmatpush.msra.mxu0 %v494
    %744 = vmatpush.msra.mxu0 %v490
    %745 = vmatpush.msra.mxu0 %v486
    %746 = vmatpush.msra.mxu0 %v482
    %747 = vmatpush.msra.mxu0 %v478
    %748 = vmatpush.msra.mxu0 %v474
    %749 = vmatpush.msra.mxu0 %v470
    %750 = vmatpush.msra.mxu0 %v466
    %751 = vmatpush.msra.mxu0 %v462
    %752 = vmatpush.msra.mxu0 %v458
    %753 = vmatmul.f32.gmra.mxu0 %v607
    %v754 = vpop.f32.mrf.mxu0
    %v755 = vadd.f32 %v735, %v754
    %756 = vdwg.mxu0
    %757 = vmatpush.msra.mxu0 %v582
    %758 = vmatpush.msra.mxu0 %v578
    %759 = vmatpush.msra.mxu0 %v574
    %760 = vmatpush.msra.mxu0 %v570
    %761 = vmatpush.msra.mxu0 %v566
    %762 = vmatpush.msra.mxu0 %v562
    %763 = vmatpush.msra.mxu0 %v558
    %764 = vmatpush.msra.mxu0 %v554
    %765 = vmatpush.msra.mxu0 %v550
    %766 = vmatpush.msra.mxu0 %v546
    %767 = vmatpush.msra.mxu0 %v542
    %768 = vmatpush.msra.mxu0 %v538
    %769 = vmatpush.msra.mxu0 %v534
    %770 = vmatpush.msra.mxu0 %v530
    %771 = vmatpush.msra.mxu0 %v526
    %772 = vmatpush.msra.mxu0 %v522
    %773 = vmatmul.f32.gmra.mxu0 %v608
    %v774 = vpop.f32.mrf.mxu0
    %v775 = vadd.f32 %v755, %v774
    %776 = vdwg.mxu0
    %777 = vmatpush.msra.mxu0 %v135
    %778 = vmatpush.msra.mxu0 %v131
    %779 = vmatpush.msra.mxu0 %v127
    %780 = vmatpush.msra.mxu0 %v123
    %781 = vmatpush.msra.mxu0 %v119
    %782 = vmatpush.msra.mxu0 %v115
    %783 = vmatpush.msra.mxu0 %v111
    %784 = vmatpush.msra.mxu0 %v107
    %785 = vmatpush.msra.mxu0 %v103
    %786 = vmatpush.msra.mxu0 %v99
    %787 = vmatpush.msra.mxu0 %v95
    %788 = vmatpush.msra.mxu0 %v91
    %789 = vmatpush.msra.mxu0 %v87
    %790 = vmatpush.msra.mxu0 %v83
    %791 = vmatpush.msra.mxu0 %v79
    %792 = vmatpush.msra.mxu0 %v75
    %793 = vmatmul.f32.gmra.mxu0 %v601
    %v794 = vpop.f32.mrf.mxu0
    %v795 = vadd.f32 %v589, %v794
    %796 = vdwg.mxu0
    %797 = vmatpush.msra.mxu0 %v199
    %798 = vmatpush.msra.mxu0 %v195
    %799 = vmatpush.msra.mxu0 %v191
    %800 = vmatpush.msra.mxu0 %v187
    %801 = vmatpush.msra.mxu0 %v183
    %802 = vmatpush.msra.mxu0 %v179
    %803 = vmatpush.msra.mxu0 %v175
    %804 = vmatpush.msra.mxu0 %v171
    %805 = vmatpush.msra.mxu0 %v167
    %806 = vmatpush.msra.mxu0 %v163
    %807 = vmatpush.msra.mxu0 %v159
    %808 = vmatpush.msra.mxu0 %v155
    %809 = vmatpush.msra.mxu0 %v151
    %810 = vmatpush.msra.mxu0 %v147
    %811 = vmatpush.msra.mxu0 %v143
    %812 = vmatpush.msra.mxu0 %v139
    %813 = vmatmul.f32.gmra.mxu0 %v602
    %v814 = vpop.f32.mrf.mxu0
    %v815 = vadd.f32 %v795, %v814
    %816 = vdwg.mxu0
    %817 = vmatpush.msra.mxu0 %v263
    %818 = vmatpush.msra.mxu0 %v259
    %819 = vmatpush.msra.mxu0 %v255
    %820 = vmatpush.msra.mxu0 %v251
    %821 = vmatpush.msra.mxu0 %v247
    %822 = vmatpush.msra.mxu0 %v243
    %823 = vmatpush.msra.mxu0 %v239
    %824 = vmatpush.msra.mxu0 %v235
    %825 = vmatpush.msra.mxu0 %v231
    %826 = vmatpush.msra.mxu0 %v227
    %827 = vmatpush.msra.mxu0 %v223
    %828 = vmatpush.msra.mxu0 %v219
    %829 = vmatpush.msra.mxu0 %v215
    %830 = vmatpush.msra.mxu0 %v211
    %831 = vmatpush.msra.mxu0 %v207
    %832 = vmatpush.msra.mxu0 %v203
    %833 = vmatmul.f32.gmra.mxu0 %v603
    %v834 = vpop.f32.mrf.mxu0
    %v835 = vadd.f32 %v815, %v834
    %836 = vdwg.mxu0
    %837 = vmatpush.msra.mxu0 %v327
    %838 = vmatpush.msra.mxu0 %v323
    %839 = vmatpush.msra.mxu0 %v319
    %840 = vmatpush.msra.mxu0 %v315
    %841 = vmatpush.msra.mxu0 %v311
    %842 = vmatpush.msra.mxu0 %v307
    %843 = vmatpush.msra.mxu0 %v303
    %844 = vmatpush.msra.mxu0 %v299
    %845 = vmatpush.msra.mxu0 %v295
    %846 = vmatpush.msra.mxu0 %v291
    %847 = vmatpush.msra.mxu0 %v287
    %848 = vmatpush.msra.mxu0 %v283
    %849 = vmatpush.msra.mxu0 %v279
    %850 = vmatpush.msra.mxu0 %v275
    %851 = vmatpush.msra.mxu0 %v271
    %852 = vmatpush.msra.mxu0 %v267
    %853 = vmatmul.f32.gmra.mxu0 %v604
    %v854 = vpop.f32.mrf.mxu0
    %v855 = vadd.f32 %v835, %v854
    %856 = vdwg.mxu0
    %857 = vmatpush.msra.mxu0 %v391
    %858 = vmatpush.msra.mxu0 %v387
    %859 = vmatpush.msra.mxu0 %v383
    %860 = vmatpush.msra.mxu0 %v379
    %861 = vmatpush.msra.mxu0 %v375
    %862 = vmatpush.msra.mxu0 %v371
    %863 = vmatpush.msra.mxu0 %v367
    %864 = vmatpush.msra.mxu0 %v363
    %865 = vmatpush.msra.mxu0 %v359
    %866 = vmatpush.msra.mxu0 %v355
    %867 = vmatpush.msra.mxu0 %v351
    %868 = vmatpush.msra.mxu0 %v347
    %869 = vmatpush.msra.mxu0 %v343
    %870 = vmatpush.msra.mxu0 %v339
    %871 = vmatpush.msra.mxu0 %v335
    %872 = vmatpush.msra.mxu0 %v331
    %873 = vmatmul.f32.gmra.mxu0 %v605
    %v874 = vpop.f32.mrf.mxu0
    %v875 = vadd.f32 %v855, %v874
    %876 = vdwg.mxu0
    %877 = vmatpush.msra.mxu0 %v455
    %878 = vmatpush.msra.mxu0 %v451
    %879 = vmatpush.msra.mxu0 %v447
    %880 = vmatpush.msra.mxu0 %v443
    %881 = vmatpush.msra.mxu0 %v439
    %882 = vmatpush.msra.mxu0 %v435
    %883 = vmatpush.msra.mxu0 %v431
    %884 = vmatpush.msra.mxu0 %v427
    %885 = vmatpush.msra.mxu0 %v423
    %886 = vmatpush.msra.mxu0 %v419
    %887 = vmatpush.msra.mxu0 %v415
    %888 = vmatpush.msra.mxu0 %v411
    %889 = vmatpush.msra.mxu0 %v407
    %890 = vmatpush.msra.mxu0 %v403
    %891 = vmatpush.msra.mxu0 %v399
    %892 = vmatpush.msra.mxu0 %v395
    %893 = vmatmul.f32.gmra.mxu0 %v606
    %v894 = vpop.f32.mrf.mxu0
    %v895 = vadd.f32 %v875, %v894
    %896 = vdwg.mxu0
    %897 = vmatpush.msra.mxu0 %v519
    %898 = vmatpush.msra.mxu0 %v515
    %899 = vmatpush.msra.mxu0 %v511
    %900 = vmatpush.msra.mxu0 %v507
    %901 = vmatpush.msra.mxu0 %v503
    %902 = vmatpush.msra.mxu0 %v499
    %903 = vmatpush.msra.mxu0 %v495
    %904 = vmatpush.msra.mxu0 %v491
    %905 = vmatpush.msra.mxu0 %v487
    %906 = vmatpush.msra.mxu0 %v483
    %907 = vmatpush.msra.mxu0 %v479
    %908 = vmatpush.msra.mxu0 %v475
    %909 = vmatpush.msra.mxu0 %v471
    %910 = vmatpush.msra.mxu0 %v467
    %911 = vmatpush.msra.mxu0 %v463
    %912 = vmatpush.msra.mxu0 %v459
    %913 = vmatmul.f32.gmra.mxu0 %v607
    %v914 = vpop.f32.mrf.mxu0
    %v915 = vadd.f32 %v895, %v914
    %916 = vdwg.mxu0
    %917 = vmatpush.msra.mxu0 %v583
    %918 = vmatpush.msra.mxu0 %v579
    %919 = vmatpush.msra.mxu0 %v575
    %920 = vmatpush.msra.mxu0 %v571
    %921 = vmatpush.msra.mxu0 %v567
    %922 = vmatpush.msra.mxu0 %v563
    %923 = vmatpush.msra.mxu0 %v559
    %924 = vmatpush.msra.mxu0 %v555
    %925 = vmatpush.msra.mxu0 %v551
    %926 = vmatpush.msra.mxu0 %v547
    %927 = vmatpush.msra.mxu0 %v543
    %928 = vmatpush.msra.mxu0 %v539
    %929 = vmatpush.msra.mxu0 %v535
    %930 = vmatpush.msra.mxu0 %v531
    %931 = vmatpush.msra.mxu0 %v527
    %932 = vmatpush.msra.mxu0 %v523
    %933 = vmatmul.f32.gmra.mxu0 %v608
    %v934 = vpop.f32.mrf.mxu0
    %v935 = vadd.f32 %v915, %v934
    %936 = vdwg.mxu0
    %937 = vmatpush.msra.mxu0 %v136
    %938 = vmatpush.msra.mxu0 %v132
    %939 = vmatpush.msra.mxu0 %v128
    %940 = vmatpush.msra.mxu0 %v124
    %941 = vmatpush.msra.mxu0 %v120
    %942 = vmatpush.msra.mxu0 %v116
    %943 = vmatpush.msra.mxu0 %v112
    %944 = vmatpush.msra.mxu0 %v108
    %945 = vmatpush.msra.mxu0 %v104
    %946 = vmatpush.msra.mxu0 %v100
    %947 = vmatpush.msra.mxu0 %v96
    %948 = vmatpush.msra.mxu0 %v92
    %949 = vmatpush.msra.mxu0 %v88
    %950 = vmatpush.msra.mxu0 %v84
    %951 = vmatpush.msra.mxu0 %v80
    %952 = vmatpush.msra.mxu0 %v76
    %953 = vmatmul.f32.gmra.mxu0 %v601
    %v954 = vpop.f32.mrf.mxu0
    %v955 = vadd.f32 %v590, %v954
    %956 = vdwg.mxu0
    %957 = vmatpush.msra.mxu0 %v200
    %958 = vmatpush.msra.mxu0 %v196
    %959 = vmatpush.msra.mxu0 %v192
    %960 = vmatpush.msra.mxu0 %v188
    %961 = vmatpush.msra.mxu0 %v184
    %962 = vmatpush.msra.mxu0 %v180
    %963 = vmatpush.msra.mxu0 %v176
    %964 = vmatpush.msra.mxu0 %v172
    %965 = vmatpush.msra.mxu0 %v168
    %966 = vmatpush.msra.mxu0 %v164
    %967 = vmatpush.msra.mxu0 %v160
    %968 = vmatpush.msra.mxu0 %v156
    %969 = vmatpush.msra.mxu0 %v152
    %970 = vmatpush.msra.mxu0 %v148
    %971 = vmatpush.msra.mxu0 %v144
    %972 = vmatpush.msra.mxu0 %v140
    %973 = vmatmul.f32.gmra.mxu0 %v602
    %v974 = vpop.f32.mrf.mxu0
    %v975 = vadd.f32 %v955, %v974
    %976 = vdwg.mxu0
    %977 = vmatpush.msra.mxu0 %v264
    %978 = vmatpush.msra.mxu0 %v260
    %979 = vmatpush.msra.mxu0 %v256
    %980 = vmatpush.msra.mxu0 %v252
    %981 = vmatpush.msra.mxu0 %v248
    %982 = vmatpush.msra.mxu0 %v244
    %983 = vmatpush.msra.mxu0 %v240
    %984 = vmatpush.msra.mxu0 %v236
    %985 = vmatpush.msra.mxu0 %v232
    %986 = vmatpush.msra.mxu0 %v228
    %987 = vmatpush.msra.mxu0 %v224
    %988 = vmatpush.msra.mxu0 %v220
    %989 = vmatpush.msra.mxu0 %v216
    %990 = vmatpush.msra.mxu0 %v212
    %991 = vmatpush.msra.mxu0 %v208
    %992 = vmatpush.msra.mxu0 %v204
    %993 = vmatmul.f32.gmra.mxu0 %v603
    %v994 = vpop.f32.mrf.mxu0
    %v995 = vadd.f32 %v975, %v994
    %996 = vdwg.mxu0
    %997 = vmatpush.msra.mxu0 %v328
    %998 = vmatpush.msra.mxu0 %v324
    %999 = vmatpush.msra.mxu0 %v320
    %1000 = vmatpush.msra.mxu0 %v316
    %1001 = vmatpush.msra.mxu0 %v312
    %1002 = vmatpush.msra.mxu0 %v308
    %1003 = vmatpush.msra.mxu0 %v304
    %1004 = vmatpush.msra.mxu0 %v300
    %1005 = vmatpush.msra.mxu0 %v296
    %1006 = vmatpush.msra.mxu0 %v292
    %1007 = vmatpush.msra.mxu0 %v288
    %1008 = vmatpush.msra.mxu0 %v284
    %1009 = vmatpush.msra.mxu0 %v280
    %1010 = vmatpush.msra.mxu0 %v276
    %1011 = vmatpush.msra.mxu0 %v272
    %1012 = vmatpush.msra.mxu0 %v268
    %1013 = vmatmul.f32.gmra.mxu0 %v604
    %v1014 = vpop.f32.mrf.mxu0
    %v1015 = vadd.f32 %v995, %v1014
    %1016 = vdwg.mxu0
    %1017 = vmatpush.msra.mxu0 %v392
    %1018 = vmatpush.msra.mxu0 %v388
    %1019 = vmatpush.msra.mxu0 %v384
    %1020 = vmatpush.msra.mxu0 %v380
    %1021 = vmatpush.msra.mxu0 %v376
    %1022 = vmatpush.msra.mxu0 %v372
    %1023 = vmatpush.msra.mxu0 %v368
    %1024 = vmatpush.msra.mxu0 %v364
    %1025 = vmatpush.msra.mxu0 %v360
    %1026 = vmatpush.msra.mxu0 %v356
    %1027 = vmatpush.msra.mxu0 %v352
    %1028 = vmatpush.msra.mxu0 %v348
    %1029 = vmatpush.msra.mxu0 %v344
    %1030 = vmatpush.msra.mxu0 %v340
    %1031 = vmatpush.msra.mxu0 %v336
    %1032 = vmatpush.msra.mxu0 %v332
    %1033 = vmatmul.f32.gmra.mxu0 %v605
    %v1034 = vpop.f32.mrf.mxu0
    %v1035 = vadd.f32 %v1015, %v1034
    %1036 = vdwg.mxu0
    %1037 = vmatpush.msra.mxu0 %v456
    %1038 = vmatpush.msra.mxu0 %v452
    %1039 = vmatpush.msra.mxu0 %v448
    %1040 = vmatpush.msra.mxu0 %v444
    %1041 = vmatpush.msra.mxu0 %v440
    %1042 = vmatpush.msra.mxu0 %v436
    %1043 = vmatpush.msra.mxu0 %v432
    %1044 = vmatpush.msra.mxu0 %v428
    %1045 = vmatpush.msra.mxu0 %v424
    %1046 = vmatpush.msra.mxu0 %v420
    %1047 = vmatpush.msra.mxu0 %v416
    %1048 = vmatpush.msra.mxu0 %v412
    %1049 = vmatpush.msra.mxu0 %v408
    %1050 = vmatpush.msra.mxu0 %v404
    %1051 = vmatpush.msra.mxu0 %v400
    %1052 = vmatpush.msra.mxu0 %v396
    %1053 = vmatmul.f32.gmra.mxu0 %v606
    %v1054 = vpop.f32.mrf.mxu0
    %v1055 = vadd.f32 %v1035, %v1054
    %1056 = vdwg.mxu0
    %1057 = vmatpush.msra.mxu0 %v520
    %1058 = vmatpush.msra.mxu0 %v516
    %1059 = vmatpush.msra.mxu0 %v512
    %1060 = vmatpush.msra.mxu0 %v508
    %1061 = vmatpush.msra.mxu0 %v504
    %1062 = vmatpush.msra.mxu0 %v500
    %1063 = vmatpush.msra.mxu0 %v496
    %1064 = vmatpush.msra.mxu0 %v492
    %1065 = vmatpush.msra.mxu0 %v488
    %1066 = vmatpush.msra.mxu0 %v484
    %1067 = vmatpush.msra.mxu0 %v480
    %1068 = vmatpush.msra.mxu0 %v476
    %1069 = vmatpush.msra.mxu0 %v472
    %1070 = vmatpush.msra.mxu0 %v468
    %1071 = vmatpush.msra.mxu0 %v464
    %1072 = vmatpush.msra.mxu0 %v460
    %1073 = vmatmul.f32.gmra.mxu0 %v607
    %v1074 = vpop.f32.mrf.mxu0
    %v1075 = vadd.f32 %v1055, %v1074
    %1076 = vdwg.mxu0
    %1077 = vmatpush.msra.mxu0 %v584
    %1078 = vmatpush.msra.mxu0 %v580
    %1079 = vmatpush.msra.mxu0 %v576
    %1080 = vmatpush.msra.mxu0 %v572
    %1081 = vmatpush.msra.mxu0 %v568
    %1082 = vmatpush.msra.mxu0 %v564
    %1083 = vmatpush.msra.mxu0 %v560
    %1084 = vmatpush.msra.mxu0 %v556
    %1085 = vmatpush.msra.mxu0 %v552
    %1086 = vmatpush.msra.mxu0 %v548
    %1087 = vmatpush.msra.mxu0 %v544
    %1088 = vmatpush.msra.mxu0 %v540
    %1089 = vmatpush.msra.mxu0 %v536
    %1090 = vmatpush.msra.mxu0 %v532
    %1091 = vmatpush.msra.mxu0 %v528
    %1092 = vmatpush.msra.mxu0 %v524
    %1093 = vmatmul.f32.gmra.mxu0 %v608
    %v1094 = vpop.f32.mrf.mxu0
    %v1095 = vadd.f32 %v1075, %v1094
    %1096 = vdwg.mxu0
    %1097 = vmatpush.msra.mxu0 %v137
    %1098 = vmatpush.msra.mxu0 %v133
    %1099 = vmatpush.msra.mxu0 %v129
    %1100 = vmatpush.msra.mxu0 %v125
    %1101 = vmatpush.msra.mxu0 %v121
    %1102 = vmatpush.msra.mxu0 %v117
    %1103 = vmatpush.msra.mxu0 %v113
    %1104 = vmatpush.msra.mxu0 %v109
    %1105 = vmatpush.msra.mxu0 %v105
    %1106 = vmatpush.msra.mxu0 %v101
    %1107 = vmatpush.msra.mxu0 %v97
    %1108 = vmatpush.msra.mxu0 %v93
    %1109 = vmatpush.msra.mxu0 %v89
    %1110 = vmatpush.msra.mxu0 %v85
    %1111 = vmatpush.msra.mxu0 %v81
    %1112 = vmatpush.msra.mxu0 %v77
    %1113 = vmatmul.f32.gmra.mxu0 %v601
    %v1114 = vpop.f32.mrf.mxu0
    %v1115 = vadd.f32 %v591, %v1114
    %1116 = vdwg.mxu0
    %1117 = vmatpush.msra.mxu0 %v201
    %1118 = vmatpush.msra.mxu0 %v197
    %1119 = vmatpush.msra.mxu0 %v193
    %1120 = vmatpush.msra.mxu0 %v189
    %1121 = vmatpush.msra.mxu0 %v185
    %1122 = vmatpush.msra.mxu0 %v181
    %1123 = vmatpush.msra.mxu0 %v177
    %1124 = vmatpush.msra.mxu0 %v173
    %1125 = vmatpush.msra.mxu0 %v169
    %1126 = vmatpush.msra.mxu0 %v165
    %1127 = vmatpush.msra.mxu0 %v161
    %1128 = vmatpush.msra.mxu0 %v157
    %1129 = vmatpush.msra.mxu0 %v153
    %1130 = vmatpush.msra.mxu0 %v149
    %1131 = vmatpush.msra.mxu0 %v145
    %1132 = vmatpush.msra.mxu0 %v141
    %1133 = vmatmul.f32.gmra.mxu0 %v602
    %v1134 = vpop.f32.mrf.mxu0
    %v1135 = vadd.f32 %v1115, %v1134
    %1136 = vdwg.mxu0
    %1137 = vmatpush.msra.mxu0 %v265
    %1138 = vmatpush.msra.mxu0 %v261
    %1139 = vmatpush.msra.mxu0 %v257
    %1140 = vmatpush.msra.mxu0 %v253
    %1141 = vmatpush.msra.mxu0 %v249
    %1142 = vmatpush.msra.mxu0 %v245
    %1143 = vmatpush.msra.mxu0 %v241
    %1144 = vmatpush.msra.mxu0 %v237
    %1145 = vmatpush.msra.mxu0 %v233
    %1146 = vmatpush.msra.mxu0 %v229
    %1147 = vmatpush.msra.mxu0 %v225
    %1148 = vmatpush.msra.mxu0 %v221
    %1149 = vmatpush.msra.mxu0 %v217
    %1150 = vmatpush.msra.mxu0 %v213
    %1151 = vmatpush.msra.mxu0 %v209
    %1152 = vmatpush.msra.mxu0 %v205
    %1153 = vmatmul.f32.gmra.mxu0 %v603
    %v1154 = vpop.f32.mrf.mxu0
    %v1155 = vadd.f32 %v1135, %v1154
    %1156 = vdwg.mxu0
    %1157 = vmatpush.msra.mxu0 %v329
    %1158 = vmatpush.msra.mxu0 %v325
    %1159 = vmatpush.msra.mxu0 %v321
    %1160 = vmatpush.msra.mxu0 %v317
    %1161 = vmatpush.msra.mxu0 %v313
    %1162 = vmatpush.msra.mxu0 %v309
    %1163 = vmatpush.msra.mxu0 %v305
    %1164 = vmatpush.msra.mxu0 %v301
    %1165 = vmatpush.msra.mxu0 %v297
    %1166 = vmatpush.msra.mxu0 %v293
    %1167 = vmatpush.msra.mxu0 %v289
    %1168 = vmatpush.msra.mxu0 %v285
    %1169 = vmatpush.msra.mxu0 %v281
    %1170 = vmatpush.msra.mxu0 %v277
    %1171 = vmatpush.msra.mxu0 %v273
    %1172 = vmatpush.msra.mxu0 %v269
    %1173 = vmatmul.f32.gmra.mxu0 %v604
    %v1174 = vpop.f32.mrf.mxu0
    %v1175 = vadd.f32 %v1155, %v1174
    %1176 = vdwg.mxu0
    %1177 = vmatpush.msra.mxu0 %v393
    %1178 = vmatpush.msra.mxu0 %v389
    %1179 = vmatpush.msra.mxu0 %v385
    %1180 = vmatpush.msra.mxu0 %v381
    %1181 = vmatpush.msra.mxu0 %v377
    %1182 = vmatpush.msra.mxu0 %v373
    %1183 = vmatpush.msra.mxu0 %v369
    %1184 = vmatpush.msra.mxu0 %v365
    %1185 = vmatpush.msra.mxu0 %v361
    %1186 = vmatpush.msra.mxu0 %v357
    %1187 = vmatpush.msra.mxu0 %v353
    %1188 = vmatpush.msra.mxu0 %v349
    %1189 = vmatpush.msra.mxu0 %v345
    %1190 = vmatpush.msra.mxu0 %v341
    %1191 = vmatpush.msra.mxu0 %v337
    %1192 = vmatpush.msra.mxu0 %v333
    %1193 = vmatmul.f32.gmra.mxu0 %v605
    %v1194 = vpop.f32.mrf.mxu0
    %v1195 = vadd.f32 %v1175, %v1194
    %1196 = vdwg.mxu0
    %1197 = vmatpush.msra.mxu0 %v457
    %1198 = vmatpush.msra.mxu0 %v453
    %1199 = vmatpush.msra.mxu0 %v449
    %1200 = vmatpush.msra.mxu0 %v445
    %1201 = vmatpush.msra.mxu0 %v441
    %1202 = vmatpush.msra.mxu0 %v437
    %1203 = vmatpush.msra.mxu0 %v433
    %1204 = vmatpush.msra.mxu0 %v429
    %1205 = vmatpush.msra.mxu0 %v425
    %1206 = vmatpush.msra.mxu0 %v421
    %1207 = vmatpush.msra.mxu0 %v417
    %1208 = vmatpush.msra.mxu0 %v413
    %1209 = vmatpush.msra.mxu0 %v409
    %1210 = vmatpush.msra.mxu0 %v405
    %1211 = vmatpush.msra.mxu0 %v401
    %1212 = vmatpush.msra.mxu0 %v397
    %1213 = vmatmul.f32.gmra.mxu0 %v606
    %v1214 = vpop.f32.mrf.mxu0
    %v1215 = vadd.f32 %v1195, %v1214
    %1216 = vdwg.mxu0
    %1217 = vmatpush.msra.mxu0 %v521
    %1218 = vmatpush.msra.mxu0 %v517
    %1219 = vmatpush.msra.mxu0 %v513
    %1220 = vmatpush.msra.mxu0 %v509
    %1221 = vmatpush.msra.mxu0 %v505
    %1222 = vmatpush.msra.mxu0 %v501
    %1223 = vmatpush.msra.mxu0 %v497
    %1224 = vmatpush.msra.mxu0 %v493
    %1225 = vmatpush.msra.mxu0 %v489
    %1226 = vmatpush.msra.mxu0 %v485
    %1227 = vmatpush.msra.mxu0 %v481
    %1228 = vmatpush.msra.mxu0 %v477
    %1229 = vmatpush.msra.mxu0 %v473
    %1230 = vmatpush.msra.mxu0 %v469
    %1231 = vmatpush.msra.mxu0 %v465
    %1232 = vmatpush.msra.mxu0 %v461
    %1233 = vmatmul.f32.gmra.mxu0 %v607
    %v1234 = vpop.f32.mrf.mxu0
    %v1235 = vadd.f32 %v1215, %v1234
    %1236 = vdwg.mxu0
    %1237 = vmatpush.msra.mxu0 %v585
    %1238 = vmatpush.msra.mxu0 %v581
    %1239 = vmatpush.msra.mxu0 %v577
    %1240 = vmatpush.msra.mxu0 %v573
    %1241 = vmatpush.msra.mxu0 %v569
    %1242 = vmatpush.msra.mxu0 %v565
    %1243 = vmatpush.msra.mxu0 %v561
    %1244 = vmatpush.msra.mxu0 %v557
    %1245 = vmatpush.msra.mxu0 %v553
    %1246 = vmatpush.msra.mxu0 %v549
    %1247 = vmatpush.msra.mxu0 %v545
    %1248 = vmatpush.msra.mxu0 %v541
    %1249 = vmatpush.msra.mxu0 %v537
    %1250 = vmatpush.msra.mxu0 %v533
    %1251 = vmatpush.msra.mxu0 %v529
    %1252 = vmatpush.msra.mxu0 %v525
    %1253 = vmatmul.f32.gmra.mxu0 %v608
    %v1254 = vpop.f32.mrf.mxu0
    %v1255 = vadd.f32 %v1235, %v1254
    %1256 = vdwg.mxu0
    %vm1257 = vcmask 1041408
    %v1258 = vsel %vm1257, %v775, 0.0
    %v1259 = vrot.slane %v1258, 4
    %v1260 = vadd.f32 %v1258, %v1259
    %v1261 = vrot.slane %v1260, 2
    %v1262 = vadd.f32 %v1260, %v1261
    %v1263 = vrot.slane %v1262, 1
    %v1264 = vadd.f32 %v1262, %v1263
    %v1265 = vsel %vm1257, %v935, 0.0
    %v1266 = vrot.slane %v1265, 4
    %v1267 = vadd.f32 %v1265, %v1266
    %v1268 = vrot.slane %v1267, 2
    %v1269 = vadd.f32 %v1267, %v1268
    %v1270 = vrot.slane %v1269, 1
    %v1271 = vadd.f32 %v1269, %v1270
    %v1272 = vsel %vm1257, %v1095, 0.0
    %v1273 = vrot.slane %v1272, 4
    %v1274 = vadd.f32 %v1272, %v1273
    %v1275 = vrot.slane %v1274, 2
    %v1276 = vadd.f32 %v1274, %v1275
    %v1277 = vrot.slane %v1276, 1
    %v1278 = vadd.f32 %v1276, %v1277
    %v1279 = vsel %vm1257, %v1255, 0.0
    %v1280 = vrot.slane %v1279, 4
    %v1281 = vadd.f32 %v1279, %v1280
    %v1282 = vrot.slane %v1281, 2
    %v1283 = vadd.f32 %v1281, %v1282
    %v1284 = vrot.slane %v1283, 1
    %v1285 = vadd.f32 %v1283, %v1284
    %v1286 = vld [vmem:[%s5] sm:$0xff]
    %v1287 = vld [vmem:[%s5 + $0x8] sm:$0xff]
    %v1288 = vld [vmem:[%s5 + $0x10] sm:$0xff]
    %v1289 = vld [vmem:[%s5 + $0x18] sm:$0xff]
    %v1290 = vld [vmem:[%s5 + $0x20] sm:$0xff]
    %v1291 = vld [vmem:[%s5 + $0x28] sm:$0xff]
    %v1292 = vld [vmem:[%s5 + $0x30] sm:$0xff]
    %v1293 = vld [vmem:[%s5 + $0x38] sm:$0xff]
    %v1294 = vld [vmem:[%s5 + $0x40] sm:$0xff]
    %v1295 = vld [vmem:[%s5 + $0x48] sm:$0xff]
    %v1296 = vld [vmem:[%s5 + $0x50] sm:$0xff]
    %v1297 = vld [vmem:[%s5 + $0x58] sm:$0xff]
    %v1298 = vld [vmem:[%s5 + $0x60] sm:$0xff]
    %v1299 = vld [vmem:[%s5 + $0x68] sm:$0xff]
    %v1300 = vld [vmem:[%s5 + $0x70] sm:$0xff]
    %v1301 = vld [vmem:[%s5 + $0x78] sm:$0xff]
    %v1302 = vld [vmem:[%s5 + $0x80] sm:$0xff]
    %v1303 = vld [vmem:[%s5 + $0x88] sm:$0xff]
    %v1304 = vld [vmem:[%s5 + $0x90] sm:$0xff]
    %v1305 = vld [vmem:[%s5 + $0x98] sm:$0xff]
    %v1306 = vld [vmem:[%s5 + $0xa0] sm:$0xff]
    %v1307 = vld [vmem:[%s5 + $0xa8] sm:$0xff]
    %v1308 = vld [vmem:[%s5 + $0xb0] sm:$0xff]
    %v1309 = vld [vmem:[%s5 + $0xb8] sm:$0xff]
    %v1310 = vld [vmem:[%s5 + $0xc0] sm:$0xff]
    %v1311 = vld [vmem:[%s5 + $0xc8] sm:$0xff]
    %v1312 = vld [vmem:[%s5 + $0xd0] sm:$0xff]
    %v1313 = vld [vmem:[%s5 + $0xd8] sm:$0xff]
    %v1314 = vld [vmem:[%s5 + $0xe0] sm:$0xff]
    %v1315 = vld [vmem:[%s5 + $0xe8] sm:$0xff]
    %v1316 = vld [vmem:[%s5 + $0xf0] sm:$0xff]
    %v1317 = vld [vmem:[%s5 + $0xf8] sm:$0xff]
    %v1318 = vld [vmem:[%s5 + $0x100] sm:$0xff]
    %v1319 = vld [vmem:[%s5 + $0x108] sm:$0xff]
    %v1320 = vld [vmem:[%s5 + $0x110] sm:$0xff]
    %v1321 = vld [vmem:[%s5 + $0x118] sm:$0xff]
    %v1322 = vld [vmem:[%s5 + $0x120] sm:$0xff]
    %v1323 = vld [vmem:[%s5 + $0x128] sm:$0xff]
    %v1324 = vld [vmem:[%s5 + $0x130] sm:$0xff]
    %v1325 = vld [vmem:[%s5 + $0x138] sm:$0xff]
    %v1326 = vld [vmem:[%s5 + $0x140] sm:$0xff]
    %v1327 = vld [vmem:[%s5 + $0x148] sm:$0xff]
    %v1328 = vld [vmem:[%s5 + $0x150] sm:$0xff]
    %v1329 = vld [vmem:[%s5 + $0x158] sm:$0xff]
    %v1330 = vld [vmem:[%s5 + $0x160] sm:$0xff]
    %v1331 = vld [vmem:[%s5 + $0x168] sm:$0xff]
    %v1332 = vld [vmem:[%s5 + $0x170] sm:$0xff]
    %v1333 = vld [vmem:[%s5 + $0x178] sm:$0xff]
    %v1334 = vld [vmem:[%s5 + $0x180] sm:$0xff]
    %v1335 = vld [vmem:[%s5 + $0x188] sm:$0xff]
    %v1336 = vld [vmem:[%s5 + $0x190] sm:$0xff]
    %v1337 = vld [vmem:[%s5 + $0x198] sm:$0xff]
    %v1338 = vld [vmem:[%s5 + $0x1a0] sm:$0xff]
    %v1339 = vld [vmem:[%s5 + $0x1a8] sm:$0xff]
    %v1340 = vld [vmem:[%s5 + $0x1b0] sm:$0xff]
    %v1341 = vld [vmem:[%s5 + $0x1b8] sm:$0xff]
    %v1342 = vld [vmem:[%s5 + $0x1c0] sm:$0xff]
    %v1343 = vld [vmem:[%s5 + $0x1c8] sm:$0xff]
    %v1344 = vld [vmem:[%s5 + $0x1d0] sm:$0xff]
    %v1345 = vld [vmem:[%s5 + $0x1d8] sm:$0xff]
    %v1346 = vld [vmem:[%s5 + $0x1e0] sm:$0xff]
    %v1347 = vld [vmem:[%s5 + $0x1e8] sm:$0xff]
    %v1348 = vld [vmem:[%s5 + $0x1f0] sm:$0xff]
    %v1349 = vld [vmem:[%s5 + $0x1f8] sm:$0xff]
    %1350 = vmatpush.msra.mxu0 %v1301
    %1351 = vmatpush.msra.mxu0 %v1300
    %1352 = vmatpush.msra.mxu0 %v1299
    %1353 = vmatpush.msra.mxu0 %v1298
    %1354 = vmatpush.msra.mxu0 %v1297
    %1355 = vmatpush.msra.mxu0 %v1296
    %1356 = vmatpush.msra.mxu0 %v1295
    %1357 = vmatpush.msra.mxu0 %v1294
    %1358 = vmatpush.msra.mxu0 %v1293
    %1359 = vmatpush.msra.mxu0 %v1292
    %1360 = vmatpush.msra.mxu0 %v1291
    %1361 = vmatpush.msra.mxu0 %v1290
    %1362 = vmatpush.msra.mxu0 %v1289
    %1363 = vmatpush.msra.mxu0 %v1288
    %1364 = vmatpush.msra.mxu0 %v1287
    %1365 = vmatpush.msra.mxu0 %v1286
    %1366 = vmatmul.f32.gmra.mxu0 %v1264
    %v1367 = vpop.f32.mrf.mxu0
    %v1368 = vadd.f32 0.0, %v1367
    %1369 = vdwg.mxu0
    %1370 = vmatpush.msra.mxu0 %v1317
    %1371 = vmatpush.msra.mxu0 %v1316
    %1372 = vmatpush.msra.mxu0 %v1315
    %1373 = vmatpush.msra.mxu0 %v1314
    %1374 = vmatpush.msra.mxu0 %v1313
    %1375 = vmatpush.msra.mxu0 %v1312
    %1376 = vmatpush.msra.mxu0 %v1311
    %1377 = vmatpush.msra.mxu0 %v1310
    %1378 = vmatpush.msra.mxu0 %v1309
    %1379 = vmatpush.msra.mxu0 %v1308
    %1380 = vmatpush.msra.mxu0 %v1307
    %1381 = vmatpush.msra.mxu0 %v1306
    %1382 = vmatpush.msra.mxu0 %v1305
    %1383 = vmatpush.msra.mxu0 %v1304
    %1384 = vmatpush.msra.mxu0 %v1303
    %1385 = vmatpush.msra.mxu0 %v1302
    %1386 = vmatmul.f32.gmra.mxu0 %v1271
    %v1387 = vpop.f32.mrf.mxu0
    %v1388 = vadd.f32 %v1368, %v1387
    %1389 = vdwg.mxu0
    %1390 = vmatpush.msra.mxu0 %v1333
    %1391 = vmatpush.msra.mxu0 %v1332
    %1392 = vmatpush.msra.mxu0 %v1331
    %1393 = vmatpush.msra.mxu0 %v1330
    %1394 = vmatpush.msra.mxu0 %v1329
    %1395 = vmatpush.msra.mxu0 %v1328
    %1396 = vmatpush.msra.mxu0 %v1327
    %1397 = vmatpush.msra.mxu0 %v1326
    %1398 = vmatpush.msra.mxu0 %v1325
    %1399 = vmatpush.msra.mxu0 %v1324
    %1400 = vmatpush.msra.mxu0 %v1323
    %1401 = vmatpush.msra.mxu0 %v1322
    %1402 = vmatpush.msra.mxu0 %v1321
    %1403 = vmatpush.msra.mxu0 %v1320
    %1404 = vmatpush.msra.mxu0 %v1319
    %1405 = vmatpush.msra.mxu0 %v1318
    %1406 = vmatmul.f32.gmra.mxu0 %v1278
    %v1407 = vpop.f32.mrf.mxu0
    %v1408 = vadd.f32 %v1388, %v1407
    %1409 = vdwg.mxu0
    %1410 = vmatpush.msra.mxu0 %v1349
    %1411 = vmatpush.msra.mxu0 %v1348
    %1412 = vmatpush.msra.mxu0 %v1347
    %1413 = vmatpush.msra.mxu0 %v1346
    %1414 = vmatpush.msra.mxu0 %v1345
    %1415 = vmatpush.msra.mxu0 %v1344
    %1416 = vmatpush.msra.mxu0 %v1343
    %1417 = vmatpush.msra.mxu0 %v1342
    %1418 = vmatpush.msra.mxu0 %v1341
    %1419 = vmatpush.msra.mxu0 %v1340
    %1420 = vmatpush.msra.mxu0 %v1339
    %1421 = vmatpush.msra.mxu0 %v1338
    %1422 = vmatpush.msra.mxu0 %v1337
    %1423 = vmatpush.msra.mxu0 %v1336
    %1424 = vmatpush.msra.mxu0 %v1335
    %1425 = vmatpush.msra.mxu0 %v1334
    %1426 = vmatmul.f32.gmra.mxu0 %v1285
    %v1427 = vpop.f32.mrf.mxu0
    %v1428 = vadd.f32 %v1408, %v1427
    %1429 = vdwg.mxu0
    %v1430 = vmul.f32 %v1428, 0.0078125
    %v1431 = vld [vmem:[%s6] sm:$0xff]
    %v1432 = vld [vmem:[%s6 + $0x8] sm:$0xff]
    %v1433 = vld [vmem:[%s6 + $0x10] sm:$0xff]
    %v1434 = vld [vmem:[%s6 + $0x18] sm:$0xff]
    %vm1435 = vcmask 64512
    %v1437 = vsel %vm1435, %v1430, 0
    %1439 = vmatpush.msra.mxu0 0.0
    %1440 = vmatpush.msra.mxu0 0.0
    %1441 = vmatpush.msra.mxu0 0.0
    %1442 = vmatpush.msra.mxu0 0.0
    %1443 = vmatpush.msra.mxu0 0.0
    %1444 = vmatpush.msra.mxu0 0.0
    %1445 = vmatpush.msra.mxu0 0.0
    %1446 = vmatpush.msra.mxu0 0.0
    %1447 = vmatpush.msra.mxu0 0.0
    %1448 = vmatpush.msra.mxu0 0.0
    %1449 = vmatpush.msra.mxu0 0.0
    %1450 = vmatpush.msra.mxu0 0.0
    %1451 = vmatpush.msra.mxu0 0.0
    %1452 = vmatpush.msra.mxu0 0.0
    %1453 = vmatpush.msra.mxu0 0.0
    %1454 = vmatpush.msra.mxu0 %v1431
    %1455 = vmatmul.f32.gmra.mxu0 %v1437
    %v1456 = vpop.f32.mrf.mxu0
    %v1457 = vadd.f32 0.0, %v1456
    %1458 = vdwg.mxu0
    %1459 = vmatpush.msra.mxu0 0.0
    %1460 = vmatpush.msra.mxu0 0.0
    %1461 = vmatpush.msra.mxu0 0.0
    %1462 = vmatpush.msra.mxu0 0.0
    %1463 = vmatpush.msra.mxu0 0.0
    %1464 = vmatpush.msra.mxu0 0.0
    %1465 = vmatpush.msra.mxu0 0.0
    %1466 = vmatpush.msra.mxu0 0.0
    %1467 = vmatpush.msra.mxu0 0.0
    %1468 = vmatpush.msra.mxu0 0.0
    %1469 = vmatpush.msra.mxu0 0.0
    %1470 = vmatpush.msra.mxu0 0.0
    %1471 = vmatpush.msra.mxu0 0.0
    %1472 = vmatpush.msra.mxu0 0.0
    %1473 = vmatpush.msra.mxu0 0.0
    %1474 = vmatpush.msra.mxu0 %v1432
    %1475 = vmatmul.f32.gmra.mxu0 %v1437
    %v1476 = vpop.f32.mrf.mxu0
    %v1477 = vadd.f32 0.0, %v1476
    %1478 = vdwg.mxu0
    %1479 = vmatpush.msra.mxu0 0.0
    %1480 = vmatpush.msra.mxu0 0.0
    %1481 = vmatpush.msra.mxu0 0.0
    %1482 = vmatpush.msra.mxu0 0.0
    %1483 = vmatpush.msra.mxu0 0.0
    %1484 = vmatpush.msra.mxu0 0.0
    %1485 = vmatpush.msra.mxu0 0.0
    %1486 = vmatpush.msra.mxu0 0.0
    %1487 = vmatpush.msra.mxu0 0.0
    %1488 = vmatpush.msra.mxu0 0.0
    %1489 = vmatpush.msra.mxu0 0.0
    %1490 = vmatpush.msra.mxu0 0.0
    %1491 = vmatpush.msra.mxu0 0.0
    %1492 = vmatpush.msra.mxu0 0.0
    %1493 = vmatpush.msra.mxu0 0.0
    %1494 = vmatpush.msra.mxu0 %v1433
    %1495 = vmatmul.f32.gmra.mxu0 %v1437
    %v1496 = vpop.f32.mrf.mxu0
    %v1497 = vadd.f32 0.0, %v1496
    %1498 = vdwg.mxu0
    %1499 = vmatpush.msra.mxu0 0.0
    %1500 = vmatpush.msra.mxu0 0.0
    %1501 = vmatpush.msra.mxu0 0.0
    %1502 = vmatpush.msra.mxu0 0.0
    %1503 = vmatpush.msra.mxu0 0.0
    %1504 = vmatpush.msra.mxu0 0.0
    %1505 = vmatpush.msra.mxu0 0.0
    %1506 = vmatpush.msra.mxu0 0.0
    %1507 = vmatpush.msra.mxu0 0.0
    %1508 = vmatpush.msra.mxu0 0.0
    %1509 = vmatpush.msra.mxu0 0.0
    %1510 = vmatpush.msra.mxu0 0.0
    %1511 = vmatpush.msra.mxu0 0.0
    %1512 = vmatpush.msra.mxu0 0.0
    %1513 = vmatpush.msra.mxu0 0.0
    %1514 = vmatpush.msra.mxu0 %v1434
    %1515 = vmatmul.f32.gmra.mxu0 %v1437
    %v1516 = vpop.f32.mrf.mxu0
    %v1517 = vadd.f32 0.0, %v1516
    %1518 = vdwg.mxu0
    %v1519 = vperm.slane %v1457, 0
    %v1520 = vperm.slane %v1477, 0
    %v1521 = vperm.slane %v1497, 0
    %v1522 = vperm.slane %v1517, 0
    %v1523 = vsub.f32 %v775, %v1519
    %v1524 = vsub.f32 %v935, %v1520
    %v1525 = vsub.f32 %v1095, %v1521
    %v1526 = vsub.f32 %v1255, %v1522
    %v1527 = vmul.f32 %v1523, %v1523
    %v1528 = vmul.f32 %v1524, %v1524
    %v1529 = vmul.f32 %v1525, %v1525
    %v1530 = vmul.f32 %v1526, %v1526
    %v1531 = vsel %vm1257, %v1527, 0.0
    %v1532 = vrot.slane %v1531, 4
    %v1533 = vadd.f32 %v1531, %v1532
    %v1534 = vrot.slane %v1533, 2
    %v1535 = vadd.f32 %v1533, %v1534
    %v1536 = vrot.slane %v1535, 1
    %v1537 = vadd.f32 %v1535, %v1536
    %v1538 = vsel %vm1257, %v1528, 0.0
    %v1539 = vrot.slane %v1538, 4
    %v1540 = vadd.f32 %v1538, %v1539
    %v1541 = vrot.slane %v1540, 2
    %v1542 = vadd.f32 %v1540, %v1541
    %v1543 = vrot.slane %v1542, 1
    %v1544 = vadd.f32 %v1542, %v1543
    %v1545 = vsel %vm1257, %v1529, 0.0
    %v1546 = vrot.slane %v1545, 4
    %v1547 = vadd.f32 %v1545, %v1546
    %v1548 = vrot.slane %v1547, 2
    %v1549 = vadd.f32 %v1547, %v1548
    %v1550 = vrot.slane %v1549, 1
    %v1551 = vadd.f32 %v1549, %v1550
    %v1552 = vsel %vm1257, %v1530, 0.0
    %v1553 = vrot.slane %v1552, 4
    %v1554 = vadd.f32 %v1552, %v1553
    %v1555 = vrot.slane %v1554, 2
    %v1556 = vadd.f32 %v1554, %v1555
    %v1557 = vrot.slane %v1556, 1
    %v1558 = vadd.f32 %v1556, %v1557
    %1559 = vmatpush.msra.mxu0 %v1301
    %1560 = vmatpush.msra.mxu0 %v1300
    %1561 = vmatpush.msra.mxu0 %v1299
    %1562 = vmatpush.msra.mxu0 %v1298
    %1563 = vmatpush.msra.mxu0 %v1297
    %1564 = vmatpush.msra.mxu0 %v1296
    %1565 = vmatpush.msra.mxu0 %v1295
    %1566 = vmatpush.msra.mxu0 %v1294
    %1567 = vmatpush.msra.mxu0 %v1293
    %1568 = vmatpush.msra.mxu0 %v1292
    %1569 = vmatpush.msra.mxu0 %v1291
    %1570 = vmatpush.msra.mxu0 %v1290
    %1571 = vmatpush.msra.mxu0 %v1289
    %1572 = vmatpush.msra.mxu0 %v1288
    %1573 = vmatpush.msra.mxu0 %v1287
    %1574 = vmatpush.msra.mxu0 %v1286
    %1575 = vmatmul.f32.gmra.mxu0 %v1537
    %v1576 = vpop.f32.mrf.mxu0
    %v1577 = vadd.f32 0.0, %v1576
    %1578 = vdwg.mxu0
    %1579 = vmatpush.msra.mxu0 %v1317
    %1580 = vmatpush.msra.mxu0 %v1316
    %1581 = vmatpush.msra.mxu0 %v1315
    %1582 = vmatpush.msra.mxu0 %v1314
    %1583 = vmatpush.msra.mxu0 %v1313
    %1584 = vmatpush.msra.mxu0 %v1312
    %1585 = vmatpush.msra.mxu0 %v1311
    %1586 = vmatpush.msra.mxu0 %v1310
    %1587 = vmatpush.msra.mxu0 %v1309
    %1588 = vmatpush.msra.mxu0 %v1308
    %1589 = vmatpush.msra.mxu0 %v1307
    %1590 = vmatpush.msra.mxu0 %v1306
    %1591 = vmatpush.msra.mxu0 %v1305
    %1592 = vmatpush.msra.mxu0 %v1304
    %1593 = vmatpush.msra.mxu0 %v1303
    %1594 = vmatpush.msra.mxu0 %v1302
    %1595 = vmatmul.f32.gmra.mxu0 %v1544
    %v1596 = vpop.f32.mrf.mxu0
    %v1597 = vadd.f32 %v1577, %v1596
    %1598 = vdwg.mxu0
    %1599 = vmatpush.msra.mxu0 %v1333
    %1600 = vmatpush.msra.mxu0 %v1332
    %1601 = vmatpush.msra.mxu0 %v1331
    %1602 = vmatpush.msra.mxu0 %v1330
    %1603 = vmatpush.msra.mxu0 %v1329
    %1604 = vmatpush.msra.mxu0 %v1328
    %1605 = vmatpush.msra.mxu0 %v1327
    %1606 = vmatpush.msra.mxu0 %v1326
    %1607 = vmatpush.msra.mxu0 %v1325
    %1608 = vmatpush.msra.mxu0 %v1324
    %1609 = vmatpush.msra.mxu0 %v1323
    %1610 = vmatpush.msra.mxu0 %v1322
    %1611 = vmatpush.msra.mxu0 %v1321
    %1612 = vmatpush.msra.mxu0 %v1320
    %1613 = vmatpush.msra.mxu0 %v1319
    %1614 = vmatpush.msra.mxu0 %v1318
    %1615 = vmatmul.f32.gmra.mxu0 %v1551
    %v1616 = vpop.f32.mrf.mxu0
    %v1617 = vadd.f32 %v1597, %v1616
    %1618 = vdwg.mxu0
    %1619 = vmatpush.msra.mxu0 %v1349
    %1620 = vmatpush.msra.mxu0 %v1348
    %1621 = vmatpush.msra.mxu0 %v1347
    %1622 = vmatpush.msra.mxu0 %v1346
    %1623 = vmatpush.msra.mxu0 %v1345
    %1624 = vmatpush.msra.mxu0 %v1344
    %1625 = vmatpush.msra.mxu0 %v1343
    %1626 = vmatpush.msra.mxu0 %v1342
    %1627 = vmatpush.msra.mxu0 %v1341
    %1628 = vmatpush.msra.mxu0 %v1340
    %1629 = vmatpush.msra.mxu0 %v1339
    %1630 = vmatpush.msra.mxu0 %v1338
    %1631 = vmatpush.msra.mxu0 %v1337
    %1632 = vmatpush.msra.mxu0 %v1336
    %1633 = vmatpush.msra.mxu0 %v1335
    %1634 = vmatpush.msra.mxu0 %v1334
    %1635 = vmatmul.f32.gmra.mxu0 %v1558
    %v1636 = vpop.f32.mrf.mxu0
    %v1637 = vadd.f32 %v1617, %v1636
    %1638 = vdwg.mxu0
    %v1639 = vmul.f32 %v1637, 0.0078125
    %v1640 = vadd.f32 %v1639, 1e-05
    %v1641 = vrsqrt.pop %v1640
    %v1642 = vmul.f32 %v1641, %v1640
    %v1643 = vmul.f32 %v1642, %v1641
    %v1644 = vmul.f32 0.5, %v1643
    %v1645 = vsub.f32 1.5, %v1644
    %v1646 = vmul.f32 %v1641, %v1645
    %vm1647 = vweird.f32 %v1640
    %vm1648 = vweird.f32 %v1641
    %vm1649 = vmor %vm1647, %vm1648
    %v1650 = vsel %vm1649, %v1641, %v1646
    %v1652 = vsel %vm1435, %v1650, 0
    %1654 = vmatpush.msra.mxu0 0.0
    %1655 = vmatpush.msra.mxu0 0.0
    %1656 = vmatpush.msra.mxu0 0.0
    %1657 = vmatpush.msra.mxu0 0.0
    %1658 = vmatpush.msra.mxu0 0.0
    %1659 = vmatpush.msra.mxu0 0.0
    %1660 = vmatpush.msra.mxu0 0.0
    %1661 = vmatpush.msra.mxu0 0.0
    %1662 = vmatpush.msra.mxu0 0.0
    %1663 = vmatpush.msra.mxu0 0.0
    %1664 = vmatpush.msra.mxu0 0.0
    %1665 = vmatpush.msra.mxu0 0.0
    %1666 = vmatpush.msra.mxu0 0.0
    %1667 = vmatpush.msra.mxu0 0.0
    %1668 = vmatpush.msra.mxu0 0.0
    %1669 = vmatpush.msra.mxu0 %v1431
    %1670 = vmatmul.f32.gmra.mxu0 %v1652
    %v1671 = vpop.f32.mrf.mxu0
    %v1672 = vadd.f32 0.0, %v1671
    %1673 = vdwg.mxu0
    %1674 = vmatpush.msra.mxu0 0.0
    %1675 = vmatpush.msra.mxu0 0.0
    %1676 = vmatpush.msra.mxu0 0.0
    %1677 = vmatpush.msra.mxu0 0.0
    %1678 = vmatpush.msra.mxu0 0.0
    %1679 = vmatpush.msra.mxu0 0.0
    %1680 = vmatpush.msra.mxu0 0.0
    %1681 = vmatpush.msra.mxu0 0.0
    %1682 = vmatpush.msra.mxu0 0.0
    %1683 = vmatpush.msra.mxu0 0.0
    %1684 = vmatpush.msra.mxu0 0.0
    %1685 = vmatpush.msra.mxu0 0.0
    %1686 = vmatpush.msra.mxu0 0.0
    %1687 = vmatpush.msra.mxu0 0.0
    %1688 = vmatpush.msra.mxu0 0.0
    %1689 = vmatpush.msra.mxu0 %v1432
    %1690 = vmatmul.f32.gmra.mxu0 %v1652
    %v1691 = vpop.f32.mrf.mxu0
    %v1692 = vadd.f32 0.0, %v1691
    %1693 = vdwg.mxu0
    %1694 = vmatpush.msra.mxu0 0.0
    %1695 = vmatpush.msra.mxu0 0.0
    %1696 = vmatpush.msra.mxu0 0.0
    %1697 = vmatpush.msra.mxu0 0.0
    %1698 = vmatpush.msra.mxu0 0.0
    %1699 = vmatpush.msra.mxu0 0.0
    %1700 = vmatpush.msra.mxu0 0.0
    %1701 = vmatpush.msra.mxu0 0.0
    %1702 = vmatpush.msra.mxu0 0.0
    %1703 = vmatpush.msra.mxu0 0.0
    %1704 = vmatpush.msra.mxu0 0.0
    %1705 = vmatpush.msra.mxu0 0.0
    %1706 = vmatpush.msra.mxu0 0.0
    %1707 = vmatpush.msra.mxu0 0.0
    %1708 = vmatpush.msra.mxu0 0.0
    %1709 = vmatpush.msra.mxu0 %v1433
    %1710 = vmatmul.f32.gmra.mxu0 %v1652
    %v1711 = vpop.f32.mrf.mxu0
    %v1712 = vadd.f32 0.0, %v1711
    %1713 = vdwg.mxu0
    %1714 = vmatpush.msra.mxu0 0.0
    %1715 = vmatpush.msra.mxu0 0.0
    %1716 = vmatpush.msra.mxu0 0.0
    %1717 = vmatpush.msra.mxu0 0.0
    %1718 = vmatpush.msra.mxu0 0.0
    %1719 = vmatpush.msra.mxu0 0.0
    %1720 = vmatpush.msra.mxu0 0.0
    %1721 = vmatpush.msra.mxu0 0.0
    %1722 = vmatpush.msra.mxu0 0.0
    %1723 = vmatpush.msra.mxu0 0.0
    %1724 = vmatpush.msra.mxu0 0.0
    %1725 = vmatpush.msra.mxu0 0.0
    %1726 = vmatpush.msra.mxu0 0.0
    %1727 = vmatpush.msra.mxu0 0.0
    %1728 = vmatpush.msra.mxu0 0.0
    %1729 = vmatpush.msra.mxu0 %v1434
    %1730 = vmatmul.f32.gmra.mxu0 %v1652
    %v1731 = vpop.f32.mrf.mxu0
    %v1732 = vadd.f32 0.0, %v1731
    %1733 = vdwg.mxu0
    %v1734 = vperm.slane %v1672, 0
    %v1735 = vperm.slane %v1692, 0
    %v1736 = vperm.slane %v1712, 0
    %v1737 = vperm.slane %v1732, 0
    %v1738 = vmul.f32 %v1523, %v1734
    %v1739 = vmul.f32 %v1524, %v1735
    %v1740 = vmul.f32 %v1525, %v1736
    %v1741 = vmul.f32 %v1526, %v1737
    %v1742 = vld [vmem:[%s3] sm:$0xf]
    %v1744 = vperm.slane %v1742, 0
    %v1745 = vperm.slane %v1742, 1
    %v1746 = vperm.slane %v1742, 2
    %v1747 = vperm.slane %v1742, 3
    %v1752 = vmul.f32 %v1738, %v1744
    %v1753 = vmul.f32 %v1739, %v1745
    %v1754 = vmul.f32 %v1740, %v1746
    %v1755 = vmul.f32 %v1741, %v1747
    %v1756 = vld [vmem:[%s4] sm:$0xf]
    %v1758 = vperm.slane %v1756, 0
    %v1759 = vperm.slane %v1756, 1
    %v1760 = vperm.slane %v1756, 2
    %v1761 = vperm.slane %v1756, 3
    %v1766 = vadd.f32 %v1752, %v1758
    %v1767 = vadd.f32 %v1753, %v1759
    %v1768 = vadd.f32 %v1754, %v1760
    %v1769 = vadd.f32 %v1755, %v1761
    %vm1770 = vcmp.gt.f32.partialorder %v1766, 0.0
    %vm1771 = vcmp.gt.f32.partialorder %v1767, 0.0
    %vm1772 = vcmp.gt.f32.partialorder %v1768, 0.0
    %vm1773 = vcmp.gt.f32.partialorder %v1769, 0.0
    %v1774 = vmul.f32 %v1766, 0.01
    %v1775 = vmul.f32 %v1767, 0.01
    %v1776 = vmul.f32 %v1768, 0.01
    %v1777 = vmul.f32 %v1769, 0.01
    %v1778 = vsel %vm1770, %v1766, %v1774
    %v1779 = vsel %vm1771, %v1767, %v1775
    %v1780 = vsel %vm1772, %v1768, %v1776
    %v1781 = vsel %vm1773, %v1769, %v1777
    %v1782 = vld [vmem:[%s7] sm:$0xff]
    %v1783 = vld [vmem:[%s7 + $0x8] sm:$0xff]
    %v1784 = vld [vmem:[%s7 + $0x10] sm:$0xff]
    %v1785 = vld [vmem:[%s7 + $0x18] sm:$0xff]
    %v1786 = vld [vmem:[%s7 + $0x20] sm:$0xff]
    %v1787 = vld [vmem:[%s7 + $0x28] sm:$0xff]
    %v1788 = vld [vmem:[%s7 + $0x30] sm:$0xff]
    %v1789 = vld [vmem:[%s7 + $0x38] sm:$0xff]
    %v1790 = vld [vmem:[%s7 + $0x40] sm:$0xff]
    %v1791 = vld [vmem:[%s7 + $0x48] sm:$0xff]
    %v1792 = vld [vmem:[%s7 + $0x50] sm:$0xff]
    %v1793 = vld [vmem:[%s7 + $0x58] sm:$0xff]
    %v1794 = vld [vmem:[%s7 + $0x60] sm:$0xff]
    %v1795 = vld [vmem:[%s7 + $0x68] sm:$0xff]
    %v1796 = vld [vmem:[%s7 + $0x70] sm:$0xff]
    %v1797 = vld [vmem:[%s7 + $0x78] sm:$0xff]
    %v1798 = vld [vmem:[%s7 + $0x80] sm:$0xff]
    %v1799 = vld [vmem:[%s7 + $0x88] sm:$0xff]
    %v1800 = vld [vmem:[%s7 + $0x90] sm:$0xff]
    %v1801 = vld [vmem:[%s7 + $0x98] sm:$0xff]
    %v1802 = vld [vmem:[%s7 + $0xa0] sm:$0xff]
    %v1803 = vld [vmem:[%s7 + $0xa8] sm:$0xff]
    %v1804 = vld [vmem:[%s7 + $0xb0] sm:$0xff]
    %v1805 = vld [vmem:[%s7 + $0xb8] sm:$0xff]
    %v1806 = vld [vmem:[%s7 + $0xc0] sm:$0xff]
    %v1807 = vld [vmem:[%s7 + $0xc8] sm:$0xff]
    %v1808 = vld [vmem:[%s7 + $0xd0] sm:$0xff]
    %v1809 = vld [vmem:[%s7 + $0xd8] sm:$0xff]
    %v1810 = vld [vmem:[%s7 + $0xe0] sm:$0xff]
    %v1811 = vld [vmem:[%s7 + $0xe8] sm:$0xff]
    %v1812 = vld [vmem:[%s7 + $0xf0] sm:$0xff]
    %v1813 = vld [vmem:[%s7 + $0xf8] sm:$0xff]
    %v1814 = vld [vmem:[%s7 + $0x100] sm:$0xff]
    %v1815 = vld [vmem:[%s7 + $0x108] sm:$0xff]
    %v1816 = vld [vmem:[%s7 + $0x110] sm:$0xff]
    %v1817 = vld [vmem:[%s7 + $0x118] sm:$0xff]
    %v1818 = vld [vmem:[%s7 + $0x120] sm:$0xff]
    %v1819 = vld [vmem:[%s7 + $0x128] sm:$0xff]
    %v1820 = vld [vmem:[%s7 + $0x130] sm:$0xff]
    %v1821 = vld [vmem:[%s7 + $0x138] sm:$0xff]
    %v1822 = vld [vmem:[%s7 + $0x140] sm:$0xff]
    %v1823 = vld [vmem:[%s7 + $0x148] sm:$0xff]
    %v1824 = vld [vmem:[%s7 + $0x150] sm:$0xff]
    %v1825 = vld [vmem:[%s7 + $0x158] sm:$0xff]
    %v1826 = vld [vmem:[%s7 + $0x160] sm:$0xff]
    %v1827 = vld [vmem:[%s7 + $0x168] sm:$0xff]
    %v1828 = vld [vmem:[%s7 + $0x170] sm:$0xff]
    %v1829 = vld [vmem:[%s7 + $0x178] sm:$0xff]
    %v1830 = vld [vmem:[%s7 + $0x180] sm:$0xff]
    %v1831 = vld [vmem:[%s7 + $0x188] sm:$0xff]
    %v1832 = vld [vmem:[%s7 + $0x190] sm:$0xff]
    %v1833 = vld [vmem:[%s7 + $0x198] sm:$0xff]
    %v1834 = vld [vmem:[%s7 + $0x1a0] sm:$0xff]
    %v1835 = vld [vmem:[%s7 + $0x1a8] sm:$0xff]
    %v1836 = vld [vmem:[%s7 + $0x1b0] sm:$0xff]
    %v1837 = vld [vmem:[%s7 + $0x1b8] sm:$0xff]
    %v1838 = vld [vmem:[%s7 + $0x1c0] sm:$0xff]
    %v1839 = vld [vmem:[%s7 + $0x1c8] sm:$0xff]
    %v1840 = vld [vmem:[%s7 + $0x1d0] sm:$0xff]
    %v1841 = vld [vmem:[%s7 + $0x1d8] sm:$0xff]
    %v1842 = vld [vmem:[%s7 + $0x1e0] sm:$0xff]
    %v1843 = vld [vmem:[%s7 + $0x1e8] sm:$0xff]
    %v1844 = vld [vmem:[%s7 + $0x1f0] sm:$0xff]
    %v1845 = vld [vmem:[%s7 + $0x1f8] sm:$0xff]
    %v1846 = vld [vmem:[%s7 + $0x200] sm:$0xff]
    %v1847 = vld [vmem:[%s7 + $0x208] sm:$0xff]
    %v1848 = vld [vmem:[%s7 + $0x210] sm:$0xff]
    %v1849 = vld [vmem:[%s7 + $0x218] sm:$0xff]
    %v1850 = vld [vmem:[%s7 + $0x220] sm:$0xff]
    %v1851 = vld [vmem:[%s7 + $0x228] sm:$0xff]
    %v1852 = vld [vmem:[%s7 + $0x230] sm:$0xff]
    %v1853 = vld [vmem:[%s7 + $0x238] sm:$0xff]
    %v1854 = vld [vmem:[%s7 + $0x240] sm:$0xff]
    %v1855 = vld [vmem:[%s7 + $0x248] sm:$0xff]
    %v1856 = vld [vmem:[%s7 + $0x250] sm:$0xff]
    %v1857 = vld [vmem:[%s7 + $0x258] sm:$0xff]
    %v1858 = vld [vmem:[%s7 + $0x260] sm:$0xff]
    %v1859 = vld [vmem:[%s7 + $0x268] sm:$0xff]
    %v1860 = vld [vmem:[%s7 + $0x270] sm:$0xff]
    %v1861 = vld [vmem:[%s7 + $0x278] sm:$0xff]
    %v1862 = vld [vmem:[%s7 + $0x280] sm:$0xff]
    %v1863 = vld [vmem:[%s7 + $0x288] sm:$0xff]
    %v1864 = vld [vmem:[%s7 + $0x290] sm:$0xff]
    %v1865 = vld [vmem:[%s7 + $0x298] sm:$0xff]
    %v1866 = vld [vmem:[%s7 + $0x2a0] sm:$0xff]
    %v1867 = vld [vmem:[%s7 + $0x2a8] sm:$0xff]
    %v1868 = vld [vmem:[%s7 + $0x2b0] sm:$0xff]
    %v1869 = vld [vmem:[%s7 + $0x2b8] sm:$0xff]
    %v1870 = vld [vmem:[%s7 + $0x2c0] sm:$0xff]
    %v1871 = vld [vmem:[%s7 + $0x2c8] sm:$0xff]
    %v1872 = vld [vmem:[%s7 + $0x2d0] sm:$0xff]
    %v1873 = vld [vmem:[%s7 + $0x2d8] sm:$0xff]
    %v1874 = vld [vmem:[%s7 + $0x2e0] sm:$0xff]
    %v1875 = vld [vmem:[%s7 + $0x2e8] sm:$0xff]
    %v1876 = vld [vmem:[%s7 + $0x2f0] sm:$0xff]
    %v1877 = vld [vmem:[%s7 + $0x2f8] sm:$0xff]
    %v1878 = vld [vmem:[%s7 + $0x300] sm:$0xff]
    %v1879 = vld [vmem:[%s7 + $0x308] sm:$0xff]
    %v1880 = vld [vmem:[%s7 + $0x310] sm:$0xff]
    %v1881 = vld [vmem:[%s7 + $0x318] sm:$0xff]
    %v1882 = vld [vmem:[%s7 + $0x320] sm:$0xff]
    %v1883 = vld [vmem:[%s7 + $0x328] sm:$0xff]
    %v1884 = vld [vmem:[%s7 + $0x330] sm:$0xff]
    %v1885 = vld [vmem:[%s7 + $0x338] sm:$0xff]
    %v1886 = vld [vmem:[%s7 + $0x340] sm:$0xff]
    %v1887 = vld [vmem:[%s7 + $0x348] sm:$0xff]
    %v1888 = vld [vmem:[%s7 + $0x350] sm:$0xff]
    %v1889 = vld [vmem:[%s7 + $0x358] sm:$0xff]
    %v1890 = vld [vmem:[%s7 + $0x360] sm:$0xff]
    %v1891 = vld [vmem:[%s7 + $0x368] sm:$0xff]
    %v1892 = vld [vmem:[%s7 + $0x370] sm:$0xff]
    %v1893 = vld [vmem:[%s7 + $0x378] sm:$0xff]
    %v1894 = vld [vmem:[%s7 + $0x380] sm:$0xff]
    %v1895 = vld [vmem:[%s7 + $0x388] sm:$0xff]
    %v1896 = vld [vmem:[%s7 + $0x390] sm:$0xff]
    %v1897 = vld [vmem:[%s7 + $0x398] sm:$0xff]
    %v1898 = vld [vmem:[%s7 + $0x3a0] sm:$0xff]
    %v1899 = vld [vmem:[%s7 + $0x3a8] sm:$0xff]
    %v1900 = vld [vmem:[%s7 + $0x3b0] sm:$0xff]
    %v1901 = vld [vmem:[%s7 + $0x3b8] sm:$0xff]
    %v1902 = vld [vmem:[%s7 + $0x3c0] sm:$0xff]
    %v1903 = vld [vmem:[%s7 + $0x3c8] sm:$0xff]
    %v1904 = vld [vmem:[%s7 + $0x3d0] sm:$0xff]
    %v1905 = vld [vmem:[%s7 + $0x3d8] sm:$0xff]
    %v1906 = vld [vmem:[%s7 + $0x3e0] sm:$0xff]
    %v1907 = vld [vmem:[%s7 + $0x3e8] sm:$0xff]
    %v1908 = vld [vmem:[%s7 + $0x3f0] sm:$0xff]
    %v1909 = vld [vmem:[%s7 + $0x3f8] sm:$0xff]
    %v1910 = vld [vmem:[%s8] sm:$0x3]
    %v1912 = vperm.slane %v1910, 0
    %v1913 = vperm.slane %v1910, 1
    %1916 = vmatpush.msra.mxu0 %v1812
    %1917 = vmatpush.msra.mxu0 %v1810
    %1918 = vmatpush.msra.mxu0 %v1808
    %1919 = vmatpush.msra.mxu0 %v1806
    %1920 = vmatpush.msra.mxu0 %v1804
    %1921 = vmatpush.msra.mxu0 %v1802
    %1922 = vmatpush.msra.mxu0 %v1800
    %1923 = vmatpush.msra.mxu0 %v1798
    %1924 = vmatpush.msra.mxu0 %v1796
    %1925 = vmatpush.msra.mxu0 %v1794
    %1926 = vmatpush.msra.mxu0 %v1792
    %1927 = vmatpush.msra.mxu0 %v1790
    %1928 = vmatpush.msra.mxu0 %v1788
    %1929 = vmatpush.msra.mxu0 %v1786
    %1930 = vmatpush.msra.mxu0 %v1784
    %1931 = vmatpush.msra.mxu0 %v1782
    %1932 = vmatmul.f32.gmra.mxu0 %v1778
    %v1933 = vpop.f32.mrf.mxu0
    %v1934 = vadd.f32 %v1912, %v1933
    %1935 = vdwg.mxu0
    %1936 = vmatpush.msra.mxu0 %v1844
    %1937 = vmatpush.msra.mxu0 %v1842
    %1938 = vmatpush.msra.mxu0 %v1840
    %1939 = vmatpush.msra.mxu0 %v1838
    %1940 = vmatpush.msra.mxu0 %v1836
    %1941 = vmatpush.msra.mxu0 %v1834
    %1942 = vmatpush.msra.mxu0 %v1832
    %1943 = vmatpush.msra.mxu0 %v1830
    %1944 = vmatpush.msra.mxu0 %v1828
    %1945 = vmatpush.msra.mxu0 %v1826
    %1946 = vmatpush.msra.mxu0 %v1824
    %1947 = vmatpush.msra.mxu0 %v1822
    %1948 = vmatpush.msra.mxu0 %v1820
    %1949 = vmatpush.msra.mxu0 %v1818
    %1950 = vmatpush.msra.mxu0 %v1816
    %1951 = vmatpush.msra.mxu0 %v1814
    %1952 = vmatmul.f32.gmra.mxu0 %v1779
    %v1953 = vpop.f32.mrf.mxu0
    %v1954 = vadd.f32 %v1934, %v1953
    %1955 = vdwg.mxu0
    %1956 = vmatpush.msra.mxu0 %v1876
    %1957 = vmatpush.msra.mxu0 %v1874
    %1958 = vmatpush.msra.mxu0 %v1872
    %1959 = vmatpush.msra.mxu0 %v1870
    %1960 = vmatpush.msra.mxu0 %v1868
    %1961 = vmatpush.msra.mxu0 %v1866
    %1962 = vmatpush.msra.mxu0 %v1864
    %1963 = vmatpush.msra.mxu0 %v1862
    %1964 = vmatpush.msra.mxu0 %v1860
    %1965 = vmatpush.msra.mxu0 %v1858
    %1966 = vmatpush.msra.mxu0 %v1856
    %1967 = vmatpush.msra.mxu0 %v1854
    %1968 = vmatpush.msra.mxu0 %v1852
    %1969 = vmatpush.msra.mxu0 %v1850
    %1970 = vmatpush.msra.mxu0 %v1848
    %1971 = vmatpush.msra.mxu0 %v1846
    %1972 = vmatmul.f32.gmra.mxu0 %v1780
    %v1973 = vpop.f32.mrf.mxu0
    %v1974 = vadd.f32 %v1954, %v1973
    %1975 = vdwg.mxu0
    %1976 = vmatpush.msra.mxu0 %v1908
    %1977 = vmatpush.msra.mxu0 %v1906
    %1978 = vmatpush.msra.mxu0 %v1904
    %1979 = vmatpush.msra.mxu0 %v1902
    %1980 = vmatpush.msra.mxu0 %v1900
    %1981 = vmatpush.msra.mxu0 %v1898
    %1982 = vmatpush.msra.mxu0 %v1896
    %1983 = vmatpush.msra.mxu0 %v1894
    %1984 = vmatpush.msra.mxu0 %v1892
    %1985 = vmatpush.msra.mxu0 %v1890
    %1986 = vmatpush.msra.mxu0 %v1888
    %1987 = vmatpush.msra.mxu0 %v1886
    %1988 = vmatpush.msra.mxu0 %v1884
    %1989 = vmatpush.msra.mxu0 %v1882
    %1990 = vmatpush.msra.mxu0 %v1880
    %1991 = vmatpush.msra.mxu0 %v1878
    %1992 = vmatmul.f32.gmra.mxu0 %v1781
    %v1993 = vpop.f32.mrf.mxu0
    %v1994 = vadd.f32 %v1974, %v1993
    %1995 = vdwg.mxu0
    %1996 = vmatpush.msra.mxu0 %v1813
    %1997 = vmatpush.msra.mxu0 %v1811
    %1998 = vmatpush.msra.mxu0 %v1809
    %1999 = vmatpush.msra.mxu0 %v1807
    %2000 = vmatpush.msra.mxu0 %v1805
    %2001 = vmatpush.msra.mxu0 %v1803
    %2002 = vmatpush.msra.mxu0 %v1801
    %2003 = vmatpush.msra.mxu0 %v1799
    %2004 = vmatpush.msra.mxu0 %v1797
    %2005 = vmatpush.msra.mxu0 %v1795
    %2006 = vmatpush.msra.mxu0 %v1793
    %2007 = vmatpush.msra.mxu0 %v1791
    %2008 = vmatpush.msra.mxu0 %v1789
    %2009 = vmatpush.msra.mxu0 %v1787
    %2010 = vmatpush.msra.mxu0 %v1785
    %2011 = vmatpush.msra.mxu0 %v1783
    %2012 = vmatmul.f32.gmra.mxu0 %v1778
    %v2013 = vpop.f32.mrf.mxu0
    %v2014 = vadd.f32 %v1913, %v2013
    %2015 = vdwg.mxu0
    %2016 = vmatpush.msra.mxu0 %v1845
    %2017 = vmatpush.msra.mxu0 %v1843
    %2018 = vmatpush.msra.mxu0 %v1841
    %2019 = vmatpush.msra.mxu0 %v1839
    %2020 = vmatpush.msra.mxu0 %v1837
    %2021 = vmatpush.msra.mxu0 %v1835
    %2022 = vmatpush.msra.mxu0 %v1833
    %2023 = vmatpush.msra.mxu0 %v1831
    %2024 = vmatpush.msra.mxu0 %v1829
    %2025 = vmatpush.msra.mxu0 %v1827
    %2026 = vmatpush.msra.mxu0 %v1825
    %2027 = vmatpush.msra.mxu0 %v1823
    %2028 = vmatpush.msra.mxu0 %v1821
    %2029 = vmatpush.msra.mxu0 %v1819
    %2030 = vmatpush.msra.mxu0 %v1817
    %2031 = vmatpush.msra.mxu0 %v1815
    %2032 = vmatmul.f32.gmra.mxu0 %v1779
    %v2033 = vpop.f32.mrf.mxu0
    %v2034 = vadd.f32 %v2014, %v2033
    %2035 = vdwg.mxu0
    %2036 = vmatpush.msra.mxu0 %v1877
    %2037 = vmatpush.msra.mxu0 %v1875
    %2038 = vmatpush.msra.mxu0 %v1873
    %2039 = vmatpush.msra.mxu0 %v1871
    %2040 = vmatpush.msra.mxu0 %v1869
    %2041 = vmatpush.msra.mxu0 %v1867
    %2042 = vmatpush.msra.mxu0 %v1865
    %2043 = vmatpush.msra.mxu0 %v1863
    %2044 = vmatpush.msra.mxu0 %v1861
    %2045 = vmatpush.msra.mxu0 %v1859
    %2046 = vmatpush.msra.mxu0 %v1857
    %2047 = vmatpush.msra.mxu0 %v1855
    %2048 = vmatpush.msra.mxu0 %v1853
    %2049 = vmatpush.msra.mxu0 %v1851
    %2050 = vmatpush.msra.mxu0 %v1849
    %2051 = vmatpush.msra.mxu0 %v1847
    %2052 = vmatmul.f32.gmra.mxu0 %v1780
    %v2053 = vpop.f32.mrf.mxu0
    %v2054 = vadd.f32 %v2034, %v2053
    %2055 = vdwg.mxu0
    %2056 = vmatpush.msra.mxu0 %v1909
    %2057 = vmatpush.msra.mxu0 %v1907
    %2058 = vmatpush.msra.mxu0 %v1905
    %2059 = vmatpush.msra.mxu0 %v1903
    %2060 = vmatpush.msra.mxu0 %v1901
    %2061 = vmatpush.msra.mxu0 %v1899
    %2062 = vmatpush.msra.mxu0 %v1897
    %2063 = vmatpush.msra.mxu0 %v1895
    %2064 = vmatpush.msra.mxu0 %v1893
    %2065 = vmatpush.msra.mxu0 %v1891
    %2066 = vmatpush.msra.mxu0 %v1889
    %2067 = vmatpush.msra.mxu0 %v1887
    %2068 = vmatpush.msra.mxu0 %v1885
    %2069 = vmatpush.msra.mxu0 %v1883
    %2070 = vmatpush.msra.mxu0 %v1881
    %2071 = vmatpush.msra.mxu0 %v1879
    %2072 = vmatmul.f32.gmra.mxu0 %v1781
    %v2073 = vpop.f32.mrf.mxu0
    %v2074 = vadd.f32 %v2054, %v2073
    %2075 = vdwg.mxu0
    %v2076 = vsel %vm1257, %v1994, 0.0
    %v2077 = vrot.slane %v2076, 4
    %v2078 = vadd.f32 %v2076, %v2077
    %v2079 = vrot.slane %v2078, 2
    %v2080 = vadd.f32 %v2078, %v2079
    %v2081 = vrot.slane %v2080, 1
    %v2082 = vadd.f32 %v2080, %v2081
    %v2083 = vsel %vm1257, %v2074, 0.0
    %v2084 = vrot.slane %v2083, 4
    %v2085 = vadd.f32 %v2083, %v2084
    %v2086 = vrot.slane %v2085, 2
    %v2087 = vadd.f32 %v2085, %v2086
    %v2088 = vrot.slane %v2087, 1
    %v2089 = vadd.f32 %v2087, %v2088
    %v2090 = vld [vmem:[%s11] sm:$0xff]
    %v2091 = vld [vmem:[%s11 + $0x8] sm:$0xff]
    %v2092 = vld [vmem:[%s11 + $0x10] sm:$0xff]
    %v2093 = vld [vmem:[%s11 + $0x18] sm:$0xff]
    %v2094 = vld [vmem:[%s11 + $0x20] sm:$0xff]
    %v2095 = vld [vmem:[%s11 + $0x28] sm:$0xff]
    %v2096 = vld [vmem:[%s11 + $0x30] sm:$0xff]
    %v2097 = vld [vmem:[%s11 + $0x38] sm:$0xff]
    %v2098 = vld [vmem:[%s11 + $0x40] sm:$0xff]
    %v2099 = vld [vmem:[%s11 + $0x48] sm:$0xff]
    %v2100 = vld [vmem:[%s11 + $0x50] sm:$0xff]
    %v2101 = vld [vmem:[%s11 + $0x58] sm:$0xff]
    %v2102 = vld [vmem:[%s11 + $0x60] sm:$0xff]
    %v2103 = vld [vmem:[%s11 + $0x68] sm:$0xff]
    %v2104 = vld [vmem:[%s11 + $0x70] sm:$0xff]
    %v2105 = vld [vmem:[%s11 + $0x78] sm:$0xff]
    %v2106 = vld [vmem:[%s11 + $0x80] sm:$0xff]
    %v2107 = vld [vmem:[%s11 + $0x88] sm:$0xff]
    %v2108 = vld [vmem:[%s11 + $0x90] sm:$0xff]
    %v2109 = vld [vmem:[%s11 + $0x98] sm:$0xff]
    %v2110 = vld [vmem:[%s11 + $0xa0] sm:$0xff]
    %v2111 = vld [vmem:[%s11 + $0xa8] sm:$0xff]
    %v2112 = vld [vmem:[%s11 + $0xb0] sm:$0xff]
    %v2113 = vld [vmem:[%s11 + $0xb8] sm:$0xff]
    %v2114 = vld [vmem:[%s11 + $0xc0] sm:$0xff]
    %v2115 = vld [vmem:[%s11 + $0xc8] sm:$0xff]
    %v2116 = vld [vmem:[%s11 + $0xd0] sm:$0xff]
    %v2117 = vld [vmem:[%s11 + $0xd8] sm:$0xff]
    %v2118 = vld [vmem:[%s11 + $0xe0] sm:$0xff]
    %v2119 = vld [vmem:[%s11 + $0xe8] sm:$0xff]
    %v2120 = vld [vmem:[%s11 + $0xf0] sm:$0xff]
    %v2121 = vld [vmem:[%s11 + $0xf8] sm:$0xff]
    %2122 = vmatpush.msra.mxu0 %v2105
    %2123 = vmatpush.msra.mxu0 %v2104
    %2124 = vmatpush.msra.mxu0 %v2103
    %2125 = vmatpush.msra.mxu0 %v2102
    %2126 = vmatpush.msra.mxu0 %v2101
    %2127 = vmatpush.msra.mxu0 %v2100
    %2128 = vmatpush.msra.mxu0 %v2099
    %2129 = vmatpush.msra.mxu0 %v2098
    %2130 = vmatpush.msra.mxu0 %v2097
    %2131 = vmatpush.msra.mxu0 %v2096
    %2132 = vmatpush.msra.mxu0 %v2095
    %2133 = vmatpush.msra.mxu0 %v2094
    %2134 = vmatpush.msra.mxu0 %v2093
    %2135 = vmatpush.msra.mxu0 %v2092
    %2136 = vmatpush.msra.mxu0 %v2091
    %2137 = vmatpush.msra.mxu0 %v2090
    %2138 = vmatmul.f32.gmra.mxu0 %v2082
    %v2139 = vpop.f32.mrf.mxu0
    %v2140 = vadd.f32 0.0, %v2139
    %2141 = vdwg.mxu0
    %2142 = vmatpush.msra.mxu0 %v2121
    %2143 = vmatpush.msra.mxu0 %v2120
    %2144 = vmatpush.msra.mxu0 %v2119
    %2145 = vmatpush.msra.mxu0 %v2118
    %2146 = vmatpush.msra.mxu0 %v2117
    %2147 = vmatpush.msra.mxu0 %v2116
    %2148 = vmatpush.msra.mxu0 %v2115
    %2149 = vmatpush.msra.mxu0 %v2114
    %2150 = vmatpush.msra.mxu0 %v2113
    %2151 = vmatpush.msra.mxu0 %v2112
    %2152 = vmatpush.msra.mxu0 %v2111
    %2153 = vmatpush.msra.mxu0 %v2110
    %2154 = vmatpush.msra.mxu0 %v2109
    %2155 = vmatpush.msra.mxu0 %v2108
    %2156 = vmatpush.msra.mxu0 %v2107
    %2157 = vmatpush.msra.mxu0 %v2106
    %2158 = vmatmul.f32.gmra.mxu0 %v2089
    %v2159 = vpop.f32.mrf.mxu0
    %v2160 = vadd.f32 %v2140, %v2159
    %2161 = vdwg.mxu0
    %v2162 = vmul.f32 %v2160, 0.03125
    %v2163 = vld [vmem:[%s12] sm:$0xff]
    %v2164 = vld [vmem:[%s12 + $0x8] sm:$0xff]
    %v2165 = vld [vmem:[%s12 + $0x10] sm:$0xff]
    %v2166 = vld [vmem:[%s12 + $0x18] sm:$0xff]
    %vm2167 = vcmask 130048
    %v2169 = vsel %vm2167, %v2162, 0
    %2171 = vmatpush.msra.mxu0 0.0
    %2172 = vmatpush.msra.mxu0 0.0
    %2173 = vmatpush.msra.mxu0 0.0
    %2174 = vmatpush.msra.mxu0 0.0
    %2175 = vmatpush.msra.mxu0 0.0
    %2176 = vmatpush.msra.mxu0 0.0
    %2177 = vmatpush.msra.mxu0 0.0
    %2178 = vmatpush.msra.mxu0 0.0
    %2179 = vmatpush.msra.mxu0 0.0
    %2180 = vmatpush.msra.mxu0 0.0
    %2181 = vmatpush.msra.mxu0 0.0
    %2182 = vmatpush.msra.mxu0 0.0
    %2183 = vmatpush.msra.mxu0 0.0
    %2184 = vmatpush.msra.mxu0 0.0
    %2185 = vmatpush.msra.mxu0 %v2165
    %2186 = vmatpush.msra.mxu0 %v2163
    %2187 = vmatmul.f32.gmra.mxu0 %v2169
    %v2188 = vpop.f32.mrf.mxu0
    %v2189 = vadd.f32 0.0, %v2188
    %2190 = vdwg.mxu0
    %2191 = vmatpush.msra.mxu0 0.0
    %2192 = vmatpush.msra.mxu0 0.0
    %2193 = vmatpush.msra.mxu0 0.0
    %2194 = vmatpush.msra.mxu0 0.0
    %2195 = vmatpush.msra.mxu0 0.0
    %2196 = vmatpush.msra.mxu0 0.0
    %2197 = vmatpush.msra.mxu0 0.0
    %2198 = vmatpush.msra.mxu0 0.0
    %2199 = vmatpush.msra.mxu0 0.0
    %2200 = vmatpush.msra.mxu0 0.0
    %2201 = vmatpush.msra.mxu0 0.0
    %2202 = vmatpush.msra.mxu0 0.0
    %2203 = vmatpush.msra.mxu0 0.0
    %2204 = vmatpush.msra.mxu0 0.0
    %2205 = vmatpush.msra.mxu0 %v2166
    %2206 = vmatpush.msra.mxu0 %v2164
    %2207 = vmatmul.f32.gmra.mxu0 %v2169
    %v2208 = vpop.f32.mrf.mxu0
    %v2209 = vadd.f32 0.0, %v2208
    %2210 = vdwg.mxu0
    %v2211 = vperm.slane %v2189, 0
    %v2212 = vperm.slane %v2209, 0
    %v2213 = vsub.f32 %v1994, %v2211
    %v2214 = vsub.f32 %v2074, %v2212
    %v2215 = vmul.f32 %v2213, %v2213
    %v2216 = vmul.f32 %v2214, %v2214
    %v2217 = vsel %vm1257, %v2215, 0.0
    %v2218 = vrot.slane %v2217, 4
    %v2219 = vadd.f32 %v2217, %v2218
    %v2220 = vrot.slane %v2219, 2
    %v2221 = vadd.f32 %v2219, %v2220
    %v2222 = vrot.slane %v2221, 1
    %v2223 = vadd.f32 %v2221, %v2222
    %v2224 = vsel %vm1257, %v2216, 0.0
    %v2225 = vrot.slane %v2224, 4
    %v2226 = vadd.f32 %v2224, %v2225
    %v2227 = vrot.slane %v2226, 2
    %v2228 = vadd.f32 %v2226, %v2227
    %v2229 = vrot.slane %v2228, 1
    %v2230 = vadd.f32 %v2228, %v2229
    %2231 = vmatpush.msra.mxu0 %v2105
    %2232 = vmatpush.msra.mxu0 %v2104
    %2233 = vmatpush.msra.mxu0 %v2103
    %2234 = vmatpush.msra.mxu0 %v2102
    %2235 = vmatpush.msra.mxu0 %v2101
    %2236 = vmatpush.msra.mxu0 %v2100
    %2237 = vmatpush.msra.mxu0 %v2099
    %2238 = vmatpush.msra.mxu0 %v2098
    %2239 = vmatpush.msra.mxu0 %v2097
    %2240 = vmatpush.msra.mxu0 %v2096
    %2241 = vmatpush.msra.mxu0 %v2095
    %2242 = vmatpush.msra.mxu0 %v2094
    %2243 = vmatpush.msra.mxu0 %v2093
    %2244 = vmatpush.msra.mxu0 %v2092
    %2245 = vmatpush.msra.mxu0 %v2091
    %2246 = vmatpush.msra.mxu0 %v2090
    %2247 = vmatmul.f32.gmra.mxu0 %v2223
    %v2248 = vpop.f32.mrf.mxu0
    %v2249 = vadd.f32 0.0, %v2248
    %2250 = vdwg.mxu0
    %2251 = vmatpush.msra.mxu0 %v2121
    %2252 = vmatpush.msra.mxu0 %v2120
    %2253 = vmatpush.msra.mxu0 %v2119
    %2254 = vmatpush.msra.mxu0 %v2118
    %2255 = vmatpush.msra.mxu0 %v2117
    %2256 = vmatpush.msra.mxu0 %v2116
    %2257 = vmatpush.msra.mxu0 %v2115
    %2258 = vmatpush.msra.mxu0 %v2114
    %2259 = vmatpush.msra.mxu0 %v2113
    %2260 = vmatpush.msra.mxu0 %v2112
    %2261 = vmatpush.msra.mxu0 %v2111
    %2262 = vmatpush.msra.mxu0 %v2110
    %2263 = vmatpush.msra.mxu0 %v2109
    %2264 = vmatpush.msra.mxu0 %v2108
    %2265 = vmatpush.msra.mxu0 %v2107
    %2266 = vmatpush.msra.mxu0 %v2106
    %2267 = vmatmul.f32.gmra.mxu0 %v2230
    %v2268 = vpop.f32.mrf.mxu0
    %v2269 = vadd.f32 %v2249, %v2268
    %2270 = vdwg.mxu0
    %v2271 = vmul.f32 %v2269, 0.03125
    %v2272 = vadd.f32 %v2271, 1e-05
    %v2273 = vrsqrt.pop %v2272
    %v2274 = vmul.f32 %v2273, %v2272
    %v2275 = vmul.f32 %v2274, %v2273
    %v2276 = vmul.f32 0.5, %v2275
    %v2277 = vsub.f32 1.5, %v2276
    %v2278 = vmul.f32 %v2273, %v2277
    %vm2279 = vweird.f32 %v2272
    %vm2280 = vweird.f32 %v2273
    %vm2281 = vmor %vm2279, %vm2280
    %v2282 = vsel %vm2281, %v2273, %v2278
    %v2284 = vsel %vm2167, %v2282, 0
    %2286 = vmatpush.msra.mxu0 0.0
    %2287 = vmatpush.msra.mxu0 0.0
    %2288 = vmatpush.msra.mxu0 0.0
    %2289 = vmatpush.msra.mxu0 0.0
    %2290 = vmatpush.msra.mxu0 0.0
    %2291 = vmatpush.msra.mxu0 0.0
    %2292 = vmatpush.msra.mxu0 0.0
    %2293 = vmatpush.msra.mxu0 0.0
    %2294 = vmatpush.msra.mxu0 0.0
    %2295 = vmatpush.msra.mxu0 0.0
    %2296 = vmatpush.msra.mxu0 0.0
    %2297 = vmatpush.msra.mxu0 0.0
    %2298 = vmatpush.msra.mxu0 0.0
    %2299 = vmatpush.msra.mxu0 0.0
    %2300 = vmatpush.msra.mxu0 %v2165
    %2301 = vmatpush.msra.mxu0 %v2163
    %2302 = vmatmul.f32.gmra.mxu0 %v2284
    %v2303 = vpop.f32.mrf.mxu0
    %v2304 = vadd.f32 0.0, %v2303
    %2305 = vdwg.mxu0
    %2306 = vmatpush.msra.mxu0 0.0
    %2307 = vmatpush.msra.mxu0 0.0
    %2308 = vmatpush.msra.mxu0 0.0
    %2309 = vmatpush.msra.mxu0 0.0
    %2310 = vmatpush.msra.mxu0 0.0
    %2311 = vmatpush.msra.mxu0 0.0
    %2312 = vmatpush.msra.mxu0 0.0
    %2313 = vmatpush.msra.mxu0 0.0
    %2314 = vmatpush.msra.mxu0 0.0
    %2315 = vmatpush.msra.mxu0 0.0
    %2316 = vmatpush.msra.mxu0 0.0
    %2317 = vmatpush.msra.mxu0 0.0
    %2318 = vmatpush.msra.mxu0 0.0
    %2319 = vmatpush.msra.mxu0 0.0
    %2320 = vmatpush.msra.mxu0 %v2166
    %2321 = vmatpush.msra.mxu0 %v2164
    %2322 = vmatmul.f32.gmra.mxu0 %v2284
    %v2323 = vpop.f32.mrf.mxu0
    %v2324 = vadd.f32 0.0, %v2323
    %2325 = vdwg.mxu0
    %v2326 = vperm.slane %v2304, 0
    %v2327 = vperm.slane %v2324, 0
    %v2328 = vmul.f32 %v2213, %v2326
    %v2329 = vmul.f32 %v2214, %v2327
    %v2330 = vld [vmem:[%s9] sm:$0x3]
    %v2332 = vperm.slane %v2330, 0
    %v2333 = vperm.slane %v2330, 1
    %v2336 = vmul.f32 %v2328, %v2332
    %v2337 = vmul.f32 %v2329, %v2333
    %v2338 = vld [vmem:[%s10] sm:$0x3]
    %v2340 = vperm.slane %v2338, 0
    %v2341 = vperm.slane %v2338, 1
    %v2344 = vadd.f32 %v2336, %v2340
    %v2345 = vadd.f32 %v2337, %v2341
    %vm2346 = vcmp.gt.f32.partialorder %v2344, 0.0
    %vm2347 = vcmp.gt.f32.partialorder %v2345, 0.0
    %v2348 = vmul.f32 %v2344, 0.01
    %v2349 = vmul.f32 %v2345, 0.01
    %v2350 = vsel %vm2346, %v2344, %v2348
    %v2351 = vsel %vm2347, %v2345, %v2349
    %v2352 = vld [vmem:[%s13] sm:$0xff]
    %v2353 = vld [vmem:[%s13 + $0x8] sm:$0xff]
    %v2354 = vld [vmem:[%s13 + $0x10] sm:$0xff]
    %v2355 = vld [vmem:[%s13 + $0x18] sm:$0xff]
    %v2356 = vld [vmem:[%s13 + $0x20] sm:$0xff]
    %v2357 = vld [vmem:[%s13 + $0x28] sm:$0xff]
    %v2358 = vld [vmem:[%s13 + $0x30] sm:$0xff]
    %v2359 = vld [vmem:[%s13 + $0x38] sm:$0xff]
    %v2360 = vld [vmem:[%s13 + $0x40] sm:$0xff]
    %v2361 = vld [vmem:[%s13 + $0x48] sm:$0xff]
    %v2362 = vld [vmem:[%s13 + $0x50] sm:$0xff]
    %v2363 = vld [vmem:[%s13 + $0x58] sm:$0xff]
    %v2364 = vld [vmem:[%s13 + $0x60] sm:$0xff]
    %v2365 = vld [vmem:[%s13 + $0x68] sm:$0xff]
    %v2366 = vld [vmem:[%s13 + $0x70] sm:$0xff]
    %v2367 = vld [vmem:[%s13 + $0x78] sm:$0xff]
    %v2368 = vld [vmem:[%s13 + $0x80] sm:$0xff]
    %v2369 = vld [vmem:[%s13 + $0x88] sm:$0xff]
    %v2370 = vld [vmem:[%s13 + $0x90] sm:$0xff]
    %v2371 = vld [vmem:[%s13 + $0x98] sm:$0xff]
    %v2372 = vld [vmem:[%s13 + $0xa0] sm:$0xff]
    %v2373 = vld [vmem:[%s13 + $0xa8] sm:$0xff]
    %v2374 = vld [vmem:[%s13 + $0xb0] sm:$0xff]
    %v2375 = vld [vmem:[%s13 + $0xb8] sm:$0xff]
    %v2376 = vld [vmem:[%s13 + $0xc0] sm:$0xff]
    %v2377 = vld [vmem:[%s13 + $0xc8] sm:$0xff]
    %v2378 = vld [vmem:[%s13 + $0xd0] sm:$0xff]
    %v2379 = vld [vmem:[%s13 + $0xd8] sm:$0xff]
    %v2380 = vld [vmem:[%s13 + $0xe0] sm:$0xff]
    %v2381 = vld [vmem:[%s13 + $0xe8] sm:$0xff]
    %v2382 = vld [vmem:[%s13 + $0xf0] sm:$0xff]
    %v2383 = vld [vmem:[%s13 + $0xf8] sm:$0xff]
    %v2384 = vld [vmem:[%s14] sm:$0x1]
    %v2386 = vperm.slane %v2384, 0
    %2388 = vmatpush.msra.mxu0 %v2367
    %2389 = vmatpush.msra.mxu0 %v2366
    %2390 = vmatpush.msra.mxu0 %v2365
    %2391 = vmatpush.msra.mxu0 %v2364
    %2392 = vmatpush.msra.mxu0 %v2363
    %2393 = vmatpush.msra.mxu0 %v2362
    %2394 = vmatpush.msra.mxu0 %v2361
    %2395 = vmatpush.msra.mxu0 %v2360
    %2396 = vmatpush.msra.mxu0 %v2359
    %2397 = vmatpush.msra.mxu0 %v2358
    %2398 = vmatpush.msra.mxu0 %v2357
    %2399 = vmatpush.msra.mxu0 %v2356
    %2400 = vmatpush.msra.mxu0 %v2355
    %2401 = vmatpush.msra.mxu0 %v2354
    %2402 = vmatpush.msra.mxu0 %v2353
    %2403 = vmatpush.msra.mxu0 %v2352
    %2404 = vmatmul.f32.gmra.mxu0 %v2350
    %v2405 = vpop.f32.mrf.mxu0
    %v2406 = vadd.f32 %v2386, %v2405
    %2407 = vdwg.mxu0
    %2408 = vmatpush.msra.mxu0 %v2383
    %2409 = vmatpush.msra.mxu0 %v2382
    %2410 = vmatpush.msra.mxu0 %v2381
    %2411 = vmatpush.msra.mxu0 %v2380
    %2412 = vmatpush.msra.mxu0 %v2379
    %2413 = vmatpush.msra.mxu0 %v2378
    %2414 = vmatpush.msra.mxu0 %v2377
    %2415 = vmatpush.msra.mxu0 %v2376
    %2416 = vmatpush.msra.mxu0 %v2375
    %2417 = vmatpush.msra.mxu0 %v2374
    %2418 = vmatpush.msra.mxu0 %v2373
    %2419 = vmatpush.msra.mxu0 %v2372
    %2420 = vmatpush.msra.mxu0 %v2371
    %2421 = vmatpush.msra.mxu0 %v2370
    %2422 = vmatpush.msra.mxu0 %v2369
    %2423 = vmatpush.msra.mxu0 %v2368
    %2424 = vmatmul.f32.gmra.mxu0 %v2351
    %v2425 = vpop.f32.mrf.mxu0
    %v2426 = vadd.f32 %v2406, %v2425
    %2427 = vdwg.mxu0
    %v2428 = vsel %vm1257, %v2426, 0.0
    %v2429 = vrot.slane %v2428, 4
    %v2430 = vadd.f32 %v2428, %v2429
    %v2431 = vrot.slane %v2430, 2
    %v2432 = vadd.f32 %v2430, %v2431
    %v2433 = vrot.slane %v2432, 1
    %v2434 = vadd.f32 %v2432, %v2433
    %v2435 = vld [vmem:[%s17] sm:$0xff]
    %v2436 = vld [vmem:[%s17 + $0x8] sm:$0xff]
    %v2437 = vld [vmem:[%s17 + $0x10] sm:$0xff]
    %v2438 = vld [vmem:[%s17 + $0x18] sm:$0xff]
    %v2439 = vld [vmem:[%s17 + $0x20] sm:$0xff]
    %v2440 = vld [vmem:[%s17 + $0x28] sm:$0xff]
    %v2441 = vld [vmem:[%s17 + $0x30] sm:$0xff]
    %v2442 = vld [vmem:[%s17 + $0x38] sm:$0xff]
    %v2443 = vld [vmem:[%s17 + $0x40] sm:$0xff]
    %v2444 = vld [vmem:[%s17 + $0x48] sm:$0xff]
    %v2445 = vld [vmem:[%s17 + $0x50] sm:$0xff]
    %v2446 = vld [vmem:[%s17 + $0x58] sm:$0xff]
    %v2447 = vld [vmem:[%s17 + $0x60] sm:$0xff]
    %v2448 = vld [vmem:[%s17 + $0x68] sm:$0xff]
    %v2449 = vld [vmem:[%s17 + $0x70] sm:$0xff]
    %v2450 = vld [vmem:[%s17 + $0x78] sm:$0xff]
    %2451 = vmatpush.msra.mxu0 %v2450
    %2452 = vmatpush.msra.mxu0 %v2449
    %2453 = vmatpush.msra.mxu0 %v2448
    %2454 = vmatpush.msra.mxu0 %v2447
    %2455 = vmatpush.msra.mxu0 %v2446
    %2456 = vmatpush.msra.mxu0 %v2445
    %2457 = vmatpush.msra.mxu0 %v2444
    %2458 = vmatpush.msra.mxu0 %v2443
    %2459 = vmatpush.msra.mxu0 %v2442
    %2460 = vmatpush.msra.mxu0 %v2441
    %2461 = vmatpush.msra.mxu0 %v2440
    %2462 = vmatpush.msra.mxu0 %v2439
    %2463 = vmatpush.msra.mxu0 %v2438
    %2464 = vmatpush.msra.mxu0 %v2437
    %2465 = vmatpush.msra.mxu0 %v2436
    %2466 = vmatpush.msra.mxu0 %v2435
    %2467 = vmatmul.f32.gmra.mxu0 %v2434
    %v2468 = vpop.f32.mrf.mxu0
    %v2469 = vadd.f32 0.0, %v2468
    %2470 = vdwg.mxu0
    %v2471 = vmul.f32 %v2469, 0.125
    %v2472 = vld [vmem:[%s18] sm:$0xff]
    %v2473 = vld [vmem:[%s18 + $0x8] sm:$0xff]
    %v2474 = vld [vmem:[%s18 + $0x10] sm:$0xff]
    %v2475 = vld [vmem:[%s18 + $0x18] sm:$0xff]
    %vm2476 = vcmask 261120
    %v2478 = vsel %vm2476, %v2471, 0
    %2480 = vmatpush.msra.mxu0 0.0
    %2481 = vmatpush.msra.mxu0 0.0
    %2482 = vmatpush.msra.mxu0 0.0
    %2483 = vmatpush.msra.mxu0 0.0
    %2484 = vmatpush.msra.mxu0 0.0
    %2485 = vmatpush.msra.mxu0 0.0
    %2486 = vmatpush.msra.mxu0 0.0
    %2487 = vmatpush.msra.mxu0 0.0
    %2488 = vmatpush.msra.mxu0 0.0
    %2489 = vmatpush.msra.mxu0 0.0
    %2490 = vmatpush.msra.mxu0 0.0
    %2491 = vmatpush.msra.mxu0 0.0
    %2492 = vmatpush.msra.mxu0 %v2475
    %2493 = vmatpush.msra.mxu0 %v2474
    %2494 = vmatpush.msra.mxu0 %v2473
    %2495 = vmatpush.msra.mxu0 %v2472
    %2496 = vmatmul.f32.gmra.mxu0 %v2478
    %v2497 = vpop.f32.mrf.mxu0
    %v2498 = vadd.f32 0.0, %v2497
    %2499 = vdwg.mxu0
    %v2500 = vperm.slane %v2498, 0
    %v2501 = vsub.f32 %v2426, %v2500
    %v2502 = vmul.f32 %v2501, %v2501
    %v2503 = vsel %vm1257, %v2502, 0.0
    %v2504 = vrot.slane %v2503, 4
    %v2505 = vadd.f32 %v2503, %v2504
    %v2506 = vrot.slane %v2505, 2
    %v2507 = vadd.f32 %v2505, %v2506
    %v2508 = vrot.slane %v2507, 1
    %v2509 = vadd.f32 %v2507, %v2508
    %2510 = vmatpush.msra.mxu0 %v2450
    %2511 = vmatpush.msra.mxu0 %v2449
    %2512 = vmatpush.msra.mxu0 %v2448
    %2513 = vmatpush.msra.mxu0 %v2447
    %2514 = vmatpush.msra.mxu0 %v2446
    %2515 = vmatpush.msra.mxu0 %v2445
    %2516 = vmatpush.msra.mxu0 %v2444
    %2517 = vmatpush.msra.mxu0 %v2443
    %2518 = vmatpush.msra.mxu0 %v2442
    %2519 = vmatpush.msra.mxu0 %v2441
    %2520 = vmatpush.msra.mxu0 %v2440
    %2521 = vmatpush.msra.mxu0 %v2439
    %2522 = vmatpush.msra.mxu0 %v2438
    %2523 = vmatpush.msra.mxu0 %v2437
    %2524 = vmatpush.msra.mxu0 %v2436
    %2525 = vmatpush.msra.mxu0 %v2435
    %2526 = vmatmul.f32.gmra.mxu0 %v2509
    %v2527 = vpop.f32.mrf.mxu0
    %v2528 = vadd.f32 0.0, %v2527
    %2529 = vdwg.mxu0
    %v2530 = vmul.f32 %v2528, 0.125
    %v2531 = vadd.f32 %v2530, 1e-05
    %v2532 = vrsqrt.pop %v2531
    %v2533 = vmul.f32 %v2532, %v2531
    %v2534 = vmul.f32 %v2533, %v2532
    %v2535 = vmul.f32 0.5, %v2534
    %v2536 = vsub.f32 1.5, %v2535
    %v2537 = vmul.f32 %v2532, %v2536
    %vm2538 = vweird.f32 %v2531
    %vm2539 = vweird.f32 %v2532
    %vm2540 = vmor %vm2538, %vm2539
    %v2541 = vsel %vm2540, %v2532, %v2537
    %v2543 = vsel %vm2476, %v2541, 0
    %2545 = vmatpush.msra.mxu0 0.0
    %2546 = vmatpush.msra.mxu0 0.0
    %2547 = vmatpush.msra.mxu0 0.0
    %2548 = vmatpush.msra.mxu0 0.0
    %2549 = vmatpush.msra.mxu0 0.0
    %2550 = vmatpush.msra.mxu0 0.0
    %2551 = vmatpush.msra.mxu0 0.0
    %2552 = vmatpush.msra.mxu0 0.0
    %2553 = vmatpush.msra.mxu0 0.0
    %2554 = vmatpush.msra.mxu0 0.0
    %2555 = vmatpush.msra.mxu0 0.0
    %2556 = vmatpush.msra.mxu0 0.0
    %2557 = vmatpush.msra.mxu0 %v2475
    %2558 = vmatpush.msra.mxu0 %v2474
    %2559 = vmatpush.msra.mxu0 %v2473
    %2560 = vmatpush.msra.mxu0 %v2472
    %2561 = vmatmul.f32.gmra.mxu0 %v2543
    %v2562 = vpop.f32.mrf.mxu0
    %v2563 = vadd.f32 0.0, %v2562
    %2564 = vdwg.mxu0
    %v2565 = vperm.slane %v2563, 0
    %v2566 = vmul.f32 %v2501, %v2565
    %v2567 = vld [vmem:[%s15] sm:$0x1]
    %v2569 = vperm.slane %v2567, 0
    %v2571 = vmul.f32 %v2566, %v2569
    %v2572 = vld [vmem:[%s16] sm:$0x1]
    %v2574 = vperm.slane %v2572, 0
    %v2576 = vadd.f32 %v2571, %v2574
    %vm2577 = vcmp.gt.f32.partialorder %v2576, 0.0
    %v2578 = vmul.f32 %v2576, 0.01
    %v2579 = vsel %vm2577, %v2576, %v2578
    %v2580 = vld [vmem:[%s19] sm:$0xff]
    %v2581 = vld [vmem:[%s19 + $0x8] sm:$0xff]
    %v2582 = vld [vmem:[%s19 + $0x10] sm:$0xff]
    %v2583 = vld [vmem:[%s19 + $0x18] sm:$0xff]
    %v2584 = vld [vmem:[%s19 + $0x20] sm:$0xff]
    %v2585 = vld [vmem:[%s19 + $0x28] sm:$0xff]
    %v2586 = vld [vmem:[%s19 + $0x30] sm:$0xff]
    %v2587 = vld [vmem:[%s19 + $0x38] sm:$0xff]
    %v2588 = vld [vmem:[%s19 + $0x40] sm:$0xff]
    %v2589 = vld [vmem:[%s19 + $0x48] sm:$0xff]
    %v2590 = vld [vmem:[%s19 + $0x50] sm:$0xff]
    %v2591 = vld [vmem:[%s19 + $0x58] sm:$0xff]
    %v2592 = vld [vmem:[%s19 + $0x60] sm:$0xff]
    %v2593 = vld [vmem:[%s19 + $0x68] sm:$0xff]
    %v2594 = vld [vmem:[%s19 + $0x70] sm:$0xff]
    %v2595 = vld [vmem:[%s19 + $0x78] sm:$0xff]
    %v2596 = vld [vmem:[%s20] sm:$0x1]
    %v2598 = vperm.slane %v2596, 0
    %2600 = vmatpush.msra.mxu0 %v2595
    %2601 = vmatpush.msra.mxu0 %v2594
    %2602 = vmatpush.msra.mxu0 %v2593
    %2603 = vmatpush.msra.mxu0 %v2592
    %2604 = vmatpush.msra.mxu0 %v2591
    %2605 = vmatpush.msra.mxu0 %v2590
    %2606 = vmatpush.msra.mxu0 %v2589
    %2607 = vmatpush.msra.mxu0 %v2588
    %2608 = vmatpush.msra.mxu0 %v2587
    %2609 = vmatpush.msra.mxu0 %v2586
    %2610 = vmatpush.msra.mxu0 %v2585
    %2611 = vmatpush.msra.mxu0 %v2584
    %2612 = vmatpush.msra.mxu0 %v2583
    %2613 = vmatpush.msra.mxu0 %v2582
    %2614 = vmatpush.msra.mxu0 %v2581
    %2615 = vmatpush.msra.mxu0 %v2580
    %2616 = vmatmul.f32.gmra.mxu0 %v2579
    %v2617 = vpop.f32.mrf.mxu0
    %v2618 = vadd.f32 %v2598, %v2617
    %2619 = vdwg.mxu0
    %vm2620 = vcmask 58368
    %2621 = vst.msk [vmem:[#allocation2] sm:$0x3] %vm2620, %v2618
    %2623 = vrot.lane.b32.xlu0 %v2618, 120
    %v2624 = vpop.permute.xlu0 %2623
    %2626 = vst.msk [vmem:[#allocation4] sm:$0x3] %vm2620, %v2624
    // Predicated region
    $region86: #{encoder_forward.1} parent=1 // pred_check
      _
    $region87: #{encoder_forward.1} parent=1 // pred_check_branch
      %2628 = sbr.rel (0) target = $region89
    $region88: #{encoder_forward.1} parent=1 // pred_region
      %2630 = vsyncadd [#allocation3], 0
      %s2632 = sshll.u32 [#allocation2], 4
      %s2633 = int_to_ptr.vmem [resolvable:$true] %s2632
      %s2634 = sshll.u32 %s21, 4
      %s2635 = int_to_ptr.hbm [resolvable:$true] %s2634
      %2637 = dma.vmem_to_hbm [thread:$0]  %s2633, 32, %s2635, [#allocation3]
    $region89: #{encoder_forward.1} parent=1 // pred_fallthru
      _
    // Predicated region
    $region90: #{encoder_forward.1} parent=1 // pred_check
      _
    $region91: #{encoder_forward.1} parent=1 // pred_check_branch
      %2639 = sbr.rel (0) target = $region93
    $region92: #{encoder_forward.1} parent=1 // pred_region
      %2641 = vsyncadd [#allocation5], 0
      %s2643 = sshll.u32 [#allocation4], 4
      %s2644 = int_to_ptr.vmem [resolvable:$true] %s2643
      %s2645 = sshll.u32 %s22, 4
      %s2646 = int_to_ptr.hbm [resolvable:$true] %s2645
      %2648 = dma.vmem_to_hbm [thread:$0]  %s2644, 32, %s2646, [#allocation5]
    $region93: #{encoder_forward.1} parent=1 // pred_fallthru
      _
    // Predicated region
    $region94: #{encoder_forward.1} parent=1 // pred_check
      _
    $region95: #{encoder_forward.1} parent=1 // pred_check_branch
      %2650 = sbr.rel (0) target = $region97
    $region96: #{encoder_forward.1} parent=1 // pred_region
      %2652 = dma.done [#allocation3], 32
    $region97: #{encoder_forward.1} parent=1 // pred_fallthru
      _
    // Predicated region
    $region98: #{encoder_forward.1} parent=1 // pred_check
      _
    $region99: #{encoder_forward.1} parent=1 // pred_check_branch
      %2654 = sbr.rel (0) target = $region101
    $region100: #{encoder_forward.1} parent=1 // pred_region
      %2656 = dma.done [#allocation5], 32
    $region101: #{encoder_forward.1} parent=1 // pred_fallthru
      _
    %2657 = vsyncpa [#allocation3], 1
    %2658 = vsyncpa [#allocation5], 1

</llo_original>
